<compile_context>
chip_gen: v7x
topology: tpu7x:2x2x1
jax: 0.10.0
libtpu: 0.0.40
codegen_flags: <defaults>
</compile_context>

<pallas_src>
import math

import jax
import jax.numpy as jnp
from jax import lax
from jax.experimental import pallas as pl
from jax.experimental.pallas import tpu as pltpu


def _round_up(a, b):
    return -(-a // b) * b


def _lcm(a, b):
    return a * b // math.gcd(a, b)


def _make_kernel(c_in, c_out, k, c_lanes):
    """Fused conv+BN+ReLU kernel for static (c_in, c_out, k, c_lanes)."""

    def kernel(w_ref, scale_ref, shift_ref, x_ref, o_ref):
        # w_ref:     SMEM (c_out*c_in*k,) f32  -- flattened conv taps
        # scale_ref: SMEM (c_out,) f32         -- fused BN scale
        # shift_ref: SMEM (c_out,) f32         -- fused BN shift
        # x_ref:     VMEM (1, c_in, r_blk, c_lanes)
        # o_ref:     VMEM (1, c_out, r_blk, c_lanes)
        #
        # Hoist: load each input channel once and build its K lane-shifted
        # views once (XLU rolls); reuse them across all c_out channels.
        views = []
        for ci in range(c_in):
            xc = x_ref[0, ci].astype(jnp.float32)          # (r_blk, c_lanes)
            vv = [xc]
            for t in range(1, k):
                # shifted[f] = x[f + t] within each lane-row; the wraparound
                # only pollutes the k-1 discarded columns of the last data
                # row in the lane-row because c_lanes % w_pad == 0.
                vv.append(pltpu.roll(xc, shift=c_lanes - t, axis=1))
            views.append(vv)

        for co in range(c_out):
            # Register accumulation: one expression, one store per channel.
            acc = None
            for ci in range(c_in):
                for t in range(k):
                    term = w_ref[(co * c_in + ci) * k + t] * views[ci][t]
                    acc = term if acc is None else acc + term
            y = acc * scale_ref[co] + shift_ref[co]
            o_ref[0, co, :, :] = jnp.maximum(y, 0.0).astype(o_ref.dtype)

    return kernel


def conv1d_bn_relu(x, weight, gamma, beta, running_mean, running_var,
                   *, stride=1, padding=0, eps=1e-5, io_dtype=None,
                   vmem_block_budget=8 * 1024 * 1024):
    """x: (N, C_in, D, H, W) NCDHW; weight: (C_out, C_in, 1, 1, K)."""
    n, c_in, d, h, w = x.shape
    c_out = weight.shape[0]
    k = weight.shape[-1]
    sd = sh = sw = int(stride)          # PyTorch int stride -> all 3 dims
    io_dtype = x.dtype if io_dtype is None else jnp.dtype(io_dtype)

    # Kernel size 1 / padding 0 along D and H: stride is plain subsampling.
    xs = x[:, :, ::sd, ::sh, :]
    d_out, h_out = xs.shape[2], xs.shape[3]
    dh = d_out * h_out

    w_pad = w + 2 * padding
    w_conv = w_pad - k + 1              # stride-1 conv width along W

    # Lane-dense geometry: flatten (DH, W_pad) and view it as
    # (r_total, c_lanes) with c_lanes = lcm(128, w_pad).
    c_lanes = _lcm(128, w_pad)
    rows_per_lrow = c_lanes // w_pad    # data rows per 128-aligned lane-row

    itemsize = jnp.dtype(io_dtype).itemsize

    def block_bytes(r_lrows):           # in+out, double-buffered, sublane pad
        return (c_in + c_out) * _round_up(r_lrows, 8) * c_lanes * itemsize * 2

    dh_p = _round_up(dh, rows_per_lrow)
    r_total = dh_p * w_pad // c_lanes
    if block_bytes(r_total) <= vmem_block_budget:
        r_blk = r_total                 # whole DH extent per batch element
    else:
        # Tiled path: non-full blocks need the sublane dim to be a multiple of 8.
        r_blk = 8 * max(1, vmem_block_budget // block_bytes(8))
        rows_per_blk = r_blk * c_lanes // w_pad
        dh_p = _round_up(dh, rows_per_blk)
        r_total = dh_p * w_pad // c_lanes

    # One fused pad (W conv padding + DH row padding) = a single pass over x,
    # then pure reshapes (no transpose) into the lane-dense layout.
    x4 = xs.reshape(n, c_in, dh, w)
    x4 = jnp.pad(x4, ((0, 0), (0, 0), (0, dh_p - dh), (padding, padding)))
    x4 = x4.astype(io_dtype).reshape(n, c_in, r_total, c_lanes)

    # Flattened conv taps + fused (eval-mode) BN scale/shift as SMEM scalars.
    w_flat = weight[:, :, 0, 0, :].reshape(c_out * c_in * k).astype(jnp.float32)
    inv_std = 1.0 / jnp.sqrt(running_var.astype(jnp.float32) + eps)
    scale = (gamma * inv_std).astype(jnp.float32)
    shift = (beta - running_mean * gamma * inv_std).astype(jnp.float32)

    kernel = _make_kernel(c_in, c_out, k, c_lanes)
    out = pl.pallas_call(
        kernel,
        out_shape=jax.ShapeDtypeStruct((n, c_out, r_total, c_lanes), io_dtype),
        grid=(n, r_total // r_blk),
        in_specs=[
            pl.BlockSpec(memory_space=pltpu.MemorySpace.SMEM),   # conv taps
            pl.BlockSpec(memory_space=pltpu.MemorySpace.SMEM),   # BN scale
            pl.BlockSpec(memory_space=pltpu.MemorySpace.SMEM),   # BN shift
            pl.BlockSpec((1, c_in, r_blk, c_lanes),
                         lambda ni, ri: (ni, 0, ri, 0)),
        ],
        out_specs=pl.BlockSpec((1, c_out, r_blk, c_lanes),
                               lambda ni, ri: (ni, 0, ri, 0)),
        compiler_params=pltpu.CompilerParams(
            dimension_semantics=("parallel", "parallel"),
            vmem_limit_bytes=32 * 1024 * 1024),
    )(w_flat, scale, shift, x4)

    # Pure reshapes back, drop padded rows / discarded columns, apply W stride.
    out = out.reshape(n, c_out, dh_p, w_pad)[:, :, :dh, :w_conv]
    if sw > 1:
        # TODO(synk): for stride>1, compute only the strided output columns
        # inside the kernel (strided lane gather) instead of slicing here.
        out = out[..., ::sw]
    w_out = out.shape[-1]
    return out.reshape(n, c_out, d_out, h_out, w_out)


def reference(x, weight, gamma, beta, running_mean, running_var,
              *, stride=1, padding=0, eps=1e-5):
    """Plain-JAX reference matching nn.Conv3d + BatchNorm3d(eval) + ReLU."""
    y = lax.conv_general_dilated(
        x, weight,
        window_strides=(stride, stride, stride),
        padding=[(0, 0), (0, 0), (padding, padding)],
        dimension_numbers=("NCDHW", "OIDHW", "NCDHW"))
    inv_std = 1.0 / jnp.sqrt(running_var + eps)
    s = (gamma * inv_std).reshape(1, -1, 1, 1, 1)
    b = (beta - running_mean * gamma * inv_std).reshape(1, -1, 1, 1, 1)
    return jnp.maximum(y * s + b, 0.0)


if __name__ == "__main__":
    key = jax.random.PRNGKey(0)
    k_x, k_w, k_g, k_b, k_m, k_v = jax.random.split(key, 6)

    # Module config: Conv1D(C_in=4, C_out=8, kernel_size=3, stride=1, padding=1)
    C_in, C_out, K, stride, padding = 4, 8, 3, 1, 1
    N, D, H, W = 2, 3, 5, 16

    x = jax.random.normal(k_x, (N, C_in, D, H, W), dtype=jnp.float32)
    weight = 0.1 * jax.random.normal(
        k_w, (C_out, C_in, 1, 1, K), dtype=jnp.float32)
    gamma = 1.0 + 0.1 * jax.random.normal(k_g, (C_out,), dtype=jnp.float32)
    beta = 0.1 * jax.random.normal(k_b, (C_out,), dtype=jnp.float32)
    running_mean = 0.1 * jax.random.normal(k_m, (C_out,), dtype=jnp.float32)
    running_var = jnp.abs(
        1.0 + 0.1 * jax.random.normal(k_v, (C_out,), dtype=jnp.float32))

    out = conv1d_bn_relu(x, weight, gamma, beta, running_mean, running_var,
                         stride=stride, padding=padding)
    out = jax.block_until_ready(out)

    ref = reference(x, weight, gamma, beta, running_mean, running_var,
                    stride=stride, padding=padding)
    assert out.shape == ref.shape, (out.shape, ref.shape)
    assert jnp.allclose(out, ref, atol=1e-4, rtol=1e-4), float(
        jnp.max(jnp.abs(out - ref)))

    print("KERNEL_OK")
</pallas_src>

<mosaic_0001>
module attributes {stable_mosaic.version = 11 : i64} {
  func.func @kernel(%arg0: i32, %arg1: i32, %arg2: memref<96xf32, #tpu.memory_space<smem>>, %arg3: memref<8xf32, #tpu.memory_space<smem>>, %arg4: memref<8xf32, #tpu.memory_space<smem>>, %arg5: memref<1x4x1x1152xf32, #tpu.memory_space<vmem>>, %arg6: memref<1x8x1x1152xf32, #tpu.memory_space<vmem>>) attributes {dimension_semantics = [#tpu.dimension_semantics<parallel>, #tpu.dimension_semantics<parallel>], iteration_bounds = array<i64: 2, 1>, scalar_prefetch = 0 : i64, scratch_operands = 0 : i64, tpu.core_type = #tpu.core_type<tc>, window_params = [{transform_indices = @transform_0, window_bounds = array<i64: 96>}, {transform_indices = @transform_1, window_bounds = array<i64: 8>}, {transform_indices = @transform_2, window_bounds = array<i64: 8>}, {transform_indices = @transform_3, window_bounds = array<i64: 1, 4, 1, 1152>}, {transform_indices = @transform_4, window_bounds = array<i64: 1, 8, 1, 1152>}]} {
    %c0 = arith.constant 0 : index
    %c0_0 = arith.constant 0 : index
    %c0_1 = arith.constant 0 : index
    %c0_2 = arith.constant 0 : index
    %0 = vector.load %arg5[%c0, %c0_0, %c0_1, %c0_2] : memref<1x4x1x1152xf32, #tpu.memory_space<vmem>>, vector<1x1x1x1152xf32>
    %1 = vector.shape_cast %0 : vector<1x1x1x1152xf32> to vector<1x1152xf32>
    %c1151_i32 = arith.constant 1151 : i32
    %2 = tpu.dynamic_rotate %1 by %c1151_i32 dim 1 : vector<1x1152xf32>, i32 -> vector<1x1152xf32>
    %c1150_i32 = arith.constant 1150 : i32
    %3 = tpu.dynamic_rotate %1 by %c1150_i32 dim 1 : vector<1x1152xf32>, i32 -> vector<1x1152xf32>
    %c0_3 = arith.constant 0 : index
    %c1 = arith.constant 1 : index
    %c0_4 = arith.constant 0 : index
    %c0_5 = arith.constant 0 : index
    %4 = vector.load %arg5[%c0_3, %c1, %c0_4, %c0_5] : memref<1x4x1x1152xf32, #tpu.memory_space<vmem>>, vector<1x1x1x1152xf32>
    %5 = vector.shape_cast %4 : vector<1x1x1x1152xf32> to vector<1x1152xf32>
    %c1151_i32_6 = arith.constant 1151 : i32
    %6 = tpu.dynamic_rotate %5 by %c1151_i32_6 dim 1 : vector<1x1152xf32>, i32 -> vector<1x1152xf32>
    %c1150_i32_7 = arith.constant 1150 : i32
    %7 = tpu.dynamic_rotate %5 by %c1150_i32_7 dim 1 : vector<1x1152xf32>, i32 -> vector<1x1152xf32>
    %c0_8 = arith.constant 0 : index
    %c2 = arith.constant 2 : index
    %c0_9 = arith.constant 0 : index
    %c0_10 = arith.constant 0 : index
    %8 = vector.load %arg5[%c0_8, %c2, %c0_9, %c0_10] : memref<1x4x1x1152xf32, #tpu.memory_space<vmem>>, vector<1x1x1x1152xf32>
    %9 = vector.shape_cast %8 : vector<1x1x1x1152xf32> to vector<1x1152xf32>
    %c1151_i32_11 = arith.constant 1151 : i32
    %10 = tpu.dynamic_rotate %9 by %c1151_i32_11 dim 1 : vector<1x1152xf32>, i32 -> vector<1x1152xf32>
    %c1150_i32_12 = arith.constant 1150 : i32
    %11 = tpu.dynamic_rotate %9 by %c1150_i32_12 dim 1 : vector<1x1152xf32>, i32 -> vector<1x1152xf32>
    %c0_13 = arith.constant 0 : index
    %c3 = arith.constant 3 : index
    %c0_14 = arith.constant 0 : index
    %c0_15 = arith.constant 0 : index
    %12 = vector.load %arg5[%c0_13, %c3, %c0_14, %c0_15] : memref<1x4x1x1152xf32, #tpu.memory_space<vmem>>, vector<1x1x1x1152xf32>
    %13 = vector.shape_cast %12 : vector<1x1x1x1152xf32> to vector<1x1152xf32>
    %c1151_i32_16 = arith.constant 1151 : i32
    %14 = tpu.dynamic_rotate %13 by %c1151_i32_16 dim 1 : vector<1x1152xf32>, i32 -> vector<1x1152xf32>
    %c1150_i32_17 = arith.constant 1150 : i32
    %15 = tpu.dynamic_rotate %13 by %c1150_i32_17 dim 1 : vector<1x1152xf32>, i32 -> vector<1x1152xf32>
    %c0_18 = arith.constant 0 : index
    %16 = memref.load %arg2[%c0_18] : memref<96xf32, #tpu.memory_space<smem>>
    %17 = vector.broadcast %16 : f32 to vector<1x1152xf32>
    %18 = arith.mulf %17, %1 : vector<1x1152xf32>
    %c1_19 = arith.constant 1 : index
    %19 = memref.load %arg2[%c1_19] : memref<96xf32, #tpu.memory_space<smem>>
    %20 = vector.broadcast %19 : f32 to vector<1x1152xf32>
    %21 = arith.mulf %20, %2 : vector<1x1152xf32>
    %22 = arith.addf %18, %21 : vector<1x1152xf32>
    %c2_20 = arith.constant 2 : index
    %23 = memref.load %arg2[%c2_20] : memref<96xf32, #tpu.memory_space<smem>>
    %24 = vector.broadcast %23 : f32 to vector<1x1152xf32>
    %25 = arith.mulf %24, %3 : vector<1x1152xf32>
    %26 = arith.addf %22, %25 : vector<1x1152xf32>
    %c3_21 = arith.constant 3 : index
    %27 = memref.load %arg2[%c3_21] : memref<96xf32, #tpu.memory_space<smem>>
    %28 = vector.broadcast %27 : f32 to vector<1x1152xf32>
    %29 = arith.mulf %28, %5 : vector<1x1152xf32>
    %30 = arith.addf %26, %29 : vector<1x1152xf32>
    %c4 = arith.constant 4 : index
    %31 = memref.load %arg2[%c4] : memref<96xf32, #tpu.memory_space<smem>>
    %32 = vector.broadcast %31 : f32 to vector<1x1152xf32>
    %33 = arith.mulf %32, %6 : vector<1x1152xf32>
    %34 = arith.addf %30, %33 : vector<1x1152xf32>
    %c5 = arith.constant 5 : index
    %35 = memref.load %arg2[%c5] : memref<96xf32, #tpu.memory_space<smem>>
    %36 = vector.broadcast %35 : f32 to vector<1x1152xf32>
    %37 = arith.mulf %36, %7 : vector<1x1152xf32>
    %38 = arith.addf %34, %37 : vector<1x1152xf32>
    %c6 = arith.constant 6 : index
    %39 = memref.load %arg2[%c6] : memref<96xf32, #tpu.memory_space<smem>>
    %40 = vector.broadcast %39 : f32 to vector<1x1152xf32>
    %41 = arith.mulf %40, %9 : vector<1x1152xf32>
    %42 = arith.addf %38, %41 : vector<1x1152xf32>
    %c7 = arith.constant 7 : index
    %43 = memref.load %arg2[%c7] : memref<96xf32, #tpu.memory_space<smem>>
    %44 = vector.broadcast %43 : f32 to vector<1x1152xf32>
    %45 = arith.mulf %44, %10 : vector<1x1152xf32>
    %46 = arith.addf %42, %45 : vector<1x1152xf32>
    %c8 = arith.constant 8 : index
    %47 = memref.load %arg2[%c8] : memref<96xf32, #tpu.memory_space<smem>>
    %48 = vector.broadcast %47 : f32 to vector<1x1152xf32>
    %49 = arith.mulf %48, %11 : vector<1x1152xf32>
    %50 = arith.addf %46, %49 : vector<1x1152xf32>
    %c9 = arith.constant 9 : index
    %51 = memref.load %arg2[%c9] : memref<96xf32, #tpu.memory_space<smem>>
    %52 = vector.broadcast %51 : f32 to vector<1x1152xf32>
    %53 = arith.mulf %52, %13 : vector<1x1152xf32>
    %54 = arith.addf %50, %53 : vector<1x1152xf32>
    %c10 = arith.constant 10 : index
    %55 = memref.load %arg2[%c10] : memref<96xf32, #tpu.memory_space<smem>>
    %56 = vector.broadcast %55 : f32 to vector<1x1152xf32>
    %57 = arith.mulf %56, %14 : vector<1x1152xf32>
    %58 = arith.addf %54, %57 : vector<1x1152xf32>
    %c11 = arith.constant 11 : index
    %59 = memref.load %arg2[%c11] : memref<96xf32, #tpu.memory_space<smem>>
    %60 = vector.broadcast %59 : f32 to vector<1x1152xf32>
    %61 = arith.mulf %60, %15 : vector<1x1152xf32>
    %62 = arith.addf %58, %61 : vector<1x1152xf32>
    %c0_22 = arith.constant 0 : index
    %63 = memref.load %arg3[%c0_22] : memref<8xf32, #tpu.memory_space<smem>>
    %64 = vector.broadcast %63 : f32 to vector<1x1152xf32>
    %65 = arith.mulf %62, %64 : vector<1x1152xf32>
    %c0_23 = arith.constant 0 : index
    %66 = memref.load %arg4[%c0_23] : memref<8xf32, #tpu.memory_space<smem>>
    %67 = vector.broadcast %66 : f32 to vector<1x1152xf32>
    %68 = arith.addf %65, %67 : vector<1x1152xf32>
    %cst = arith.constant 0.000000e+00 : f32
    %69 = vector.broadcast %cst : f32 to vector<1x1152xf32>
    %70 = arith.maximumf %68, %69 : vector<1x1152xf32>
    %c0_24 = arith.constant 0 : index
    %c0_25 = arith.constant 0 : index
    %c0_26 = arith.constant 0 : index
    %c0_27 = arith.constant 0 : index
    %71 = vector.load %arg6[%c0_24, %c0_25, %c0_26, %c0_27] : memref<1x8x1x1152xf32, #tpu.memory_space<vmem>>, vector<1x1x1x1152xf32>
    %72 = vector.shape_cast %71 : vector<1x1x1x1152xf32> to vector<1x1152xf32>
    %73 = vector.shape_cast %70 : vector<1x1152xf32> to vector<1x1x1x1152xf32>
    tpu.vector_store %arg6[%c0_24, %c0_25, %c0_26, %c0_27], %73 {strides = array<i32>} : memref<1x8x1x1152xf32, #tpu.memory_space<vmem>>, vector<1x1x1x1152xf32>,
    %c12 = arith.constant 12 : index
    %74 = memref.load %arg2[%c12] : memref<96xf32, #tpu.memory_space<smem>>
    %75 = vector.broadcast %74 : f32 to vector<1x1152xf32>
    %76 = arith.mulf %75, %1 : vector<1x1152xf32>
    %c13 = arith.constant 13 : index
    %77 = memref.load %arg2[%c13] : memref<96xf32, #tpu.memory_space<smem>>
    %78 = vector.broadcast %77 : f32 to vector<1x1152xf32>
    %79 = arith.mulf %78, %2 : vector<1x1152xf32>
    %80 = arith.addf %76, %79 : vector<1x1152xf32>
    %c14 = arith.constant 14 : index
    %81 = memref.load %arg2[%c14] : memref<96xf32, #tpu.memory_space<smem>>
    %82 = vector.broadcast %81 : f32 to vector<1x1152xf32>
    %83 = arith.mulf %82, %3 : vector<1x1152xf32>
    %84 = arith.addf %80, %83 : vector<1x1152xf32>
    %c15 = arith.constant 15 : index
    %85 = memref.load %arg2[%c15] : memref<96xf32, #tpu.memory_space<smem>>
    %86 = vector.broadcast %85 : f32 to vector<1x1152xf32>
    %87 = arith.mulf %86, %5 : vector<1x1152xf32>
    %88 = arith.addf %84, %87 : vector<1x1152xf32>
    %c16 = arith.constant 16 : index
    %89 = memref.load %arg2[%c16] : memref<96xf32, #tpu.memory_space<smem>>
    %90 = vector.broadcast %89 : f32 to vector<1x1152xf32>
    %91 = arith.mulf %90, %6 : vector<1x1152xf32>
    %92 = arith.addf %88, %91 : vector<1x1152xf32>
    %c17 = arith.constant 17 : index
    %93 = memref.load %arg2[%c17] : memref<96xf32, #tpu.memory_space<smem>>
    %94 = vector.broadcast %93 : f32 to vector<1x1152xf32>
    %95 = arith.mulf %94, %7 : vector<1x1152xf32>
    %96 = arith.addf %92, %95 : vector<1x1152xf32>
    %c18 = arith.constant 18 : index
    %97 = memref.load %arg2[%c18] : memref<96xf32, #tpu.memory_space<smem>>
    %98 = vector.broadcast %97 : f32 to vector<1x1152xf32>
    %99 = arith.mulf %98, %9 : vector<1x1152xf32>
    %100 = arith.addf %96, %99 : vector<1x1152xf32>
    %c19 = arith.constant 19 : index
    %101 = memref.load %arg2[%c19] : memref<96xf32, #tpu.memory_space<smem>>
    %102 = vector.broadcast %101 : f32 to vector<1x1152xf32>
    %103 = arith.mulf %102, %10 : vector<1x1152xf32>
    %104 = arith.addf %100, %103 : vector<1x1152xf32>
    %c20 = arith.constant 20 : index
    %105 = memref.load %arg2[%c20] : memref<96xf32, #tpu.memory_space<smem>>
    %106 = vector.broadcast %105 : f32 to vector<1x1152xf32>
    %107 = arith.mulf %106, %11 : vector<1x1152xf32>
    %108 = arith.addf %104, %107 : vector<1x1152xf32>
    %c21 = arith.constant 21 : index
    %109 = memref.load %arg2[%c21] : memref<96xf32, #tpu.memory_space<smem>>
    %110 = vector.broadcast %109 : f32 to vector<1x1152xf32>
    %111 = arith.mulf %110, %13 : vector<1x1152xf32>
    %112 = arith.addf %108, %111 : vector<1x1152xf32>
    %c22 = arith.constant 22 : index
    %113 = memref.load %arg2[%c22] : memref<96xf32, #tpu.memory_space<smem>>
    %114 = vector.broadcast %113 : f32 to vector<1x1152xf32>
    %115 = arith.mulf %114, %14 : vector<1x1152xf32>
    %116 = arith.addf %112, %115 : vector<1x1152xf32>
    %c23 = arith.constant 23 : index
    %117 = memref.load %arg2[%c23] : memref<96xf32, #tpu.memory_space<smem>>
    %118 = vector.broadcast %117 : f32 to vector<1x1152xf32>
    %119 = arith.mulf %118, %15 : vector<1x1152xf32>
    %120 = arith.addf %116, %119 : vector<1x1152xf32>
    %c1_28 = arith.constant 1 : index
    %121 = memref.load %arg3[%c1_28] : memref<8xf32, #tpu.memory_space<smem>>
    %122 = vector.broadcast %121 : f32 to vector<1x1152xf32>
    %123 = arith.mulf %120, %122 : vector<1x1152xf32>
    %c1_29 = arith.constant 1 : index
    %124 = memref.load %arg4[%c1_29] : memref<8xf32, #tpu.memory_space<smem>>
    %125 = vector.broadcast %124 : f32 to vector<1x1152xf32>
    %126 = arith.addf %123, %125 : vector<1x1152xf32>
    %cst_30 = arith.constant 0.000000e+00 : f32
    %127 = vector.broadcast %cst_30 : f32 to vector<1x1152xf32>
    %128 = arith.maximumf %126, %127 : vector<1x1152xf32>
    %c0_31 = arith.constant 0 : index
    %c1_32 = arith.constant 1 : index
    %c0_33 = arith.constant 0 : index
    %c0_34 = arith.constant 0 : index
    %129 = vector.load %arg6[%c0_31, %c1_32, %c0_33, %c0_34] : memref<1x8x1x1152xf32, #tpu.memory_space<vmem>>, vector<1x1x1x1152xf32>
    %130 = vector.shape_cast %129 : vector<1x1x1x1152xf32> to vector<1x1152xf32>
    %131 = vector.shape_cast %128 : vector<1x1152xf32> to vector<1x1x1x1152xf32>
    tpu.vector_store %arg6[%c0_31, %c1_32, %c0_33, %c0_34], %131 {strides = array<i32>} : memref<1x8x1x1152xf32, #tpu.memory_space<vmem>>, vector<1x1x1x1152xf32>,
    %c24 = arith.constant 24 : index
    %132 = memref.load %arg2[%c24] : memref<96xf32, #tpu.memory_space<smem>>
    %133 = vector.broadcast %132 : f32 to vector<1x1152xf32>
    %134 = arith.mulf %133, %1 : vector<1x1152xf32>
    %c25 = arith.constant 25 : index
    %135 = memref.load %arg2[%c25] : memref<96xf32, #tpu.memory_space<smem>>
    %136 = vector.broadcast %135 : f32 to vector<1x1152xf32>
    %137 = arith.mulf %136, %2 : vector<1x1152xf32>
    %138 = arith.addf %134, %137 : vector<1x1152xf32>
    %c26 = arith.constant 26 : index
    %139 = memref.load %arg2[%c26] : memref<96xf32, #tpu.memory_space<smem>>
    %140 = vector.broadcast %139 : f32 to vector<1x1152xf32>
    %141 = arith.mulf %140, %3 : vector<1x1152xf32>
    %142 = arith.addf %138, %141 : vector<1x1152xf32>
    %c27 = arith.constant 27 : index
    %143 = memref.load %arg2[%c27] : memref<96xf32, #tpu.memory_space<smem>>
    %144 = vector.broadcast %143 : f32 to vector<1x1152xf32>
    %145 = arith.mulf %144, %5 : vector<1x1152xf32>
    %146 = arith.addf %142, %145 : vector<1x1152xf32>
    %c28 = arith.constant 28 : index
    %147 = memref.load %arg2[%c28] : memref<96xf32, #tpu.memory_space<smem>>
    %148 = vector.broadcast %147 : f32 to vector<1x1152xf32>
    %149 = arith.mulf %148, %6 : vector<1x1152xf32>
    %150 = arith.addf %146, %149 : vector<1x1152xf32>
    %c29 = arith.constant 29 : index
    %151 = memref.load %arg2[%c29] : memref<96xf32, #tpu.memory_space<smem>>
    %152 = vector.broadcast %151 : f32 to vector<1x1152xf32>
    %153 = arith.mulf %152, %7 : vector<1x1152xf32>
    %154 = arith.addf %150, %153 : vector<1x1152xf32>
    %c30 = arith.constant 30 : index
    %155 = memref.load %arg2[%c30] : memref<96xf32, #tpu.memory_space<smem>>
    %156 = vector.broadcast %155 : f32 to vector<1x1152xf32>
    %157 = arith.mulf %156, %9 : vector<1x1152xf32>
    %158 = arith.addf %154, %157 : vector<1x1152xf32>
    %c31 = arith.constant 31 : index
    %159 = memref.load %arg2[%c31] : memref<96xf32, #tpu.memory_space<smem>>
    %160 = vector.broadcast %159 : f32 to vector<1x1152xf32>
    %161 = arith.mulf %160, %10 : vector<1x1152xf32>
    %162 = arith.addf %158, %161 : vector<1x1152xf32>
    %c32 = arith.constant 32 : index
    %163 = memref.load %arg2[%c32] : memref<96xf32, #tpu.memory_space<smem>>
    %164 = vector.broadcast %163 : f32 to vector<1x1152xf32>
    %165 = arith.mulf %164, %11 : vector<1x1152xf32>
    %166 = arith.addf %162, %165 : vector<1x1152xf32>
    %c33 = arith.constant 33 : index
    %167 = memref.load %arg2[%c33] : memref<96xf32, #tpu.memory_space<smem>>
    %168 = vector.broadcast %167 : f32 to vector<1x1152xf32>
    %169 = arith.mulf %168, %13 : vector<1x1152xf32>
    %170 = arith.addf %166, %169 : vector<1x1152xf32>
    %c34 = arith.constant 34 : index
    %171 = memref.load %arg2[%c34] : memref<96xf32, #tpu.memory_space<smem>>
    %172 = vector.broadcast %171 : f32 to vector<1x1152xf32>
    %173 = arith.mulf %172, %14 : vector<1x1152xf32>
    %174 = arith.addf %170, %173 : vector<1x1152xf32>
    %c35 = arith.constant 35 : index
    %175 = memref.load %arg2[%c35] : memref<96xf32, #tpu.memory_space<smem>>
    %176 = vector.broadcast %175 : f32 to vector<1x1152xf32>
    %177 = arith.mulf %176, %15 : vector<1x1152xf32>
    %178 = arith.addf %174, %177 : vector<1x1152xf32>
    %c2_35 = arith.constant 2 : index
    %179 = memref.load %arg3[%c2_35] : memref<8xf32, #tpu.memory_space<smem>>
    %180 = vector.broadcast %179 : f32 to vector<1x1152xf32>
    %181 = arith.mulf %178, %180 : vector<1x1152xf32>
    %c2_36 = arith.constant 2 : index
    %182 = memref.load %arg4[%c2_36] : memref<8xf32, #tpu.memory_space<smem>>
    %183 = vector.broadcast %182 : f32 to vector<1x1152xf32>
    %184 = arith.addf %181, %183 : vector<1x1152xf32>
    %cst_37 = arith.constant 0.000000e+00 : f32
    %185 = vector.broadcast %cst_37 : f32 to vector<1x1152xf32>
    %186 = arith.maximumf %184, %185 : vector<1x1152xf32>
    %c0_38 = arith.constant 0 : index
    %c2_39 = arith.constant 2 : index
    %c0_40 = arith.constant 0 : index
    %c0_41 = arith.constant 0 : index
    %187 = vector.load %arg6[%c0_38, %c2_39, %c0_40, %c0_41] : memref<1x8x1x1152xf32, #tpu.memory_space<vmem>>, vector<1x1x1x1152xf32>
    %188 = vector.shape_cast %187 : vector<1x1x1x1152xf32> to vector<1x1152xf32>
    %189 = vector.shape_cast %186 : vector<1x1152xf32> to vector<1x1x1x1152xf32>
    tpu.vector_store %arg6[%c0_38, %c2_39, %c0_40, %c0_41], %189 {strides = array<i32>} : memref<1x8x1x1152xf32, #tpu.memory_space<vmem>>, vector<1x1x1x1152xf32>,
    %c36 = arith.constant 36 : index
    %190 = memref.load %arg2[%c36] : memref<96xf32, #tpu.memory_space<smem>>
    %191 = vector.broadcast %190 : f32 to vector<1x1152xf32>
    %192 = arith.mulf %191, %1 : vector<1x1152xf32>
    %c37 = arith.constant 37 : index
    %193 = memref.load %arg2[%c37] : memref<96xf32, #tpu.memory_space<smem>>
    %194 = vector.broadcast %193 : f32 to vector<1x1152xf32>
    %195 = arith.mulf %194, %2 : vector<1x1152xf32>
    %196 = arith.addf %192, %195 : vector<1x1152xf32>
    %c38 = arith.constant 38 : index
    %197 = memref.load %arg2[%c38] : memref<96xf32, #tpu.memory_space<smem>>
    %198 = vector.broadcast %197 : f32 to vector<1x1152xf32>
    %199 = arith.mulf %198, %3 : vector<1x1152xf32>
    %200 = arith.addf %196, %199 : vector<1x1152xf32>
    %c39 = arith.constant 39 : index
    %201 = memref.load %arg2[%c39] : memref<96xf32, #tpu.memory_space<smem>>
    %202 = vector.broadcast %201 : f32 to vector<1x1152xf32>
    %203 = arith.mulf %202, %5 : vector<1x1152xf32>
    %204 = arith.addf %200, %203 : vector<1x1152xf32>
    %c40 = arith.constant 40 : index
    %205 = memref.load %arg2[%c40] : memref<96xf32, #tpu.memory_space<smem>>
    %206 = vector.broadcast %205 : f32 to vector<1x1152xf32>
    %207 = arith.mulf %206, %6 : vector<1x1152xf32>
    %208 = arith.addf %204, %207 : vector<1x1152xf32>
    %c41 = arith.constant 41 : index
    %209 = memref.load %arg2[%c41] : memref<96xf32, #tpu.memory_space<smem>>
    %210 = vector.broadcast %209 : f32 to vector<1x1152xf32>
    %211 = arith.mulf %210, %7 : vector<1x1152xf32>
    %212 = arith.addf %208, %211 : vector<1x1152xf32>
    %c42 = arith.constant 42 : index
    %213 = memref.load %arg2[%c42] : memref<96xf32, #tpu.memory_space<smem>>
    %214 = vector.broadcast %213 : f32 to vector<1x1152xf32>
    %215 = arith.mulf %214, %9 : vector<1x1152xf32>
    %216 = arith.addf %212, %215 : vector<1x1152xf32>
    %c43 = arith.constant 43 : index
    %217 = memref.load %arg2[%c43] : memref<96xf32, #tpu.memory_space<smem>>
    %218 = vector.broadcast %217 : f32 to vector<1x1152xf32>
    %219 = arith.mulf %218, %10 : vector<1x1152xf32>
    %220 = arith.addf %216, %219 : vector<1x1152xf32>
    %c44 = arith.constant 44 : index
    %221 = memref.load %arg2[%c44] : memref<96xf32, #tpu.memory_space<smem>>
    %222 = vector.broadcast %221 : f32 to vector<1x1152xf32>
    %223 = arith.mulf %222, %11 : vector<1x1152xf32>
    %224 = arith.addf %220, %223 : vector<1x1152xf32>
    %c45 = arith.constant 45 : index
    %225 = memref.load %arg2[%c45] : memref<96xf32, #tpu.memory_space<smem>>
    %226 = vector.broadcast %225 : f32 to vector<1x1152xf32>
    %227 = arith.mulf %226, %13 : vector<1x1152xf32>
    %228 = arith.addf %224, %227 : vector<1x1152xf32>
    %c46 = arith.constant 46 : index
    %229 = memref.load %arg2[%c46] : memref<96xf32, #tpu.memory_space<smem>>
    %230 = vector.broadcast %229 : f32 to vector<1x1152xf32>
    %231 = arith.mulf %230, %14 : vector<1x1152xf32>
    %232 = arith.addf %228, %231 : vector<1x1152xf32>
    %c47 = arith.constant 47 : index
    %233 = memref.load %arg2[%c47] : memref<96xf32, #tpu.memory_space<smem>>
    %234 = vector.broadcast %233 : f32 to vector<1x1152xf32>
    %235 = arith.mulf %234, %15 : vector<1x1152xf32>
    %236 = arith.addf %232, %235 : vector<1x1152xf32>
    %c3_42 = arith.constant 3 : index
    %237 = memref.load %arg3[%c3_42] : memref<8xf32, #tpu.memory_space<smem>>
    %238 = vector.broadcast %237 : f32 to vector<1x1152xf32>
    %239 = arith.mulf %236, %238 : vector<1x1152xf32>
    %c3_43 = arith.constant 3 : index
    %240 = memref.load %arg4[%c3_43] : memref<8xf32, #tpu.memory_space<smem>>
    %241 = vector.broadcast %240 : f32 to vector<1x1152xf32>
    %242 = arith.addf %239, %241 : vector<1x1152xf32>
    %cst_44 = arith.constant 0.000000e+00 : f32
    %243 = vector.broadcast %cst_44 : f32 to vector<1x1152xf32>
    %244 = arith.maximumf %242, %243 : vector<1x1152xf32>
    %c0_45 = arith.constant 0 : index
    %c3_46 = arith.constant 3 : index
    %c0_47 = arith.constant 0 : index
    %c0_48 = arith.constant 0 : index
    %245 = vector.load %arg6[%c0_45, %c3_46, %c0_47, %c0_48] : memref<1x8x1x1152xf32, #tpu.memory_space<vmem>>, vector<1x1x1x1152xf32>
    %246 = vector.shape_cast %245 : vector<1x1x1x1152xf32> to vector<1x1152xf32>
    %247 = vector.shape_cast %244 : vector<1x1152xf32> to vector<1x1x1x1152xf32>
    tpu.vector_store %arg6[%c0_45, %c3_46, %c0_47, %c0_48], %247 {strides = array<i32>} : memref<1x8x1x1152xf32, #tpu.memory_space<vmem>>, vector<1x1x1x1152xf32>,
    %c48 = arith.constant 48 : index
    %248 = memref.load %arg2[%c48] : memref<96xf32, #tpu.memory_space<smem>>
    %249 = vector.broadcast %248 : f32 to vector<1x1152xf32>
    %250 = arith.mulf %249, %1 : vector<1x1152xf32>
    %c49 = arith.constant 49 : index
    %251 = memref.load %arg2[%c49] : memref<96xf32, #tpu.memory_space<smem>>
    %252 = vector.broadcast %251 : f32 to vector<1x1152xf32>
    %253 = arith.mulf %252, %2 : vector<1x1152xf32>
    %254 = arith.addf %250, %253 : vector<1x1152xf32>
    %c50 = arith.constant 50 : index
    %255 = memref.load %arg2[%c50] : memref<96xf32, #tpu.memory_space<smem>>
    %256 = vector.broadcast %255 : f32 to vector<1x1152xf32>
    %257 = arith.mulf %256, %3 : vector<1x1152xf32>
    %258 = arith.addf %254, %257 : vector<1x1152xf32>
    %c51 = arith.constant 51 : index
    %259 = memref.load %arg2[%c51] : memref<96xf32, #tpu.memory_space<smem>>
    %260 = vector.broadcast %259 : f32 to vector<1x1152xf32>
    %261 = arith.mulf %260, %5 : vector<1x1152xf32>
    %262 = arith.addf %258, %261 : vector<1x1152xf32>
    %c52 = arith.constant 52 : index
    %263 = memref.load %arg2[%c52] : memref<96xf32, #tpu.memory_space<smem>>
    %264 = vector.broadcast %263 : f32 to vector<1x1152xf32>
    %265 = arith.mulf %264, %6 : vector<1x1152xf32>
    %266 = arith.addf %262, %265 : vector<1x1152xf32>
    %c53 = arith.constant 53 : index
    %267 = memref.load %arg2[%c53] : memref<96xf32, #tpu.memory_space<smem>>
    %268 = vector.broadcast %267 : f32 to vector<1x1152xf32>
    %269 = arith.mulf %268, %7 : vector<1x1152xf32>
    %270 = arith.addf %266, %269 : vector<1x1152xf32>
    %c54 = arith.constant 54 : index
    %271 = memref.load %arg2[%c54] : memref<96xf32, #tpu.memory_space<smem>>
    %272 = vector.broadcast %271 : f32 to vector<1x1152xf32>
    %273 = arith.mulf %272, %9 : vector<1x1152xf32>
    %274 = arith.addf %270, %273 : vector<1x1152xf32>
    %c55 = arith.constant 55 : index
    %275 = memref.load %arg2[%c55] : memref<96xf32, #tpu.memory_space<smem>>
    %276 = vector.broadcast %275 : f32 to vector<1x1152xf32>
    %277 = arith.mulf %276, %10 : vector<1x1152xf32>
    %278 = arith.addf %274, %277 : vector<1x1152xf32>
    %c56 = arith.constant 56 : index
    %279 = memref.load %arg2[%c56] : memref<96xf32, #tpu.memory_space<smem>>
    %280 = vector.broadcast %279 : f32 to vector<1x1152xf32>
    %281 = arith.mulf %280, %11 : vector<1x1152xf32>
    %282 = arith.addf %278, %281 : vector<1x1152xf32>
    %c57 = arith.constant 57 : index
    %283 = memref.load %arg2[%c57] : memref<96xf32, #tpu.memory_space<smem>>
    %284 = vector.broadcast %283 : f32 to vector<1x1152xf32>
    %285 = arith.mulf %284, %13 : vector<1x1152xf32>
    %286 = arith.addf %282, %285 : vector<1x1152xf32>
    %c58 = arith.constant 58 : index
    %287 = memref.load %arg2[%c58] : memref<96xf32, #tpu.memory_space<smem>>
    %288 = vector.broadcast %287 : f32 to vector<1x1152xf32>
    %289 = arith.mulf %288, %14 : vector<1x1152xf32>
    %290 = arith.addf %286, %289 : vector<1x1152xf32>
    %c59 = arith.constant 59 : index
    %291 = memref.load %arg2[%c59] : memref<96xf32, #tpu.memory_space<smem>>
    %292 = vector.broadcast %291 : f32 to vector<1x1152xf32>
    %293 = arith.mulf %292, %15 : vector<1x1152xf32>
    %294 = arith.addf %290, %293 : vector<1x1152xf32>
    %c4_49 = arith.constant 4 : index
    %295 = memref.load %arg3[%c4_49] : memref<8xf32, #tpu.memory_space<smem>>
    %296 = vector.broadcast %295 : f32 to vector<1x1152xf32>
    %297 = arith.mulf %294, %296 : vector<1x1152xf32>
    %c4_50 = arith.constant 4 : index
    %298 = memref.load %arg4[%c4_50] : memref<8xf32, #tpu.memory_space<smem>>
    %299 = vector.broadcast %298 : f32 to vector<1x1152xf32>
    %300 = arith.addf %297, %299 : vector<1x1152xf32>
    %cst_51 = arith.constant 0.000000e+00 : f32
    %301 = vector.broadcast %cst_51 : f32 to vector<1x1152xf32>
    %302 = arith.maximumf %300, %301 : vector<1x1152xf32>
    %c0_52 = arith.constant 0 : index
    %c4_53 = arith.constant 4 : index
    %c0_54 = arith.constant 0 : index
    %c0_55 = arith.constant 0 : index
    %303 = vector.load %arg6[%c0_52, %c4_53, %c0_54, %c0_55] : memref<1x8x1x1152xf32, #tpu.memory_space<vmem>>, vector<1x1x1x1152xf32>
    %304 = vector.shape_cast %303 : vector<1x1x1x1152xf32> to vector<1x1152xf32>
    %305 = vector.shape_cast %302 : vector<1x1152xf32> to vector<1x1x1x1152xf32>
    tpu.vector_store %arg6[%c0_52, %c4_53, %c0_54, %c0_55], %305 {strides = array<i32>} : memref<1x8x1x1152xf32, #tpu.memory_space<vmem>>, vector<1x1x1x1152xf32>,
    %c60 = arith.constant 60 : index
    %306 = memref.load %arg2[%c60] : memref<96xf32, #tpu.memory_space<smem>>
    %307 = vector.broadcast %306 : f32 to vector<1x1152xf32>
    %308 = arith.mulf %307, %1 : vector<1x1152xf32>
    %c61 = arith.constant 61 : index
    %309 = memref.load %arg2[%c61] : memref<96xf32, #tpu.memory_space<smem>>
    %310 = vector.broadcast %309 : f32 to vector<1x1152xf32>
    %311 = arith.mulf %310, %2 : vector<1x1152xf32>
    %312 = arith.addf %308, %311 : vector<1x1152xf32>
    %c62 = arith.constant 62 : index
    %313 = memref.load %arg2[%c62] : memref<96xf32, #tpu.memory_space<smem>>
    %314 = vector.broadcast %313 : f32 to vector<1x1152xf32>
    %315 = arith.mulf %314, %3 : vector<1x1152xf32>
    %316 = arith.addf %312, %315 : vector<1x1152xf32>
    %c63 = arith.constant 63 : index
    %317 = memref.load %arg2[%c63] : memref<96xf32, #tpu.memory_space<smem>>
    %318 = vector.broadcast %317 : f32 to vector<1x1152xf32>
    %319 = arith.mulf %318, %5 : vector<1x1152xf32>
    %320 = arith.addf %316, %319 : vector<1x1152xf32>
    %c64 = arith.constant 64 : index
    %321 = memref.load %arg2[%c64] : memref<96xf32, #tpu.memory_space<smem>>
    %322 = vector.broadcast %321 : f32 to vector<1x1152xf32>
    %323 = arith.mulf %322, %6 : vector<1x1152xf32>
    %324 = arith.addf %320, %323 : vector<1x1152xf32>
    %c65 = arith.constant 65 : index
    %325 = memref.load %arg2[%c65] : memref<96xf32, #tpu.memory_space<smem>>
    %326 = vector.broadcast %325 : f32 to vector<1x1152xf32>
    %327 = arith.mulf %326, %7 : vector<1x1152xf32>
    %328 = arith.addf %324, %327 : vector<1x1152xf32>
    %c66 = arith.constant 66 : index
    %329 = memref.load %arg2[%c66] : memref<96xf32, #tpu.memory_space<smem>>
    %330 = vector.broadcast %329 : f32 to vector<1x1152xf32>
    %331 = arith.mulf %330, %9 : vector<1x1152xf32>
    %332 = arith.addf %328, %331 : vector<1x1152xf32>
    %c67 = arith.constant 67 : index
    %333 = memref.load %arg2[%c67] : memref<96xf32, #tpu.memory_space<smem>>
    %334 = vector.broadcast %333 : f32 to vector<1x1152xf32>
    %335 = arith.mulf %334, %10 : vector<1x1152xf32>
    %336 = arith.addf %332, %335 : vector<1x1152xf32>
    %c68 = arith.constant 68 : index
    %337 = memref.load %arg2[%c68] : memref<96xf32, #tpu.memory_space<smem>>
    %338 = vector.broadcast %337 : f32 to vector<1x1152xf32>
    %339 = arith.mulf %338, %11 : vector<1x1152xf32>
    %340 = arith.addf %336, %339 : vector<1x1152xf32>
    %c69 = arith.constant 69 : index
    %341 = memref.load %arg2[%c69] : memref<96xf32, #tpu.memory_space<smem>>
    %342 = vector.broadcast %341 : f32 to vector<1x1152xf32>
    %343 = arith.mulf %342, %13 : vector<1x1152xf32>
    %344 = arith.addf %340, %343 : vector<1x1152xf32>
    %c70 = arith.constant 70 : index
    %345 = memref.load %arg2[%c70] : memref<96xf32, #tpu.memory_space<smem>>
    %346 = vector.broadcast %345 : f32 to vector<1x1152xf32>
    %347 = arith.mulf %346, %14 : vector<1x1152xf32>
    %348 = arith.addf %344, %347 : vector<1x1152xf32>
    %c71 = arith.constant 71 : index
    %349 = memref.load %arg2[%c71] : memref<96xf32, #tpu.memory_space<smem>>
    %350 = vector.broadcast %349 : f32 to vector<1x1152xf32>
    %351 = arith.mulf %350, %15 : vector<1x1152xf32>
    %352 = arith.addf %348, %351 : vector<1x1152xf32>
    %c5_56 = arith.constant 5 : index
    %353 = memref.load %arg3[%c5_56] : memref<8xf32, #tpu.memory_space<smem>>
    %354 = vector.broadcast %353 : f32 to vector<1x1152xf32>
    %355 = arith.mulf %352, %354 : vector<1x1152xf32>
    %c5_57 = arith.constant 5 : index
    %356 = memref.load %arg4[%c5_57] : memref<8xf32, #tpu.memory_space<smem>>
    %357 = vector.broadcast %356 : f32 to vector<1x1152xf32>
    %358 = arith.addf %355, %357 : vector<1x1152xf32>
    %cst_58 = arith.constant 0.000000e+00 : f32
    %359 = vector.broadcast %cst_58 : f32 to vector<1x1152xf32>
    %360 = arith.maximumf %358, %359 : vector<1x1152xf32>
    %c0_59 = arith.constant 0 : index
    %c5_60 = arith.constant 5 : index
    %c0_61 = arith.constant 0 : index
    %c0_62 = arith.constant 0 : index
    %361 = vector.load %arg6[%c0_59, %c5_60, %c0_61, %c0_62] : memref<1x8x1x1152xf32, #tpu.memory_space<vmem>>, vector<1x1x1x1152xf32>
    %362 = vector.shape_cast %361 : vector<1x1x1x1152xf32> to vector<1x1152xf32>
    %363 = vector.shape_cast %360 : vector<1x1152xf32> to vector<1x1x1x1152xf32>
    tpu.vector_store %arg6[%c0_59, %c5_60, %c0_61, %c0_62], %363 {strides = array<i32>} : memref<1x8x1x1152xf32, #tpu.memory_space<vmem>>, vector<1x1x1x1152xf32>,
    %c72 = arith.constant 72 : index
    %364 = memref.load %arg2[%c72] : memref<96xf32, #tpu.memory_space<smem>>
    %365 = vector.broadcast %364 : f32 to vector<1x1152xf32>
    %366 = arith.mulf %365, %1 : vector<1x1152xf32>
    %c73 = arith.constant 73 : index
    %367 = memref.load %arg2[%c73] : memref<96xf32, #tpu.memory_space<smem>>
    %368 = vector.broadcast %367 : f32 to vector<1x1152xf32>
    %369 = arith.mulf %368, %2 : vector<1x1152xf32>
    %370 = arith.addf %366, %369 : vector<1x1152xf32>
    %c74 = arith.constant 74 : index
    %371 = memref.load %arg2[%c74] : memref<96xf32, #tpu.memory_space<smem>>
    %372 = vector.broadcast %371 : f32 to vector<1x1152xf32>
    %373 = arith.mulf %372, %3 : vector<1x1152xf32>
    %374 = arith.addf %370, %373 : vector<1x1152xf32>
    %c75 = arith.constant 75 : index
    %375 = memref.load %arg2[%c75] : memref<96xf32, #tpu.memory_space<smem>>
    %376 = vector.broadcast %375 : f32 to vector<1x1152xf32>
    %377 = arith.mulf %376, %5 : vector<1x1152xf32>
    %378 = arith.addf %374, %377 : vector<1x1152xf32>
    %c76 = arith.constant 76 : index
    %379 = memref.load %arg2[%c76] : memref<96xf32, #tpu.memory_space<smem>>
    %380 = vector.broadcast %379 : f32 to vector<1x1152xf32>
    %381 = arith.mulf %380, %6 : vector<1x1152xf32>
    %382 = arith.addf %378, %381 : vector<1x1152xf32>
    %c77 = arith.constant 77 : index
    %383 = memref.load %arg2[%c77] : memref<96xf32, #tpu.memory_space<smem>>
    %384 = vector.broadcast %383 : f32 to vector<1x1152xf32>
    %385 = arith.mulf %384, %7 : vector<1x1152xf32>
    %386 = arith.addf %382, %385 : vector<1x1152xf32>
    %c78 = arith.constant 78 : index
    %387 = memref.load %arg2[%c78] : memref<96xf32, #tpu.memory_space<smem>>
    %388 = vector.broadcast %387 : f32 to vector<1x1152xf32>
    %389 = arith.mulf %388, %9 : vector<1x1152xf32>
    %390 = arith.addf %386, %389 : vector<1x1152xf32>
    %c79 = arith.constant 79 : index
    %391 = memref.load %arg2[%c79] : memref<96xf32, #tpu.memory_space<smem>>
    %392 = vector.broadcast %391 : f32 to vector<1x1152xf32>
    %393 = arith.mulf %392, %10 : vector<1x1152xf32>
    %394 = arith.addf %390, %393 : vector<1x1152xf32>
    %c80 = arith.constant 80 : index
    %395 = memref.load %arg2[%c80] : memref<96xf32, #tpu.memory_space<smem>>
    %396 = vector.broadcast %395 : f32 to vector<1x1152xf32>
    %397 = arith.mulf %396, %11 : vector<1x1152xf32>
    %398 = arith.addf %394, %397 : vector<1x1152xf32>
    %c81 = arith.constant 81 : index
    %399 = memref.load %arg2[%c81] : memref<96xf32, #tpu.memory_space<smem>>
    %400 = vector.broadcast %399 : f32 to vector<1x1152xf32>
    %401 = arith.mulf %400, %13 : vector<1x1152xf32>
    %402 = arith.addf %398, %401 : vector<1x1152xf32>
    %c82 = arith.constant 82 : index
    %403 = memref.load %arg2[%c82] : memref<96xf32, #tpu.memory_space<smem>>
    %404 = vector.broadcast %403 : f32 to vector<1x1152xf32>
    %405 = arith.mulf %404, %14 : vector<1x1152xf32>
    %406 = arith.addf %402, %405 : vector<1x1152xf32>
    %c83 = arith.constant 83 : index
    %407 = memref.load %arg2[%c83] : memref<96xf32, #tpu.memory_space<smem>>
    %408 = vector.broadcast %407 : f32 to vector<1x1152xf32>
    %409 = arith.mulf %408, %15 : vector<1x1152xf32>
    %410 = arith.addf %406, %409 : vector<1x1152xf32>
    %c6_63 = arith.constant 6 : index
    %411 = memref.load %arg3[%c6_63] : memref<8xf32, #tpu.memory_space<smem>>
    %412 = vector.broadcast %411 : f32 to vector<1x1152xf32>
    %413 = arith.mulf %410, %412 : vector<1x1152xf32>
    %c6_64 = arith.constant 6 : index
    %414 = memref.load %arg4[%c6_64] : memref<8xf32, #tpu.memory_space<smem>>
    %415 = vector.broadcast %414 : f32 to vector<1x1152xf32>
    %416 = arith.addf %413, %415 : vector<1x1152xf32>
    %cst_65 = arith.constant 0.000000e+00 : f32
    %417 = vector.broadcast %cst_65 : f32 to vector<1x1152xf32>
    %418 = arith.maximumf %416, %417 : vector<1x1152xf32>
    %c0_66 = arith.constant 0 : index
    %c6_67 = arith.constant 6 : index
    %c0_68 = arith.constant 0 : index
    %c0_69 = arith.constant 0 : index
    %419 = vector.load %arg6[%c0_66, %c6_67, %c0_68, %c0_69] : memref<1x8x1x1152xf32, #tpu.memory_space<vmem>>, vector<1x1x1x1152xf32>
    %420 = vector.shape_cast %419 : vector<1x1x1x1152xf32> to vector<1x1152xf32>
    %421 = vector.shape_cast %418 : vector<1x1152xf32> to vector<1x1x1x1152xf32>
    tpu.vector_store %arg6[%c0_66, %c6_67, %c0_68, %c0_69], %421 {strides = array<i32>} : memref<1x8x1x1152xf32, #tpu.memory_space<vmem>>, vector<1x1x1x1152xf32>,
    %c84 = arith.constant 84 : index
    %422 = memref.load %arg2[%c84] : memref<96xf32, #tpu.memory_space<smem>>
    %423 = vector.broadcast %422 : f32 to vector<1x1152xf32>
    %424 = arith.mulf %423, %1 : vector<1x1152xf32>
    %c85 = arith.constant 85 : index
    %425 = memref.load %arg2[%c85] : memref<96xf32, #tpu.memory_space<smem>>
    %426 = vector.broadcast %425 : f32 to vector<1x1152xf32>
    %427 = arith.mulf %426, %2 : vector<1x1152xf32>
    %428 = arith.addf %424, %427 : vector<1x1152xf32>
    %c86 = arith.constant 86 : index
    %429 = memref.load %arg2[%c86] : memref<96xf32, #tpu.memory_space<smem>>
    %430 = vector.broadcast %429 : f32 to vector<1x1152xf32>
    %431 = arith.mulf %430, %3 : vector<1x1152xf32>
    %432 = arith.addf %428, %431 : vector<1x1152xf32>
    %c87 = arith.constant 87 : index
    %433 = memref.load %arg2[%c87] : memref<96xf32, #tpu.memory_space<smem>>
    %434 = vector.broadcast %433 : f32 to vector<1x1152xf32>
    %435 = arith.mulf %434, %5 : vector<1x1152xf32>
    %436 = arith.addf %432, %435 : vector<1x1152xf32>
    %c88 = arith.constant 88 : index
    %437 = memref.load %arg2[%c88] : memref<96xf32, #tpu.memory_space<smem>>
    %438 = vector.broadcast %437 : f32 to vector<1x1152xf32>
    %439 = arith.mulf %438, %6 : vector<1x1152xf32>
    %440 = arith.addf %436, %439 : vector<1x1152xf32>
    %c89 = arith.constant 89 : index
    %441 = memref.load %arg2[%c89] : memref<96xf32, #tpu.memory_space<smem>>
    %442 = vector.broadcast %441 : f32 to vector<1x1152xf32>
    %443 = arith.mulf %442, %7 : vector<1x1152xf32>
    %444 = arith.addf %440, %443 : vector<1x1152xf32>
    %c90 = arith.constant 90 : index
    %445 = memref.load %arg2[%c90] : memref<96xf32, #tpu.memory_space<smem>>
    %446 = vector.broadcast %445 : f32 to vector<1x1152xf32>
    %447 = arith.mulf %446, %9 : vector<1x1152xf32>
    %448 = arith.addf %444, %447 : vector<1x1152xf32>
    %c91 = arith.constant 91 : index
    %449 = memref.load %arg2[%c91] : memref<96xf32, #tpu.memory_space<smem>>
    %450 = vector.broadcast %449 : f32 to vector<1x1152xf32>
    %451 = arith.mulf %450, %10 : vector<1x1152xf32>
    %452 = arith.addf %448, %451 : vector<1x1152xf32>
    %c92 = arith.constant 92 : index
    %453 = memref.load %arg2[%c92] : memref<96xf32, #tpu.memory_space<smem>>
    %454 = vector.broadcast %453 : f32 to vector<1x1152xf32>
    %455 = arith.mulf %454, %11 : vector<1x1152xf32>
    %456 = arith.addf %452, %455 : vector<1x1152xf32>
    %c93 = arith.constant 93 : index
    %457 = memref.load %arg2[%c93] : memref<96xf32, #tpu.memory_space<smem>>
    %458 = vector.broadcast %457 : f32 to vector<1x1152xf32>
    %459 = arith.mulf %458, %13 : vector<1x1152xf32>
    %460 = arith.addf %456, %459 : vector<1x1152xf32>
    %c94 = arith.constant 94 : index
    %461 = memref.load %arg2[%c94] : memref<96xf32, #tpu.memory_space<smem>>
    %462 = vector.broadcast %461 : f32 to vector<1x1152xf32>
    %463 = arith.mulf %462, %14 : vector<1x1152xf32>
    %464 = arith.addf %460, %463 : vector<1x1152xf32>
    %c95 = arith.constant 95 : index
    %465 = memref.load %arg2[%c95] : memref<96xf32, #tpu.memory_space<smem>>
    %466 = vector.broadcast %465 : f32 to vector<1x1152xf32>
    %467 = arith.mulf %466, %15 : vector<1x1152xf32>
    %468 = arith.addf %464, %467 : vector<1x1152xf32>
    %c7_70 = arith.constant 7 : index
    %469 = memref.load %arg3[%c7_70] : memref<8xf32, #tpu.memory_space<smem>>
    %470 = vector.broadcast %469 : f32 to vector<1x1152xf32>
    %471 = arith.mulf %468, %470 : vector<1x1152xf32>
    %c7_71 = arith.constant 7 : index
    %472 = memref.load %arg4[%c7_71] : memref<8xf32, #tpu.memory_space<smem>>
    %473 = vector.broadcast %472 : f32 to vector<1x1152xf32>
    %474 = arith.addf %471, %473 : vector<1x1152xf32>
    %cst_72 = arith.constant 0.000000e+00 : f32
    %475 = vector.broadcast %cst_72 : f32 to vector<1x1152xf32>
    %476 = arith.maximumf %474, %475 : vector<1x1152xf32>
    %c0_73 = arith.constant 0 : index
    %c7_74 = arith.constant 7 : index
    %c0_75 = arith.constant 0 : index
    %c0_76 = arith.constant 0 : index
    %477 = vector.load %arg6[%c0_73, %c7_74, %c0_75, %c0_76] : memref<1x8x1x1152xf32, #tpu.memory_space<vmem>>, vector<1x1x1x1152xf32>
    %478 = vector.shape_cast %477 : vector<1x1x1x1152xf32> to vector<1x1152xf32>
    %479 = vector.shape_cast %476 : vector<1x1152xf32> to vector<1x1x1x1152xf32>
    tpu.vector_store %arg6[%c0_73, %c7_74, %c0_75, %c0_76], %479 {strides = array<i32>} : memref<1x8x1x1152xf32, #tpu.memory_space<vmem>>, vector<1x1x1x1152xf32>,
    return
  }
  func.func @transform_0(%arg0: i32, %arg1: i32) -> i32 {
    %c0_i32 = arith.constant 0 : i32
    %c0_i32_0 = arith.constant 0 : i32
    return %c0_i32 : i32
  }
  func.func @transform_1(%arg0: i32, %arg1: i32) -> i32 {
    %c0_i32 = arith.constant 0 : i32
    %c0_i32_0 = arith.constant 0 : i32
    return %c0_i32 : i32
  }
  func.func @transform_2(%arg0: i32, %arg1: i32) -> i32 {
    %c0_i32 = arith.constant 0 : i32
    %c0_i32_0 = arith.constant 0 : i32
    return %c0_i32 : i32
  }
  func.func @transform_3(%arg0: i32, %arg1: i32) -> (i32, i32, i32, i32) {
    %c0_i32 = arith.constant 0 : i32
    %c0_i32_0 = arith.constant 0 : i32
    %c0_i32_1 = arith.constant 0 : i32
    return %arg0, %c0_i32, %arg1, %c0_i32_0 : i32, i32, i32, i32
  }
  func.func @transform_4(%arg0: i32, %arg1: i32) -> (i32, i32, i32, i32) {
    %c0_i32 = arith.constant 0 : i32
    %c0_i32_0 = arith.constant 0 : i32
    %c0_i32_1 = arith.constant 0 : i32
    return %arg0, %c0_i32, %arg1, %c0_i32_0 : i32, i32, i32, i32
  }
}

</mosaic_0001>

<llo_original>
// kernel: tpu_custom_call.1
$region0: #{tpu_custom_call.1}
  #allocation0 [shape = 'u32[]', space=smem, size = 0x4, offset = 0x4, fixed_abs, tag = 'smem constant byte address 0x4 - core index']
  #allocation1 [shape = 'u32[144,128]{1,0:T(1,128)}', space=vmem, size = 0x12000, scoped, tag = 'internal scratch']
  %s0 = inlined_call_operand.hbm [shape: f32[96], index: 0, kind: input, shape index: {}]
  %s1 = inlined_call_operand.vmem [shape: f32[8], index: 1, kind: input, shape index: {}]
  %s2 = inlined_call_operand.vmem [shape: f32[8], index: 2, kind: input, shape index: {}]
  %s3 = inlined_call_operand.hbm [shape: f32[2,4,1,1152], index: 3, kind: input, shape index: {}]
  %s4 = inlined_call_operand.hbm [shape: f32[2,8,1,1152], index: 4, kind: output, shape index: {}]
  %s5 = sld [smem:[#allocation0]]
  $region65: #{tpu_custom_call.1} parent=0
    _
  %s7 = ssub.s32 1, %s5
  %s8 = scalar_select 0, %s7, %s5
  $region1: #{tpu_custom_call.1} parent=0
    #allocation2 [shape = 'u8[512]{0}', space=smem, size = 0x200, scoped, tag = 'input window, operand 0, single buffered']
    #allocation3 [shape = 's32[2]{0}', space=sflag, size = 0x8, scoped, tag = 'scoped memory for tpu_custom_call.1']
    #allocation4 [shape = 's32[2]{0}', space=sflag, size = 0x8, scoped, tag = 'scoped memory for tpu_custom_call.1']
    #allocation5 [shape = 's32[2]{0}', space=sflag, size = 0x8, scoped, tag = 'scoped memory for tpu_custom_call.1']
    #allocation6 [shape = 's32[2]{0}', space=sflag, size = 0x8, scoped, tag = 'scoped memory for tpu_custom_call.1']
    #allocation7 [shape = 'u8[512]{0}', space=smem, size = 0x200, scoped, tag = 'input window, operand 1, single buffered']
    #allocation8 [shape = 'u8[512]{0}', space=smem, size = 0x200, scoped, tag = 'input window, operand 2, single buffered']
    #allocation9 [shape = 's32[1]{0}', space=sflag, size = 0x4, scoped, tag = 'scoped memory for tpu_custom_call.1']
    #allocation10 [shape = 'u8[36864]{0}', space=vmem, size = 0x9000, scoped, tag = 'input window, operand 3']
    #allocation11 [shape = 'u8[73728]{0}', space=vmem, size = 0x12000, scoped, tag = 'output window, operand 0']
    %9 = vsyncpa [#allocation5], 0
    %10 = vsyncpa [#allocation6], 0
    %11 = vsyncpa [#allocation9], 0
    %12 = vsyncpa [#allocation3], 0
    %s13 = scalar_lea.sflag [#allocation3], 1
    %14 = vsyncpa %s13, 0
    %15 = vsyncpa [#allocation4], 0
    %s16 = scalar_lea.sflag [#allocation4], 1
    %17 = vsyncpa %s16, 0
    loop: start=0, step=1, limit=4
    $region2: #{tpu_custom_call.1} parent=1 // loop_pre_header
      _
    $region3: #{tpu_custom_call.1} parent=1 // loop_header
      %s19 = sphi 0, %s23
      %p20 = scmp.ge.s32.totalorder %s19, 4
      %s26 = sphi 0, %s38
      %s27 = sphi 0, %s34
      %s28 = sphi 0, %s26
      %s29 = sphi 0, %s27
      %s30 = sphi 0, %s28
      %s31 = sphi 0, %s29
      %s39 = sphi 0, %s39
      %s41 = sphi 0, %s39
      %s42 = sphi 0, %s41
      %s56 = sphi 0, %s42
      %s60 = sphi 0, %s60
      %s62 = sphi 0, %s60
      %s63 = sphi 0, %s62
      %s77 = sphi 0, %s63
      %s81 = sphi 0, %s81
      %s83 = sphi 0, %s81
      %s84 = sphi 0, %s83
      %s98 = sphi 0, %s84
      %s106 = sphi 0, %s108
      %s109 = sphi 0, %s106
      %s110 = sphi 0, %s109
      %s126 = sphi 0, %s110
      %s134 = sphi 0, %s136
      %s137 = sphi 0, %s134
      %s138 = sphi 0, %s137
      %s154 = sphi 0, %s138
    $region4: #{tpu_custom_call.1} parent=1 // loop_header_branch
      %22 = sbr.rel (%p20) target = $region8
    $region5: #{tpu_custom_call.1} parent=1 // loop_body
      %s24 = ssub.s32 %s19, 1
      %s25 = ssub.s32 %s19, 2
      %s32 = sadd.s32 1, %s27
      %p33 = scmp.ge.s32.totalorder %s32, 1
      %s34 = scalar_select %p33, 0, %s32
      %s35 = sadd.s32 1, %s26
      %s36 = scalar_select %p33, %s35, %s26
      %p37 = scmp.ge.s32.totalorder %s36, 2
      %s38 = scalar_select %p37, 0, %s36
      %s40 = sadd.s32 %s39, 1
      %p43 = scmp.eq.s32.totalorder %s19, 1
      %p44 = scmp.ne.s32.totalorder %s39, %s41
      %p45 = scmp.eq.s32.totalorder %s19, 0
      %p46 = por %p44, %p45
      %p47 = scmp.ne.s32.totalorder %s39, %s41
      %p48 = scmp.eq.s32.totalorder %s24, 1
      %p49 = por %p47, %p48
      %p50 = scmp.ne.s32.totalorder %s41, %s42
      %p51 = scmp.eq.s32.totalorder %s24, 0
      %p52 = por %p50, %p51
      %p53 = scmp.ne.s32.totalorder %s41, %s42
      %p54 = scmp.eq.s32.totalorder %s25, 1
      %p55 = por %p53, %p54
      %p57 = scmp.ne.s32.totalorder %s42, %s56
      %p58 = scmp.eq.s32.totalorder %s25, 0
      %p59 = por %p57, %p58
      %s61 = sadd.s32 %s60, 1
      %p64 = scmp.eq.s32.totalorder %s19, 1
      %p65 = scmp.ne.s32.totalorder %s60, %s62
      %p66 = scmp.eq.s32.totalorder %s19, 0
      %p67 = por %p65, %p66
      %p68 = scmp.ne.s32.totalorder %s60, %s62
      %p69 = scmp.eq.s32.totalorder %s24, 1
      %p70 = por %p68, %p69
      %p71 = scmp.ne.s32.totalorder %s62, %s63
      %p72 = scmp.eq.s32.totalorder %s24, 0
      %p73 = por %p71, %p72
      %p74 = scmp.ne.s32.totalorder %s62, %s63
      %p75 = scmp.eq.s32.totalorder %s25, 1
      %p76 = por %p74, %p75
      %p78 = scmp.ne.s32.totalorder %s63, %s77
      %p79 = scmp.eq.s32.totalorder %s25, 0
      %p80 = por %p78, %p79
      %s82 = sadd.s32 %s81, 1
      %p85 = scmp.eq.s32.totalorder %s19, 1
      %p86 = scmp.ne.s32.totalorder %s81, %s83
      %p87 = scmp.eq.s32.totalorder %s19, 0
      %p88 = por %p86, %p87
      %p89 = scmp.ne.s32.totalorder %s81, %s83
      %p90 = scmp.eq.s32.totalorder %s24, 1
      %p91 = por %p89, %p90
      %p92 = scmp.ne.s32.totalorder %s83, %s84
      %p93 = scmp.eq.s32.totalorder %s24, 0
      %p94 = por %p92, %p93
      %p95 = scmp.ne.s32.totalorder %s83, %s84
      %p96 = scmp.eq.s32.totalorder %s25, 1
      %p97 = por %p95, %p96
      %p99 = scmp.ne.s32.totalorder %s84, %s98
      %p100 = scmp.eq.s32.totalorder %s25, 0
      %p101 = por %p99, %p100
      %s102 = ssub.s32 %s26, %s38
      %s103 = ssub.s32 %s27, %s34
      %s104 = sor.u32 %s102, %s103
      %p105 = scmp.eq.s32.totalorder %s104, 0
      %s107 = sadd.s32 %s106, 1
      %s108 = scalar_select %p105, %s106, %s107
      %p111 = pneg %p105
      %p112 = scmp.eq.s32.totalorder %s19, 1
      %p113 = por %p111, %p112
      %p114 = scmp.ne.s32.totalorder %s106, %s109
      %p115 = scmp.eq.s32.totalorder %s19, 0
      %p116 = por %p114, %p115
      %p117 = scmp.ne.s32.totalorder %s106, %s109
      %p118 = scmp.eq.s32.totalorder %s24, 1
      %p119 = por %p117, %p118
      %p120 = scmp.ne.s32.totalorder %s109, %s110
      %p121 = scmp.eq.s32.totalorder %s24, 0
      %p122 = por %p120, %p121
      %p123 = scmp.ne.s32.totalorder %s109, %s110
      %p124 = scmp.eq.s32.totalorder %s25, 1
      %p125 = por %p123, %p124
      %p127 = scmp.ne.s32.totalorder %s110, %s126
      %p128 = scmp.eq.s32.totalorder %s25, 0
      %p129 = por %p127, %p128
      %s130 = ssub.s32 %s26, %s38
      %s131 = ssub.s32 %s27, %s34
      %s132 = sor.u32 %s130, %s131
      %p133 = scmp.eq.s32.totalorder %s132, 0
      %s135 = sadd.s32 %s134, 1
      %s136 = scalar_select %p133, %s134, %s135
      %p139 = pneg %p133
      %p140 = scmp.eq.s32.totalorder %s19, 1
      %p141 = por %p139, %p140
      %p142 = scmp.ne.s32.totalorder %s134, %s137
      %p143 = scmp.eq.s32.totalorder %s19, 0
      %p144 = por %p142, %p143
      %p145 = scmp.ne.s32.totalorder %s134, %s137
      %p146 = scmp.eq.s32.totalorder %s24, 1
      %p147 = por %p145, %p146
      %p148 = scmp.ne.s32.totalorder %s137, %s138
      %p149 = scmp.eq.s32.totalorder %s24, 0
      %p150 = por %p148, %p149
      %p151 = scmp.ne.s32.totalorder %s137, %s138
      %p152 = scmp.eq.s32.totalorder %s25, 1
      %p153 = por %p151, %p152
      %p155 = scmp.ne.s32.totalorder %s138, %s154
      %p156 = scmp.eq.s32.totalorder %s25, 0
      %p157 = por %p155, %p156
      %p158 = scmp.le.s32.totalorder 1, %s19
      %p159 = scmp.lt.s32.totalorder %s19, 3
      %p160 = pnand %p158, %p159
      %p161 = pneg %p160
      // Predicated region
      $region9: #{tpu_custom_call.1} parent=5 // pred_check
        _
      $region10: #{tpu_custom_call.1} parent=5 // pred_check_branch
        %163 = sbr.rel (%p160) target = $region12
      $region11: #{tpu_custom_call.1} parent=5 // pred_region
        %s164 = ssub.s32 %s19, 1
        // Predicated region
        $region13: #{tpu_custom_call.1} parent=11 // pred_check
          %p165 = pneg %p52
        $region14: #{tpu_custom_call.1} parent=11 // pred_check_branch
          %167 = sbr.rel (%p165) target = $region16
        $region15: #{tpu_custom_call.1} parent=11 // pred_region
          %s169 = ssub.s32 16, 16
          %170 = vsyncadd [#allocation5], %s169
          %173 = dma.hbm_to_smem %s0, 16, [#allocation2], [#allocation5]
        $region16: #{tpu_custom_call.1} parent=11 // pred_fallthru
          _
        // Predicated region
        $region17: #{tpu_custom_call.1} parent=11 // pred_check
          %p174 = pneg %p73
        $region18: #{tpu_custom_call.1} parent=11 // pred_check_branch
          %176 = sbr.rel (%p174) target = $region20
        $region19: #{tpu_custom_call.1} parent=11 // pred_region
          %s178 = ssub.s32 16, 16
          %179 = vsyncadd [#allocation6], %s178
          %s181 = sshll.u32 %s1, 4
          %s182 = int_to_ptr.vmem [resolvable:$true] %s181
          %184 = dma.vmem_to_smem %s182, 16, [#allocation7], [#allocation6]
        $region20: #{tpu_custom_call.1} parent=11 // pred_fallthru
          _
        // Predicated region
        $region21: #{tpu_custom_call.1} parent=11 // pred_check
          %p185 = pneg %p94
        $region22: #{tpu_custom_call.1} parent=11 // pred_check_branch
          %187 = sbr.rel (%p185) target = $region24
        $region23: #{tpu_custom_call.1} parent=11 // pred_region
          %s189 = ssub.s32 16, 16
          %190 = vsyncadd [#allocation9], %s189
          %s192 = sshll.u32 %s2, 4
          %s193 = int_to_ptr.vmem [resolvable:$true] %s192
          %195 = dma.vmem_to_smem %s193, 16, [#allocation8], [#allocation9]
        $region24: #{tpu_custom_call.1} parent=11 // pred_fallthru
          _
      $region12: #{tpu_custom_call.1} parent=5 // pred_fallthru
        _
      %p196 = scmp.lt.s32.totalorder %s19, 2
      // Predicated region
      $region25: #{tpu_custom_call.1} parent=5 // pred_check
        %p197 = pneg %p196
      $region26: #{tpu_custom_call.1} parent=5 // pred_check_branch
        %199 = sbr.rel (%p197) target = $region28
      $region27: #{tpu_custom_call.1} parent=5 // pred_region
        // Predicated region
        $region29: #{tpu_custom_call.1} parent=27 // pred_check
          %p200 = pneg %p116
        $region30: #{tpu_custom_call.1} parent=27 // pred_check_branch
          %202 = sbr.rel (%p200) target = $region32
        $region31: #{tpu_custom_call.1} parent=27 // pred_region
          %s203 = sand.u32 %s106, 1
          %s204 = scalar_lea.sflag [#allocation3], %s203
          %s205 = sand.u32 %s106, 1
          %s206 = smul.addr %s205, 36
          %s207 = scalar_lea.vmem [#allocation10], %s206
          %s209 = ssub.s32 576, 576
          %210 = vsyncadd %s204, %s209
          %s211 = smul.addr %s27, 9
          %s212 = smul.addr %s26, 36
          %s213 = sadd.s32 %s211, %s212
          %s214 = smul.addr %s213, 16
          %s215 = scalar_lea.hbm %s3, %s214
          %s216 = sshll.u32 %s207, 4
          %s217 = int_to_ptr.vmem [resolvable:$true] %s216
          %222 = dma.hbm_to_vmem [thread:$0]  %s215, 576, %s217, %s204, 144, 144, 9
        $region32: #{tpu_custom_call.1} parent=27 // pred_fallthru
          _
      $region28: #{tpu_custom_call.1} parent=5 // pred_fallthru
        _
      %p223 = scmp.le.s32.totalorder 1, %s19
      %p224 = scmp.lt.s32.totalorder %s19, 3
      %p225 = pnand %p223, %p224
      %p226 = pneg %p225
      // Predicated region
      $region33: #{tpu_custom_call.1} parent=5 // pred_check
        _
      $region34: #{tpu_custom_call.1} parent=5 // pred_check_branch
        %228 = sbr.rel (%p225) target = $region36
      $region35: #{tpu_custom_call.1} parent=5 // pred_region
        %s229 = ssub.s32 %s19, 1
        // Predicated region
        $region37: #{tpu_custom_call.1} parent=35 // pred_check
          %p230 = pneg %p52
        $region38: #{tpu_custom_call.1} parent=35 // pred_check_branch
          %232 = sbr.rel (%p230) target = $region40
        $region39: #{tpu_custom_call.1} parent=35 // pred_region
          %233 = dma.done [#allocation5], 16
        $region40: #{tpu_custom_call.1} parent=35 // pred_fallthru
          _
        // Predicated region
        $region41: #{tpu_custom_call.1} parent=35 // pred_check
          %p234 = pneg %p73
        $region42: #{tpu_custom_call.1} parent=35 // pred_check_branch
          %236 = sbr.rel (%p234) target = $region44
        $region43: #{tpu_custom_call.1} parent=35 // pred_region
          %237 = dma.done [#allocation6], 16
        $region44: #{tpu_custom_call.1} parent=35 // pred_fallthru
          _
        // Predicated region
        $region45: #{tpu_custom_call.1} parent=35 // pred_check
          %p238 = pneg %p94
        $region46: #{tpu_custom_call.1} parent=35 // pred_check_branch
          %240 = sbr.rel (%p238) target = $region48
        $region47: #{tpu_custom_call.1} parent=35 // pred_region
          %241 = dma.done [#allocation9], 16
        $region48: #{tpu_custom_call.1} parent=35 // pred_fallthru
          _
        %s242 = sand.u32 %s109, 1
        %s243 = scalar_lea.sflag [#allocation3], %s242
        %s244 = sand.u32 %s109, 1
        %s245 = smul.addr %s244, 36
        %s246 = scalar_lea.vmem [#allocation10], %s245
        // Predicated region
        $region49: #{tpu_custom_call.1} parent=35 // pred_check
          %p247 = pneg %p122
        $region50: #{tpu_custom_call.1} parent=35 // pred_check_branch
          %249 = sbr.rel (%p247) target = $region52
        $region51: #{tpu_custom_call.1} parent=35 // pred_region
          %250 = dma.done %s243, 576
        $region52: #{tpu_custom_call.1} parent=35 // pred_fallthru
          _
        %251 = sfence
        %p252 = pneg %p52
        %p253 = pneg %p49
        %p254 = pneg %p73
        %p255 = pneg %p70
        %p256 = pneg %p94
        %p257 = pneg %p91
        %s258 = sand.u32 %s109, 1
        %s259 = scalar_lea.sflag [#allocation3], %s258
        %s260 = sand.u32 %s109, 1
        %s261 = smul.addr %s260, 36
        %s262 = scalar_lea.vmem [#allocation10], %s261
        %p263 = pneg %p122
        %p264 = pneg %p119
        %p265 = pneg %p150
        %p266 = pneg %p147
        %s267 = sand.u32 %s137, 1
        %s268 = scalar_lea.sflag [#allocation4], %s267
        %s269 = sand.u32 %s137, 1
        %s270 = smul.addr %s269, 72
        %s271 = scalar_lea.vmem [#allocation11], %s270
        %v272 = vld [vmem:[%s246] sm:$0xff]
        %v273 = vld [vmem:[%s246 + $0x8] sm:$0x1]
        %v276 = vlaneseq
        %v277 = vshrl.u32 %v276, 7
        %v278 = vsub.s32 0, %v277
        %v279 = vrot.slane %v272, %v278
        %v280 = vlaneseq
        %v281 = vshrl.u32 %v280, 7
        %v282 = vsub.s32 1, %v281
        %v283 = vrot.slane %v272, %v282
        %v284 = vlaneseq
        %v285 = vshrl.u32 %v284, 7
        %v286 = vsub.s32 2, %v285
        %v287 = vrot.slane %v272, %v286
        %v288 = vlaneseq
        %v289 = vshrl.u32 %v288, 7
        %v290 = vsub.s32 3, %v289
        %v291 = vrot.slane %v272, %v290
        %v292 = vlaneseq
        %v293 = vshrl.u32 %v292, 7
        %v294 = vsub.s32 4, %v293
        %v295 = vrot.slane %v272, %v294
        %v296 = vlaneseq
        %v297 = vshrl.u32 %v296, 7
        %v298 = vsub.s32 5, %v297
        %v299 = vrot.slane %v272, %v298
        %v300 = vlaneseq
        %v301 = vshrl.u32 %v300, 7
        %v302 = vsub.s32 6, %v301
        %v303 = vrot.slane %v272, %v302
        %v304 = vlaneseq
        %v305 = vshrl.u32 %v304, 7
        %v306 = vsub.s32 7, %v305
        %v307 = vrot.slane %v272, %v306
        %v308 = vlaneseq
        %v309 = vshrl.u32 %v308, 7
        %v310 = vsub.s32 0, %v309
        %v311 = vrot.slane %v273, %v310
        %321 = vrot.lane.b32.xlu0 %v279, 127
        %v322 = vpop.permute.xlu0 %321
        %323 = vrot.lane.b32.xlu0 %v283, 127
        %v324 = vpop.permute.xlu0 %323
        %325 = vrot.lane.b32.xlu0 %v287, 127
        %v326 = vpop.permute.xlu0 %325
        %327 = vrot.lane.b32.xlu0 %v291, 127
        %v328 = vpop.permute.xlu0 %327
        %329 = vrot.lane.b32.xlu0 %v295, 127
        %v330 = vpop.permute.xlu0 %329
        %331 = vrot.lane.b32.xlu0 %v299, 127
        %v332 = vpop.permute.xlu0 %331
        %333 = vrot.lane.b32.xlu0 %v303, 127
        %v334 = vpop.permute.xlu0 %333
        %335 = vrot.lane.b32.xlu0 %v307, 127
        %v336 = vpop.permute.xlu0 %335
        %337 = vrot.lane.b32.xlu0 %v311, 127
        %v338 = vpop.permute.xlu0 %337
        %v339 = vlaneseq
        %v340 = vand.u32 %v339, 127
        %vm341 = vcmp.lt.s32.totalorder %v340, 127
        %v342 = vsel %vm341, %v336, %v338
        %v343 = vsel %vm341, %v334, %v336
        %v344 = vsel %vm341, %v332, %v334
        %v345 = vsel %vm341, %v330, %v332
        %v346 = vsel %vm341, %v328, %v330
        %v347 = vsel %vm341, %v326, %v328
        %v348 = vsel %vm341, %v324, %v326
        %v349 = vsel %vm341, %v322, %v324
        %v350 = vsel %vm341, %v338, %v322
        %351 = vrot.lane.b32.xlu0 %v279, 126
        %v352 = vpop.permute.xlu0 %351
        %353 = vrot.lane.b32.xlu0 %v283, 126
        %v354 = vpop.permute.xlu0 %353
        %355 = vrot.lane.b32.xlu0 %v287, 126
        %v356 = vpop.permute.xlu0 %355
        %357 = vrot.lane.b32.xlu0 %v291, 126
        %v358 = vpop.permute.xlu0 %357
        %359 = vrot.lane.b32.xlu0 %v295, 126
        %v360 = vpop.permute.xlu0 %359
        %361 = vrot.lane.b32.xlu0 %v299, 126
        %v362 = vpop.permute.xlu0 %361
        %363 = vrot.lane.b32.xlu0 %v303, 126
        %v364 = vpop.permute.xlu0 %363
        %365 = vrot.lane.b32.xlu0 %v307, 126
        %v366 = vpop.permute.xlu0 %365
        %367 = vrot.lane.b32.xlu0 %v311, 126
        %v368 = vpop.permute.xlu0 %367
        %vm369 = vcmp.lt.s32.totalorder %v340, 126
        %v370 = vsel %vm369, %v366, %v368
        %v371 = vsel %vm369, %v364, %v366
        %v372 = vsel %vm369, %v362, %v364
        %v373 = vsel %vm369, %v360, %v362
        %v374 = vsel %vm369, %v358, %v360
        %v375 = vsel %vm369, %v356, %v358
        %v376 = vsel %vm369, %v354, %v356
        %v377 = vsel %vm369, %v352, %v354
        %v378 = vsel %vm369, %v368, %v352
        %s379 = scalar_lea.vmem %s246, 9 [#allocation10]
        %v380 = vld [vmem:[%s379] sm:$0xff]
        %v381 = vld [vmem:[%s379 + $0x8] sm:$0x1]
        %v384 = vlaneseq
        %v385 = vshrl.u32 %v384, 7
        %v386 = vsub.s32 0, %v385
        %v387 = vrot.slane %v380, %v386
        %v388 = vlaneseq
        %v389 = vshrl.u32 %v388, 7
        %v390 = vsub.s32 1, %v389
        %v391 = vrot.slane %v380, %v390
        %v392 = vlaneseq
        %v393 = vshrl.u32 %v392, 7
        %v394 = vsub.s32 2, %v393
        %v395 = vrot.slane %v380, %v394
        %v396 = vlaneseq
        %v397 = vshrl.u32 %v396, 7
        %v398 = vsub.s32 3, %v397
        %v399 = vrot.slane %v380, %v398
        %v400 = vlaneseq
        %v401 = vshrl.u32 %v400, 7
        %v402 = vsub.s32 4, %v401
        %v403 = vrot.slane %v380, %v402
        %v404 = vlaneseq
        %v405 = vshrl.u32 %v404, 7
        %v406 = vsub.s32 5, %v405
        %v407 = vrot.slane %v380, %v406
        %v408 = vlaneseq
        %v409 = vshrl.u32 %v408, 7
        %v410 = vsub.s32 6, %v409
        %v411 = vrot.slane %v380, %v410
        %v412 = vlaneseq
        %v413 = vshrl.u32 %v412, 7
        %v414 = vsub.s32 7, %v413
        %v415 = vrot.slane %v380, %v414
        %v416 = vlaneseq
        %v417 = vshrl.u32 %v416, 7
        %v418 = vsub.s32 0, %v417
        %v419 = vrot.slane %v381, %v418
        %429 = vrot.lane.b32.xlu0 %v387, 127
        %v430 = vpop.permute.xlu0 %429
        %431 = vrot.lane.b32.xlu0 %v391, 127
        %v432 = vpop.permute.xlu0 %431
        %433 = vrot.lane.b32.xlu0 %v395, 127
        %v434 = vpop.permute.xlu0 %433
        %435 = vrot.lane.b32.xlu0 %v399, 127
        %v436 = vpop.permute.xlu0 %435
        %437 = vrot.lane.b32.xlu0 %v403, 127
        %v438 = vpop.permute.xlu0 %437
        %439 = vrot.lane.b32.xlu0 %v407, 127
        %v440 = vpop.permute.xlu0 %439
        %441 = vrot.lane.b32.xlu0 %v411, 127
        %v442 = vpop.permute.xlu0 %441
        %443 = vrot.lane.b32.xlu0 %v415, 127
        %v444 = vpop.permute.xlu0 %443
        %445 = vrot.lane.b32.xlu0 %v419, 127
        %v446 = vpop.permute.xlu0 %445
        %v447 = vsel %vm341, %v444, %v446
        %v448 = vsel %vm341, %v442, %v444
        %v449 = vsel %vm341, %v440, %v442
        %v450 = vsel %vm341, %v438, %v440
        %v451 = vsel %vm341, %v436, %v438
        %v452 = vsel %vm341, %v434, %v436
        %v453 = vsel %vm341, %v432, %v434
        %v454 = vsel %vm341, %v430, %v432
        %v455 = vsel %vm341, %v446, %v430
        %456 = vrot.lane.b32.xlu0 %v387, 126
        %v457 = vpop.permute.xlu0 %456
        %458 = vrot.lane.b32.xlu0 %v391, 126
        %v459 = vpop.permute.xlu0 %458
        %460 = vrot.lane.b32.xlu0 %v395, 126
        %v461 = vpop.permute.xlu0 %460
        %462 = vrot.lane.b32.xlu0 %v399, 126
        %v463 = vpop.permute.xlu0 %462
        %464 = vrot.lane.b32.xlu0 %v403, 126
        %v465 = vpop.permute.xlu0 %464
        %466 = vrot.lane.b32.xlu0 %v407, 126
        %v467 = vpop.permute.xlu0 %466
        %468 = vrot.lane.b32.xlu0 %v411, 126
        %v469 = vpop.permute.xlu0 %468
        %470 = vrot.lane.b32.xlu0 %v415, 126
        %v471 = vpop.permute.xlu0 %470
        %472 = vrot.lane.b32.xlu0 %v419, 126
        %v473 = vpop.permute.xlu0 %472
        %v474 = vsel %vm369, %v471, %v473
        %v475 = vsel %vm369, %v469, %v471
        %v476 = vsel %vm369, %v467, %v469
        %v477 = vsel %vm369, %v465, %v467
        %v478 = vsel %vm369, %v463, %v465
        %v479 = vsel %vm369, %v461, %v463
        %v480 = vsel %vm369, %v459, %v461
        %v481 = vsel %vm369, %v457, %v459
        %v482 = vsel %vm369, %v473, %v457
        %s483 = scalar_lea.vmem %s246, 18 [#allocation10]
        %v484 = vld [vmem:[%s483] sm:$0xff]
        %v485 = vld [vmem:[%s483 + $0x8] sm:$0x1]
        %v488 = vlaneseq
        %v489 = vshrl.u32 %v488, 7
        %v490 = vsub.s32 0, %v489
        %v491 = vrot.slane %v484, %v490
        %v492 = vlaneseq
        %v493 = vshrl.u32 %v492, 7
        %v494 = vsub.s32 1, %v493
        %v495 = vrot.slane %v484, %v494
        %v496 = vlaneseq
        %v497 = vshrl.u32 %v496, 7
        %v498 = vsub.s32 2, %v497
        %v499 = vrot.slane %v484, %v498
        %v500 = vlaneseq
        %v501 = vshrl.u32 %v500, 7
        %v502 = vsub.s32 3, %v501
        %v503 = vrot.slane %v484, %v502
        %v504 = vlaneseq
        %v505 = vshrl.u32 %v504, 7
        %v506 = vsub.s32 4, %v505
        %v507 = vrot.slane %v484, %v506
        %v508 = vlaneseq
        %v509 = vshrl.u32 %v508, 7
        %v510 = vsub.s32 5, %v509
        %v511 = vrot.slane %v484, %v510
        %v512 = vlaneseq
        %v513 = vshrl.u32 %v512, 7
        %v514 = vsub.s32 6, %v513
        %v515 = vrot.slane %v484, %v514
        %v516 = vlaneseq
        %v517 = vshrl.u32 %v516, 7
        %v518 = vsub.s32 7, %v517
        %v519 = vrot.slane %v484, %v518
        %v520 = vlaneseq
        %v521 = vshrl.u32 %v520, 7
        %v522 = vsub.s32 0, %v521
        %v523 = vrot.slane %v485, %v522
        %533 = vrot.lane.b32.xlu0 %v491, 127
        %v534 = vpop.permute.xlu0 %533
        %535 = vrot.lane.b32.xlu0 %v495, 127
        %v536 = vpop.permute.xlu0 %535
        %537 = vrot.lane.b32.xlu0 %v499, 127
        %v538 = vpop.permute.xlu0 %537
        %539 = vrot.lane.b32.xlu0 %v503, 127
        %v540 = vpop.permute.xlu0 %539
        %541 = vrot.lane.b32.xlu0 %v507, 127
        %v542 = vpop.permute.xlu0 %541
        %543 = vrot.lane.b32.xlu0 %v511, 127
        %v544 = vpop.permute.xlu0 %543
        %545 = vrot.lane.b32.xlu0 %v515, 127
        %v546 = vpop.permute.xlu0 %545
        %547 = vrot.lane.b32.xlu0 %v519, 127
        %v548 = vpop.permute.xlu0 %547
        %549 = vrot.lane.b32.xlu0 %v523, 127
        %v550 = vpop.permute.xlu0 %549
        %v551 = vsel %vm341, %v548, %v550
        %v552 = vsel %vm341, %v546, %v548
        %v553 = vsel %vm341, %v544, %v546
        %v554 = vsel %vm341, %v542, %v544
        %v555 = vsel %vm341, %v540, %v542
        %v556 = vsel %vm341, %v538, %v540
        %v557 = vsel %vm341, %v536, %v538
        %v558 = vsel %vm341, %v534, %v536
        %v559 = vsel %vm341, %v550, %v534
        %560 = vrot.lane.b32.xlu0 %v491, 126
        %v561 = vpop.permute.xlu0 %560
        %562 = vrot.lane.b32.xlu0 %v495, 126
        %v563 = vpop.permute.xlu0 %562
        %564 = vrot.lane.b32.xlu0 %v499, 126
        %v565 = vpop.permute.xlu0 %564
        %566 = vrot.lane.b32.xlu0 %v503, 126
        %v567 = vpop.permute.xlu0 %566
        %568 = vrot.lane.b32.xlu0 %v507, 126
        %v569 = vpop.permute.xlu0 %568
        %570 = vrot.lane.b32.xlu0 %v511, 126
        %v571 = vpop.permute.xlu0 %570
        %572 = vrot.lane.b32.xlu0 %v515, 126
        %v573 = vpop.permute.xlu0 %572
        %574 = vrot.lane.b32.xlu0 %v519, 126
        %v575 = vpop.permute.xlu0 %574
        %576 = vrot.lane.b32.xlu0 %v523, 126
        %v577 = vpop.permute.xlu0 %576
        %v578 = vsel %vm369, %v575, %v577
        %v579 = vsel %vm369, %v573, %v575
        %v580 = vsel %vm369, %v571, %v573
        %v581 = vsel %vm369, %v569, %v571
        %v582 = vsel %vm369, %v567, %v569
        %v583 = vsel %vm369, %v565, %v567
        %v584 = vsel %vm369, %v563, %v565
        %v585 = vsel %vm369, %v561, %v563
        %v586 = vsel %vm369, %v577, %v561
        %s587 = scalar_lea.vmem %s246, 27 [#allocation10]
        %v588 = vld [vmem:[%s587] sm:$0xff]
        %v589 = vld [vmem:[%s587 + $0x8] sm:$0x1]
        %v592 = vlaneseq
        %v593 = vshrl.u32 %v592, 7
        %v594 = vsub.s32 0, %v593
        %v595 = vrot.slane %v588, %v594
        %v596 = vlaneseq
        %v597 = vshrl.u32 %v596, 7
        %v598 = vsub.s32 1, %v597
        %v599 = vrot.slane %v588, %v598
        %v600 = vlaneseq
        %v601 = vshrl.u32 %v600, 7
        %v602 = vsub.s32 2, %v601
        %v603 = vrot.slane %v588, %v602
        %v604 = vlaneseq
        %v605 = vshrl.u32 %v604, 7
        %v606 = vsub.s32 3, %v605
        %v607 = vrot.slane %v588, %v606
        %v608 = vlaneseq
        %v609 = vshrl.u32 %v608, 7
        %v610 = vsub.s32 4, %v609
        %v611 = vrot.slane %v588, %v610
        %v612 = vlaneseq
        %v613 = vshrl.u32 %v612, 7
        %v614 = vsub.s32 5, %v613
        %v615 = vrot.slane %v588, %v614
        %v616 = vlaneseq
        %v617 = vshrl.u32 %v616, 7
        %v618 = vsub.s32 6, %v617
        %v619 = vrot.slane %v588, %v618
        %v620 = vlaneseq
        %v621 = vshrl.u32 %v620, 7
        %v622 = vsub.s32 7, %v621
        %v623 = vrot.slane %v588, %v622
        %v624 = vlaneseq
        %v625 = vshrl.u32 %v624, 7
        %v626 = vsub.s32 0, %v625
        %v627 = vrot.slane %v589, %v626
        %637 = vrot.lane.b32.xlu0 %v595, 127
        %v638 = vpop.permute.xlu0 %637
        %639 = vrot.lane.b32.xlu0 %v599, 127
        %v640 = vpop.permute.xlu0 %639
        %641 = vrot.lane.b32.xlu0 %v603, 127
        %v642 = vpop.permute.xlu0 %641
        %643 = vrot.lane.b32.xlu0 %v607, 127
        %v644 = vpop.permute.xlu0 %643
        %645 = vrot.lane.b32.xlu0 %v611, 127
        %v646 = vpop.permute.xlu0 %645
        %647 = vrot.lane.b32.xlu0 %v615, 127
        %v648 = vpop.permute.xlu0 %647
        %649 = vrot.lane.b32.xlu0 %v619, 127
        %v650 = vpop.permute.xlu0 %649
        %651 = vrot.lane.b32.xlu0 %v623, 127
        %v652 = vpop.permute.xlu0 %651
        %653 = vrot.lane.b32.xlu0 %v627, 127
        %v654 = vpop.permute.xlu0 %653
        %v655 = vsel %vm341, %v652, %v654
        %v656 = vsel %vm341, %v650, %v652
        %v657 = vsel %vm341, %v648, %v650
        %v658 = vsel %vm341, %v646, %v648
        %v659 = vsel %vm341, %v644, %v646
        %v660 = vsel %vm341, %v642, %v644
        %v661 = vsel %vm341, %v640, %v642
        %v662 = vsel %vm341, %v638, %v640
        %v663 = vsel %vm341, %v654, %v638
        %664 = vrot.lane.b32.xlu0 %v595, 126
        %v665 = vpop.permute.xlu0 %664
        %666 = vrot.lane.b32.xlu0 %v599, 126
        %v667 = vpop.permute.xlu0 %666
        %668 = vrot.lane.b32.xlu0 %v603, 126
        %v669 = vpop.permute.xlu0 %668
        %670 = vrot.lane.b32.xlu0 %v607, 126
        %v671 = vpop.permute.xlu0 %670
        %672 = vrot.lane.b32.xlu0 %v611, 126
        %v673 = vpop.permute.xlu0 %672
        %674 = vrot.lane.b32.xlu0 %v615, 126
        %v675 = vpop.permute.xlu0 %674
        %676 = vrot.lane.b32.xlu0 %v619, 126
        %v677 = vpop.permute.xlu0 %676
        %678 = vrot.lane.b32.xlu0 %v623, 126
        %v679 = vpop.permute.xlu0 %678
        %680 = vrot.lane.b32.xlu0 %v627, 126
        %v681 = vpop.permute.xlu0 %680
        %v682 = vsel %vm369, %v679, %v681
        %v683 = vsel %vm369, %v677, %v679
        %v684 = vsel %vm369, %v675, %v677
        %v685 = vsel %vm369, %v673, %v675
        %v686 = vsel %vm369, %v671, %v673
        %v687 = vsel %vm369, %v669, %v671
        %v688 = vsel %vm369, %v667, %v669
        %v689 = vsel %vm369, %v665, %v667
        %v690 = vsel %vm369, %v681, %v665
        %s691 = sld [smem:[#allocation2]]
        %v692 = vstv %s691
        %v693 = vmul.f32 %v692, %v272
        %v694 = vmul.f32 %v692, %v273
        %s695 = sld [smem:[#allocation2 + $0x1]]
        %v696 = vstv %s695
        %v697 = vmul.f32 %v696, %v349
        %v698 = vmul.f32 %v696, %v348
        %v699 = vmul.f32 %v696, %v347
        %v700 = vmul.f32 %v696, %v346
        %v701 = vmul.f32 %v696, %v345
        %v702 = vmul.f32 %v696, %v344
        %v703 = vmul.f32 %v696, %v343
        %v704 = vmul.f32 %v696, %v342
        %v705 = vmul.f32 %v696, %v350
        %v715 = vcombine.low %v697, %v698
        %v716 = vcombine.low %v699, %v700
        %v717 = vcombine.low %v701, %v702
        %v718 = vcombine.low %v703, %v704
        %v720 = vunpack.c.l.s4 1966171168
        %v721 = vunpack.c.0.s8 %v720
        %v722 = vlaneseq
        %v723 = vshrl.u32 %v722, 7
        %v724 = vsub.s32 %v721, %v723
        %v725 = vrot.slane %v715, %v724
        %v727 = vunpack.c.l.s4 1966171168
        %v728 = vunpack.c.0.s8 %v727
        %v729 = vlaneseq
        %v730 = vshrl.u32 %v729, 7
        %v731 = vsub.s32 %v728, %v730
        %v732 = vrot.slane %v716, %v731
        %v734 = vunpack.c.l.s4 1966171168
        %v735 = vunpack.c.0.s8 %v734
        %v736 = vlaneseq
        %v737 = vshrl.u32 %v736, 7
        %v738 = vsub.s32 %v735, %v737
        %v739 = vrot.slane %v717, %v738
        %v741 = vunpack.c.l.s4 1966171168
        %v742 = vunpack.c.0.s8 %v741
        %v743 = vlaneseq
        %v744 = vshrl.u32 %v743, 7
        %v745 = vsub.s32 %v742, %v744
        %v746 = vrot.slane %v718, %v745
        %v747 = vcombine.low %v725, %v732
        %v748 = vcombine.low %v739, %v746
        %v750 = vunpack.c.l.s4 1966171168
        %v751 = vunpack.c.0.s8 %v750
        %v752 = vlaneseq
        %v753 = vshrl.u32 %v752, 7
        %v754 = vsub.s32 %v751, %v753
        %v755 = vrot.slane %v747, %v754
        %v757 = vunpack.c.l.s4 1966171168
        %v758 = vunpack.c.0.s8 %v757
        %v759 = vlaneseq
        %v760 = vshrl.u32 %v759, 7
        %v761 = vsub.s32 %v758, %v760
        %v762 = vrot.slane %v748, %v761
        %v763 = vcombine.low %v755, %v762
        %v765 = vunpack.c.l.s4 1966171168
        %v766 = vunpack.c.0.s8 %v765
        %v767 = vlaneseq
        %v768 = vshrl.u32 %v767, 7
        %v769 = vsub.s32 %v766, %v768
        %v770 = vrot.slane %v705, %v769
        %v772 = vunpack.c.l.s4 1966171168
        %v773 = vunpack.c.0.s8 %v772
        %v774 = vlaneseq
        %v775 = vshrl.u32 %v774, 7
        %v776 = vsub.s32 %v773, %v775
        %v777 = vrot.slane %v770, %v776
        %v780 = vadd.f32 %v693, %v763
        %v781 = vadd.f32 %v694, %v777
        %s782 = sld [smem:[#allocation2 + $0x2]]
        %v783 = vstv %s782
        %v784 = vmul.f32 %v783, %v377
        %v785 = vmul.f32 %v783, %v376
        %v786 = vmul.f32 %v783, %v375
        %v787 = vmul.f32 %v783, %v374
        %v788 = vmul.f32 %v783, %v373
        %v789 = vmul.f32 %v783, %v372
        %v790 = vmul.f32 %v783, %v371
        %v791 = vmul.f32 %v783, %v370
        %v792 = vmul.f32 %v783, %v378
        %v802 = vcombine.low %v784, %v785
        %v803 = vcombine.low %v786, %v787
        %v804 = vcombine.low %v788, %v789
        %v805 = vcombine.low %v790, %v791
        %v807 = vunpack.c.l.s4 1966171168
        %v808 = vunpack.c.0.s8 %v807
        %v809 = vlaneseq
        %v810 = vshrl.u32 %v809, 7
        %v811 = vsub.s32 %v808, %v810
        %v812 = vrot.slane %v802, %v811
        %v814 = vunpack.c.l.s4 1966171168
        %v815 = vunpack.c.0.s8 %v814
        %v816 = vlaneseq
        %v817 = vshrl.u32 %v816, 7
        %v818 = vsub.s32 %v815, %v817
        %v819 = vrot.slane %v803, %v818
        %v821 = vunpack.c.l.s4 1966171168
        %v822 = vunpack.c.0.s8 %v821
        %v823 = vlaneseq
        %v824 = vshrl.u32 %v823, 7
        %v825 = vsub.s32 %v822, %v824
        %v826 = vrot.slane %v804, %v825
        %v828 = vunpack.c.l.s4 1966171168
        %v829 = vunpack.c.0.s8 %v828
        %v830 = vlaneseq
        %v831 = vshrl.u32 %v830, 7
        %v832 = vsub.s32 %v829, %v831
        %v833 = vrot.slane %v805, %v832
        %v834 = vcombine.low %v812, %v819
        %v835 = vcombine.low %v826, %v833
        %v837 = vunpack.c.l.s4 1966171168
        %v838 = vunpack.c.0.s8 %v837
        %v839 = vlaneseq
        %v840 = vshrl.u32 %v839, 7
        %v841 = vsub.s32 %v838, %v840
        %v842 = vrot.slane %v834, %v841
        %v844 = vunpack.c.l.s4 1966171168
        %v845 = vunpack.c.0.s8 %v844
        %v846 = vlaneseq
        %v847 = vshrl.u32 %v846, 7
        %v848 = vsub.s32 %v845, %v847
        %v849 = vrot.slane %v835, %v848
        %v850 = vcombine.low %v842, %v849
        %v852 = vunpack.c.l.s4 1966171168
        %v853 = vunpack.c.0.s8 %v852
        %v854 = vlaneseq
        %v855 = vshrl.u32 %v854, 7
        %v856 = vsub.s32 %v853, %v855
        %v857 = vrot.slane %v792, %v856
        %v859 = vunpack.c.l.s4 1966171168
        %v860 = vunpack.c.0.s8 %v859
        %v861 = vlaneseq
        %v862 = vshrl.u32 %v861, 7
        %v863 = vsub.s32 %v860, %v862
        %v864 = vrot.slane %v857, %v863
        %v867 = vadd.f32 %v780, %v850
        %v868 = vadd.f32 %v781, %v864
        %s869 = sld [smem:[#allocation2 + $0x3]]
        %v870 = vstv %s869
        %v871 = vmul.f32 %v870, %v380
        %v872 = vmul.f32 %v870, %v381
        %v873 = vadd.f32 %v867, %v871
        %v874 = vadd.f32 %v868, %v872
        %s875 = sld [smem:[#allocation2 + $0x4]]
        %v876 = vstv %s875
        %v877 = vmul.f32 %v876, %v454
        %v878 = vmul.f32 %v876, %v453
        %v879 = vmul.f32 %v876, %v452
        %v880 = vmul.f32 %v876, %v451
        %v881 = vmul.f32 %v876, %v450
        %v882 = vmul.f32 %v876, %v449
        %v883 = vmul.f32 %v876, %v448
        %v884 = vmul.f32 %v876, %v447
        %v885 = vmul.f32 %v876, %v455
        %v895 = vcombine.low %v877, %v878
        %v896 = vcombine.low %v879, %v880
        %v897 = vcombine.low %v881, %v882
        %v898 = vcombine.low %v883, %v884
        %v900 = vunpack.c.l.s4 1966171168
        %v901 = vunpack.c.0.s8 %v900
        %v902 = vlaneseq
        %v903 = vshrl.u32 %v902, 7
        %v904 = vsub.s32 %v901, %v903
        %v905 = vrot.slane %v895, %v904
        %v907 = vunpack.c.l.s4 1966171168
        %v908 = vunpack.c.0.s8 %v907
        %v909 = vlaneseq
        %v910 = vshrl.u32 %v909, 7
        %v911 = vsub.s32 %v908, %v910
        %v912 = vrot.slane %v896, %v911
        %v914 = vunpack.c.l.s4 1966171168
        %v915 = vunpack.c.0.s8 %v914
        %v916 = vlaneseq
        %v917 = vshrl.u32 %v916, 7
        %v918 = vsub.s32 %v915, %v917
        %v919 = vrot.slane %v897, %v918
        %v921 = vunpack.c.l.s4 1966171168
        %v922 = vunpack.c.0.s8 %v921
        %v923 = vlaneseq
        %v924 = vshrl.u32 %v923, 7
        %v925 = vsub.s32 %v922, %v924
        %v926 = vrot.slane %v898, %v925
        %v927 = vcombine.low %v905, %v912
        %v928 = vcombine.low %v919, %v926
        %v930 = vunpack.c.l.s4 1966171168
        %v931 = vunpack.c.0.s8 %v930
        %v932 = vlaneseq
        %v933 = vshrl.u32 %v932, 7
        %v934 = vsub.s32 %v931, %v933
        %v935 = vrot.slane %v927, %v934
        %v937 = vunpack.c.l.s4 1966171168
        %v938 = vunpack.c.0.s8 %v937
        %v939 = vlaneseq
        %v940 = vshrl.u32 %v939, 7
        %v941 = vsub.s32 %v938, %v940
        %v942 = vrot.slane %v928, %v941
        %v943 = vcombine.low %v935, %v942
        %v945 = vunpack.c.l.s4 1966171168
        %v946 = vunpack.c.0.s8 %v945
        %v947 = vlaneseq
        %v948 = vshrl.u32 %v947, 7
        %v949 = vsub.s32 %v946, %v948
        %v950 = vrot.slane %v885, %v949
        %v952 = vunpack.c.l.s4 1966171168
        %v953 = vunpack.c.0.s8 %v952
        %v954 = vlaneseq
        %v955 = vshrl.u32 %v954, 7
        %v956 = vsub.s32 %v953, %v955
        %v957 = vrot.slane %v950, %v956
        %v960 = vadd.f32 %v873, %v943
        %v961 = vadd.f32 %v874, %v957
        %s962 = sld [smem:[#allocation2 + $0x5]]
        %v963 = vstv %s962
        %v964 = vmul.f32 %v963, %v481
        %v965 = vmul.f32 %v963, %v480
        %v966 = vmul.f32 %v963, %v479
        %v967 = vmul.f32 %v963, %v478
        %v968 = vmul.f32 %v963, %v477
        %v969 = vmul.f32 %v963, %v476
        %v970 = vmul.f32 %v963, %v475
        %v971 = vmul.f32 %v963, %v474
        %v972 = vmul.f32 %v963, %v482
        %v982 = vcombine.low %v964, %v965
        %v983 = vcombine.low %v966, %v967
        %v984 = vcombine.low %v968, %v969
        %v985 = vcombine.low %v970, %v971
        %v987 = vunpack.c.l.s4 1966171168
        %v988 = vunpack.c.0.s8 %v987
        %v989 = vlaneseq
        %v990 = vshrl.u32 %v989, 7
        %v991 = vsub.s32 %v988, %v990
        %v992 = vrot.slane %v982, %v991
        %v994 = vunpack.c.l.s4 1966171168
        %v995 = vunpack.c.0.s8 %v994
        %v996 = vlaneseq
        %v997 = vshrl.u32 %v996, 7
        %v998 = vsub.s32 %v995, %v997
        %v999 = vrot.slane %v983, %v998
        %v1001 = vunpack.c.l.s4 1966171168
        %v1002 = vunpack.c.0.s8 %v1001
        %v1003 = vlaneseq
        %v1004 = vshrl.u32 %v1003, 7
        %v1005 = vsub.s32 %v1002, %v1004
        %v1006 = vrot.slane %v984, %v1005
        %v1008 = vunpack.c.l.s4 1966171168
        %v1009 = vunpack.c.0.s8 %v1008
        %v1010 = vlaneseq
        %v1011 = vshrl.u32 %v1010, 7
        %v1012 = vsub.s32 %v1009, %v1011
        %v1013 = vrot.slane %v985, %v1012
        %v1014 = vcombine.low %v992, %v999
        %v1015 = vcombine.low %v1006, %v1013
        %v1017 = vunpack.c.l.s4 1966171168
        %v1018 = vunpack.c.0.s8 %v1017
        %v1019 = vlaneseq
        %v1020 = vshrl.u32 %v1019, 7
        %v1021 = vsub.s32 %v1018, %v1020
        %v1022 = vrot.slane %v1014, %v1021
        %v1024 = vunpack.c.l.s4 1966171168
        %v1025 = vunpack.c.0.s8 %v1024
        %v1026 = vlaneseq
        %v1027 = vshrl.u32 %v1026, 7
        %v1028 = vsub.s32 %v1025, %v1027
        %v1029 = vrot.slane %v1015, %v1028
        %v1030 = vcombine.low %v1022, %v1029
        %v1032 = vunpack.c.l.s4 1966171168
        %v1033 = vunpack.c.0.s8 %v1032
        %v1034 = vlaneseq
        %v1035 = vshrl.u32 %v1034, 7
        %v1036 = vsub.s32 %v1033, %v1035
        %v1037 = vrot.slane %v972, %v1036
        %v1039 = vunpack.c.l.s4 1966171168
        %v1040 = vunpack.c.0.s8 %v1039
        %v1041 = vlaneseq
        %v1042 = vshrl.u32 %v1041, 7
        %v1043 = vsub.s32 %v1040, %v1042
        %v1044 = vrot.slane %v1037, %v1043
        %v1047 = vadd.f32 %v960, %v1030
        %v1048 = vadd.f32 %v961, %v1044
        %s1049 = sld [smem:[#allocation2 + $0x6]]
        %v1050 = vstv %s1049
        %v1051 = vmul.f32 %v1050, %v484
        %v1052 = vmul.f32 %v1050, %v485
        %v1053 = vadd.f32 %v1047, %v1051
        %v1054 = vadd.f32 %v1048, %v1052
        %s1055 = sld [smem:[#allocation2 + $0x7]]
        %v1056 = vstv %s1055
        %v1057 = vmul.f32 %v1056, %v558
        %v1058 = vmul.f32 %v1056, %v557
        %v1059 = vmul.f32 %v1056, %v556
        %v1060 = vmul.f32 %v1056, %v555
        %v1061 = vmul.f32 %v1056, %v554
        %v1062 = vmul.f32 %v1056, %v553
        %v1063 = vmul.f32 %v1056, %v552
        %v1064 = vmul.f32 %v1056, %v551
        %v1065 = vmul.f32 %v1056, %v559
        %v1075 = vcombine.low %v1057, %v1058
        %v1076 = vcombine.low %v1059, %v1060
        %v1077 = vcombine.low %v1061, %v1062
        %v1078 = vcombine.low %v1063, %v1064
        %v1080 = vunpack.c.l.s4 1966171168
        %v1081 = vunpack.c.0.s8 %v1080
        %v1082 = vlaneseq
        %v1083 = vshrl.u32 %v1082, 7
        %v1084 = vsub.s32 %v1081, %v1083
        %v1085 = vrot.slane %v1075, %v1084
        %v1087 = vunpack.c.l.s4 1966171168
        %v1088 = vunpack.c.0.s8 %v1087
        %v1089 = vlaneseq
        %v1090 = vshrl.u32 %v1089, 7
        %v1091 = vsub.s32 %v1088, %v1090
        %v1092 = vrot.slane %v1076, %v1091
        %v1094 = vunpack.c.l.s4 1966171168
        %v1095 = vunpack.c.0.s8 %v1094
        %v1096 = vlaneseq
        %v1097 = vshrl.u32 %v1096, 7
        %v1098 = vsub.s32 %v1095, %v1097
        %v1099 = vrot.slane %v1077, %v1098
        %v1101 = vunpack.c.l.s4 1966171168
        %v1102 = vunpack.c.0.s8 %v1101
        %v1103 = vlaneseq
        %v1104 = vshrl.u32 %v1103, 7
        %v1105 = vsub.s32 %v1102, %v1104
        %v1106 = vrot.slane %v1078, %v1105
        %v1107 = vcombine.low %v1085, %v1092
        %v1108 = vcombine.low %v1099, %v1106
        %v1110 = vunpack.c.l.s4 1966171168
        %v1111 = vunpack.c.0.s8 %v1110
        %v1112 = vlaneseq
        %v1113 = vshrl.u32 %v1112, 7
        %v1114 = vsub.s32 %v1111, %v1113
        %v1115 = vrot.slane %v1107, %v1114
        %v1117 = vunpack.c.l.s4 1966171168
        %v1118 = vunpack.c.0.s8 %v1117
        %v1119 = vlaneseq
        %v1120 = vshrl.u32 %v1119, 7
        %v1121 = vsub.s32 %v1118, %v1120
        %v1122 = vrot.slane %v1108, %v1121
        %v1123 = vcombine.low %v1115, %v1122
        %v1125 = vunpack.c.l.s4 1966171168
        %v1126 = vunpack.c.0.s8 %v1125
        %v1127 = vlaneseq
        %v1128 = vshrl.u32 %v1127, 7
        %v1129 = vsub.s32 %v1126, %v1128
        %v1130 = vrot.slane %v1065, %v1129
        %v1132 = vunpack.c.l.s4 1966171168
        %v1133 = vunpack.c.0.s8 %v1132
        %v1134 = vlaneseq
        %v1135 = vshrl.u32 %v1134, 7
        %v1136 = vsub.s32 %v1133, %v1135
        %v1137 = vrot.slane %v1130, %v1136
        %v1140 = vadd.f32 %v1053, %v1123
        %v1141 = vadd.f32 %v1054, %v1137
        %s1142 = sld [smem:[#allocation2 + $0x8]]
        %v1143 = vstv %s1142
        %v1144 = vmul.f32 %v1143, %v585
        %v1145 = vmul.f32 %v1143, %v584
        %v1146 = vmul.f32 %v1143, %v583
        %v1147 = vmul.f32 %v1143, %v582
        %v1148 = vmul.f32 %v1143, %v581
        %v1149 = vmul.f32 %v1143, %v580
        %v1150 = vmul.f32 %v1143, %v579
        %v1151 = vmul.f32 %v1143, %v578
        %v1152 = vmul.f32 %v1143, %v586
        %v1162 = vcombine.low %v1144, %v1145
        %v1163 = vcombine.low %v1146, %v1147
        %v1164 = vcombine.low %v1148, %v1149
        %v1165 = vcombine.low %v1150, %v1151
        %v1167 = vunpack.c.l.s4 1966171168
        %v1168 = vunpack.c.0.s8 %v1167
        %v1169 = vlaneseq
        %v1170 = vshrl.u32 %v1169, 7
        %v1171 = vsub.s32 %v1168, %v1170
        %v1172 = vrot.slane %v1162, %v1171
        %v1174 = vunpack.c.l.s4 1966171168
        %v1175 = vunpack.c.0.s8 %v1174
        %v1176 = vlaneseq
        %v1177 = vshrl.u32 %v1176, 7
        %v1178 = vsub.s32 %v1175, %v1177
        %v1179 = vrot.slane %v1163, %v1178
        %v1181 = vunpack.c.l.s4 1966171168
        %v1182 = vunpack.c.0.s8 %v1181
        %v1183 = vlaneseq
        %v1184 = vshrl.u32 %v1183, 7
        %v1185 = vsub.s32 %v1182, %v1184
        %v1186 = vrot.slane %v1164, %v1185
        %v1188 = vunpack.c.l.s4 1966171168
        %v1189 = vunpack.c.0.s8 %v1188
        %v1190 = vlaneseq
        %v1191 = vshrl.u32 %v1190, 7
        %v1192 = vsub.s32 %v1189, %v1191
        %v1193 = vrot.slane %v1165, %v1192
        %v1194 = vcombine.low %v1172, %v1179
        %v1195 = vcombine.low %v1186, %v1193
        %v1197 = vunpack.c.l.s4 1966171168
        %v1198 = vunpack.c.0.s8 %v1197
        %v1199 = vlaneseq
        %v1200 = vshrl.u32 %v1199, 7
        %v1201 = vsub.s32 %v1198, %v1200
        %v1202 = vrot.slane %v1194, %v1201
        %v1204 = vunpack.c.l.s4 1966171168
        %v1205 = vunpack.c.0.s8 %v1204
        %v1206 = vlaneseq
        %v1207 = vshrl.u32 %v1206, 7
        %v1208 = vsub.s32 %v1205, %v1207
        %v1209 = vrot.slane %v1195, %v1208
        %v1210 = vcombine.low %v1202, %v1209
        %v1212 = vunpack.c.l.s4 1966171168
        %v1213 = vunpack.c.0.s8 %v1212
        %v1214 = vlaneseq
        %v1215 = vshrl.u32 %v1214, 7
        %v1216 = vsub.s32 %v1213, %v1215
        %v1217 = vrot.slane %v1152, %v1216
        %v1219 = vunpack.c.l.s4 1966171168
        %v1220 = vunpack.c.0.s8 %v1219
        %v1221 = vlaneseq
        %v1222 = vshrl.u32 %v1221, 7
        %v1223 = vsub.s32 %v1220, %v1222
        %v1224 = vrot.slane %v1217, %v1223
        %v1227 = vadd.f32 %v1140, %v1210
        %v1228 = vadd.f32 %v1141, %v1224
        %s1229 = sld [smem:[#allocation2 + $0x9]]
        %v1230 = vstv %s1229
        %v1231 = vmul.f32 %v1230, %v588
        %v1232 = vmul.f32 %v1230, %v589
        %v1233 = vadd.f32 %v1227, %v1231
        %v1234 = vadd.f32 %v1228, %v1232
        %s1235 = sld [smem:[#allocation2 + $0xa]]
        %v1236 = vstv %s1235
        %v1237 = vmul.f32 %v1236, %v662
        %v1238 = vmul.f32 %v1236, %v661
        %v1239 = vmul.f32 %v1236, %v660
        %v1240 = vmul.f32 %v1236, %v659
        %v1241 = vmul.f32 %v1236, %v658
        %v1242 = vmul.f32 %v1236, %v657
        %v1243 = vmul.f32 %v1236, %v656
        %v1244 = vmul.f32 %v1236, %v655
        %v1245 = vmul.f32 %v1236, %v663
        %v1255 = vcombine.low %v1237, %v1238
        %v1256 = vcombine.low %v1239, %v1240
        %v1257 = vcombine.low %v1241, %v1242
        %v1258 = vcombine.low %v1243, %v1244
        %v1260 = vunpack.c.l.s4 1966171168
        %v1261 = vunpack.c.0.s8 %v1260
        %v1262 = vlaneseq
        %v1263 = vshrl.u32 %v1262, 7
        %v1264 = vsub.s32 %v1261, %v1263
        %v1265 = vrot.slane %v1255, %v1264
        %v1267 = vunpack.c.l.s4 1966171168
        %v1268 = vunpack.c.0.s8 %v1267
        %v1269 = vlaneseq
        %v1270 = vshrl.u32 %v1269, 7
        %v1271 = vsub.s32 %v1268, %v1270
        %v1272 = vrot.slane %v1256, %v1271
        %v1274 = vunpack.c.l.s4 1966171168
        %v1275 = vunpack.c.0.s8 %v1274
        %v1276 = vlaneseq
        %v1277 = vshrl.u32 %v1276, 7
        %v1278 = vsub.s32 %v1275, %v1277
        %v1279 = vrot.slane %v1257, %v1278
        %v1281 = vunpack.c.l.s4 1966171168
        %v1282 = vunpack.c.0.s8 %v1281
        %v1283 = vlaneseq
        %v1284 = vshrl.u32 %v1283, 7
        %v1285 = vsub.s32 %v1282, %v1284
        %v1286 = vrot.slane %v1258, %v1285
        %v1287 = vcombine.low %v1265, %v1272
        %v1288 = vcombine.low %v1279, %v1286
        %v1290 = vunpack.c.l.s4 1966171168
        %v1291 = vunpack.c.0.s8 %v1290
        %v1292 = vlaneseq
        %v1293 = vshrl.u32 %v1292, 7
        %v1294 = vsub.s32 %v1291, %v1293
        %v1295 = vrot.slane %v1287, %v1294
        %v1297 = vunpack.c.l.s4 1966171168
        %v1298 = vunpack.c.0.s8 %v1297
        %v1299 = vlaneseq
        %v1300 = vshrl.u32 %v1299, 7
        %v1301 = vsub.s32 %v1298, %v1300
        %v1302 = vrot.slane %v1288, %v1301
        %v1303 = vcombine.low %v1295, %v1302
        %v1305 = vunpack.c.l.s4 1966171168
        %v1306 = vunpack.c.0.s8 %v1305
        %v1307 = vlaneseq
        %v1308 = vshrl.u32 %v1307, 7
        %v1309 = vsub.s32 %v1306, %v1308
        %v1310 = vrot.slane %v1245, %v1309
        %v1312 = vunpack.c.l.s4 1966171168
        %v1313 = vunpack.c.0.s8 %v1312
        %v1314 = vlaneseq
        %v1315 = vshrl.u32 %v1314, 7
        %v1316 = vsub.s32 %v1313, %v1315
        %v1317 = vrot.slane %v1310, %v1316
        %v1320 = vadd.f32 %v1233, %v1303
        %v1321 = vadd.f32 %v1234, %v1317
        %s1322 = sld [smem:[#allocation2 + $0xb]]
        %v1323 = vstv %s1322
        %v1324 = vmul.f32 %v1323, %v689
        %v1325 = vmul.f32 %v1323, %v688
        %v1326 = vmul.f32 %v1323, %v687
        %v1327 = vmul.f32 %v1323, %v686
        %v1328 = vmul.f32 %v1323, %v685
        %v1329 = vmul.f32 %v1323, %v684
        %v1330 = vmul.f32 %v1323, %v683
        %v1331 = vmul.f32 %v1323, %v682
        %v1332 = vmul.f32 %v1323, %v690
        %v1342 = vcombine.low %v1324, %v1325
        %v1343 = vcombine.low %v1326, %v1327
        %v1344 = vcombine.low %v1328, %v1329
        %v1345 = vcombine.low %v1330, %v1331
        %v1347 = vunpack.c.l.s4 1966171168
        %v1348 = vunpack.c.0.s8 %v1347
        %v1349 = vlaneseq
        %v1350 = vshrl.u32 %v1349, 7
        %v1351 = vsub.s32 %v1348, %v1350
        %v1352 = vrot.slane %v1342, %v1351
        %v1354 = vunpack.c.l.s4 1966171168
        %v1355 = vunpack.c.0.s8 %v1354
        %v1356 = vlaneseq
        %v1357 = vshrl.u32 %v1356, 7
        %v1358 = vsub.s32 %v1355, %v1357
        %v1359 = vrot.slane %v1343, %v1358
        %v1361 = vunpack.c.l.s4 1966171168
        %v1362 = vunpack.c.0.s8 %v1361
        %v1363 = vlaneseq
        %v1364 = vshrl.u32 %v1363, 7
        %v1365 = vsub.s32 %v1362, %v1364
        %v1366 = vrot.slane %v1344, %v1365
        %v1368 = vunpack.c.l.s4 1966171168
        %v1369 = vunpack.c.0.s8 %v1368
        %v1370 = vlaneseq
        %v1371 = vshrl.u32 %v1370, 7
        %v1372 = vsub.s32 %v1369, %v1371
        %v1373 = vrot.slane %v1345, %v1372
        %v1374 = vcombine.low %v1352, %v1359
        %v1375 = vcombine.low %v1366, %v1373
        %v1377 = vunpack.c.l.s4 1966171168
        %v1378 = vunpack.c.0.s8 %v1377
        %v1379 = vlaneseq
        %v1380 = vshrl.u32 %v1379, 7
        %v1381 = vsub.s32 %v1378, %v1380
        %v1382 = vrot.slane %v1374, %v1381
        %v1384 = vunpack.c.l.s4 1966171168
        %v1385 = vunpack.c.0.s8 %v1384
        %v1386 = vlaneseq
        %v1387 = vshrl.u32 %v1386, 7
        %v1388 = vsub.s32 %v1385, %v1387
        %v1389 = vrot.slane %v1375, %v1388
        %v1390 = vcombine.low %v1382, %v1389
        %v1392 = vunpack.c.l.s4 1966171168
        %v1393 = vunpack.c.0.s8 %v1392
        %v1394 = vlaneseq
        %v1395 = vshrl.u32 %v1394, 7
        %v1396 = vsub.s32 %v1393, %v1395
        %v1397 = vrot.slane %v1332, %v1396
        %v1399 = vunpack.c.l.s4 1966171168
        %v1400 = vunpack.c.0.s8 %v1399
        %v1401 = vlaneseq
        %v1402 = vshrl.u32 %v1401, 7
        %v1403 = vsub.s32 %v1400, %v1402
        %v1404 = vrot.slane %v1397, %v1403
        %v1407 = vadd.f32 %v1320, %v1390
        %v1408 = vadd.f32 %v1321, %v1404
        %s1409 = sld [smem:[#allocation7]]
        %v1410 = vstv %s1409
        %v1411 = vmul.f32 %v1407, %v1410
        %v1412 = vmul.f32 %v1408, %v1410
        %s1413 = sld [smem:[#allocation8]]
        %v1414 = vstv %s1413
        %v1415 = vadd.f32 %v1411, %v1414
        %v1416 = vadd.f32 %v1412, %v1414
        %v1417 = vmax.f32 %v1415, 0.0
        %v1418 = vmax.f32 %v1416, 0.0
        %1419 = vst [vmem:[%s271] sm:$0xff] %v1417
        %v1420 = vlaneseq
        %vm1421 = vcmp.ge.s32.totalorder %v1420, 0
        %vm1422 = vcmp.lt.s32.totalorder %v1420, 128
        %vm1423 = vmand %vm1421, %vm1422
        %1424 = vst.msk [vmem:[%s271 + $0x8] sm:$0x1] %vm1423, %v1418
        %s1425 = sld [smem:[#allocation2 + $0xc]]
        %v1426 = vstv %s1425
        %v1427 = vmul.f32 %v1426, %v272
        %v1428 = vmul.f32 %v1426, %v273
        %s1429 = sld [smem:[#allocation2 + $0xd]]
        %v1430 = vstv %s1429
        %v1431 = vmul.f32 %v1430, %v349
        %v1432 = vmul.f32 %v1430, %v348
        %v1433 = vmul.f32 %v1430, %v347
        %v1434 = vmul.f32 %v1430, %v346
        %v1435 = vmul.f32 %v1430, %v345
        %v1436 = vmul.f32 %v1430, %v344
        %v1437 = vmul.f32 %v1430, %v343
        %v1438 = vmul.f32 %v1430, %v342
        %v1439 = vmul.f32 %v1430, %v350
        %v1449 = vcombine.low %v1431, %v1432
        %v1450 = vcombine.low %v1433, %v1434
        %v1451 = vcombine.low %v1435, %v1436
        %v1452 = vcombine.low %v1437, %v1438
        %v1454 = vunpack.c.l.s4 1966171168
        %v1455 = vunpack.c.0.s8 %v1454
        %v1456 = vlaneseq
        %v1457 = vshrl.u32 %v1456, 7
        %v1458 = vsub.s32 %v1455, %v1457
        %v1459 = vrot.slane %v1449, %v1458
        %v1461 = vunpack.c.l.s4 1966171168
        %v1462 = vunpack.c.0.s8 %v1461
        %v1463 = vlaneseq
        %v1464 = vshrl.u32 %v1463, 7
        %v1465 = vsub.s32 %v1462, %v1464
        %v1466 = vrot.slane %v1450, %v1465
        %v1468 = vunpack.c.l.s4 1966171168
        %v1469 = vunpack.c.0.s8 %v1468
        %v1470 = vlaneseq
        %v1471 = vshrl.u32 %v1470, 7
        %v1472 = vsub.s32 %v1469, %v1471
        %v1473 = vrot.slane %v1451, %v1472
        %v1475 = vunpack.c.l.s4 1966171168
        %v1476 = vunpack.c.0.s8 %v1475
        %v1477 = vlaneseq
        %v1478 = vshrl.u32 %v1477, 7
        %v1479 = vsub.s32 %v1476, %v1478
        %v1480 = vrot.slane %v1452, %v1479
        %v1481 = vcombine.low %v1459, %v1466
        %v1482 = vcombine.low %v1473, %v1480
        %v1484 = vunpack.c.l.s4 1966171168
        %v1485 = vunpack.c.0.s8 %v1484
        %v1486 = vlaneseq
        %v1487 = vshrl.u32 %v1486, 7
        %v1488 = vsub.s32 %v1485, %v1487
        %v1489 = vrot.slane %v1481, %v1488
        %v1491 = vunpack.c.l.s4 1966171168
        %v1492 = vunpack.c.0.s8 %v1491
        %v1493 = vlaneseq
        %v1494 = vshrl.u32 %v1493, 7
        %v1495 = vsub.s32 %v1492, %v1494
        %v1496 = vrot.slane %v1482, %v1495
        %v1497 = vcombine.low %v1489, %v1496
        %v1499 = vunpack.c.l.s4 1966171168
        %v1500 = vunpack.c.0.s8 %v1499
        %v1501 = vlaneseq
        %v1502 = vshrl.u32 %v1501, 7
        %v1503 = vsub.s32 %v1500, %v1502
        %v1504 = vrot.slane %v1439, %v1503
        %v1506 = vunpack.c.l.s4 1966171168
        %v1507 = vunpack.c.0.s8 %v1506
        %v1508 = vlaneseq
        %v1509 = vshrl.u32 %v1508, 7
        %v1510 = vsub.s32 %v1507, %v1509
        %v1511 = vrot.slane %v1504, %v1510
        %v1514 = vadd.f32 %v1427, %v1497
        %v1515 = vadd.f32 %v1428, %v1511
        %s1516 = sld [smem:[#allocation2 + $0xe]]
        %v1517 = vstv %s1516
        %v1518 = vmul.f32 %v1517, %v377
        %v1519 = vmul.f32 %v1517, %v376
        %v1520 = vmul.f32 %v1517, %v375
        %v1521 = vmul.f32 %v1517, %v374
        %v1522 = vmul.f32 %v1517, %v373
        %v1523 = vmul.f32 %v1517, %v372
        %v1524 = vmul.f32 %v1517, %v371
        %v1525 = vmul.f32 %v1517, %v370
        %v1526 = vmul.f32 %v1517, %v378
        %v1536 = vcombine.low %v1518, %v1519
        %v1537 = vcombine.low %v1520, %v1521
        %v1538 = vcombine.low %v1522, %v1523
        %v1539 = vcombine.low %v1524, %v1525
        %v1541 = vunpack.c.l.s4 1966171168
        %v1542 = vunpack.c.0.s8 %v1541
        %v1543 = vlaneseq
        %v1544 = vshrl.u32 %v1543, 7
        %v1545 = vsub.s32 %v1542, %v1544
        %v1546 = vrot.slane %v1536, %v1545
        %v1548 = vunpack.c.l.s4 1966171168
        %v1549 = vunpack.c.0.s8 %v1548
        %v1550 = vlaneseq
        %v1551 = vshrl.u32 %v1550, 7
        %v1552 = vsub.s32 %v1549, %v1551
        %v1553 = vrot.slane %v1537, %v1552
        %v1555 = vunpack.c.l.s4 1966171168
        %v1556 = vunpack.c.0.s8 %v1555
        %v1557 = vlaneseq
        %v1558 = vshrl.u32 %v1557, 7
        %v1559 = vsub.s32 %v1556, %v1558
        %v1560 = vrot.slane %v1538, %v1559
        %v1562 = vunpack.c.l.s4 1966171168
        %v1563 = vunpack.c.0.s8 %v1562
        %v1564 = vlaneseq
        %v1565 = vshrl.u32 %v1564, 7
        %v1566 = vsub.s32 %v1563, %v1565
        %v1567 = vrot.slane %v1539, %v1566
        %v1568 = vcombine.low %v1546, %v1553
        %v1569 = vcombine.low %v1560, %v1567
        %v1571 = vunpack.c.l.s4 1966171168
        %v1572 = vunpack.c.0.s8 %v1571
        %v1573 = vlaneseq
        %v1574 = vshrl.u32 %v1573, 7
        %v1575 = vsub.s32 %v1572, %v1574
        %v1576 = vrot.slane %v1568, %v1575
        %v1578 = vunpack.c.l.s4 1966171168
        %v1579 = vunpack.c.0.s8 %v1578
        %v1580 = vlaneseq
        %v1581 = vshrl.u32 %v1580, 7
        %v1582 = vsub.s32 %v1579, %v1581
        %v1583 = vrot.slane %v1569, %v1582
        %v1584 = vcombine.low %v1576, %v1583
        %v1586 = vunpack.c.l.s4 1966171168
        %v1587 = vunpack.c.0.s8 %v1586
        %v1588 = vlaneseq
        %v1589 = vshrl.u32 %v1588, 7
        %v1590 = vsub.s32 %v1587, %v1589
        %v1591 = vrot.slane %v1526, %v1590
        %v1593 = vunpack.c.l.s4 1966171168
        %v1594 = vunpack.c.0.s8 %v1593
        %v1595 = vlaneseq
        %v1596 = vshrl.u32 %v1595, 7
        %v1597 = vsub.s32 %v1594, %v1596
        %v1598 = vrot.slane %v1591, %v1597
        %v1601 = vadd.f32 %v1514, %v1584
        %v1602 = vadd.f32 %v1515, %v1598
        %s1603 = sld [smem:[#allocation2 + $0xf]]
        %v1604 = vstv %s1603
        %v1605 = vmul.f32 %v1604, %v380
        %v1606 = vmul.f32 %v1604, %v381
        %v1607 = vadd.f32 %v1601, %v1605
        %v1608 = vadd.f32 %v1602, %v1606
        %s1609 = sld [smem:[#allocation2 + $0x10]]
        %v1610 = vstv %s1609
        %v1611 = vmul.f32 %v1610, %v454
        %v1612 = vmul.f32 %v1610, %v453
        %v1613 = vmul.f32 %v1610, %v452
        %v1614 = vmul.f32 %v1610, %v451
        %v1615 = vmul.f32 %v1610, %v450
        %v1616 = vmul.f32 %v1610, %v449
        %v1617 = vmul.f32 %v1610, %v448
        %v1618 = vmul.f32 %v1610, %v447
        %v1619 = vmul.f32 %v1610, %v455
        %v1629 = vcombine.low %v1611, %v1612
        %v1630 = vcombine.low %v1613, %v1614
        %v1631 = vcombine.low %v1615, %v1616
        %v1632 = vcombine.low %v1617, %v1618
        %v1634 = vunpack.c.l.s4 1966171168
        %v1635 = vunpack.c.0.s8 %v1634
        %v1636 = vlaneseq
        %v1637 = vshrl.u32 %v1636, 7
        %v1638 = vsub.s32 %v1635, %v1637
        %v1639 = vrot.slane %v1629, %v1638
        %v1641 = vunpack.c.l.s4 1966171168
        %v1642 = vunpack.c.0.s8 %v1641
        %v1643 = vlaneseq
        %v1644 = vshrl.u32 %v1643, 7
        %v1645 = vsub.s32 %v1642, %v1644
        %v1646 = vrot.slane %v1630, %v1645
        %v1648 = vunpack.c.l.s4 1966171168
        %v1649 = vunpack.c.0.s8 %v1648
        %v1650 = vlaneseq
        %v1651 = vshrl.u32 %v1650, 7
        %v1652 = vsub.s32 %v1649, %v1651
        %v1653 = vrot.slane %v1631, %v1652
        %v1655 = vunpack.c.l.s4 1966171168
        %v1656 = vunpack.c.0.s8 %v1655
        %v1657 = vlaneseq
        %v1658 = vshrl.u32 %v1657, 7
        %v1659 = vsub.s32 %v1656, %v1658
        %v1660 = vrot.slane %v1632, %v1659
        %v1661 = vcombine.low %v1639, %v1646
        %v1662 = vcombine.low %v1653, %v1660
        %v1664 = vunpack.c.l.s4 1966171168
        %v1665 = vunpack.c.0.s8 %v1664
        %v1666 = vlaneseq
        %v1667 = vshrl.u32 %v1666, 7
        %v1668 = vsub.s32 %v1665, %v1667
        %v1669 = vrot.slane %v1661, %v1668
        %v1671 = vunpack.c.l.s4 1966171168
        %v1672 = vunpack.c.0.s8 %v1671
        %v1673 = vlaneseq
        %v1674 = vshrl.u32 %v1673, 7
        %v1675 = vsub.s32 %v1672, %v1674
        %v1676 = vrot.slane %v1662, %v1675
        %v1677 = vcombine.low %v1669, %v1676
        %v1679 = vunpack.c.l.s4 1966171168
        %v1680 = vunpack.c.0.s8 %v1679
        %v1681 = vlaneseq
        %v1682 = vshrl.u32 %v1681, 7
        %v1683 = vsub.s32 %v1680, %v1682
        %v1684 = vrot.slane %v1619, %v1683
        %v1686 = vunpack.c.l.s4 1966171168
        %v1687 = vunpack.c.0.s8 %v1686
        %v1688 = vlaneseq
        %v1689 = vshrl.u32 %v1688, 7
        %v1690 = vsub.s32 %v1687, %v1689
        %v1691 = vrot.slane %v1684, %v1690
        %v1694 = vadd.f32 %v1607, %v1677
        %v1695 = vadd.f32 %v1608, %v1691
        %s1696 = sld [smem:[#allocation2 + $0x11]]
        %v1697 = vstv %s1696
        %v1698 = vmul.f32 %v1697, %v481
        %v1699 = vmul.f32 %v1697, %v480
        %v1700 = vmul.f32 %v1697, %v479
        %v1701 = vmul.f32 %v1697, %v478
        %v1702 = vmul.f32 %v1697, %v477
        %v1703 = vmul.f32 %v1697, %v476
        %v1704 = vmul.f32 %v1697, %v475
        %v1705 = vmul.f32 %v1697, %v474
        %v1706 = vmul.f32 %v1697, %v482
        %v1716 = vcombine.low %v1698, %v1699
        %v1717 = vcombine.low %v1700, %v1701
        %v1718 = vcombine.low %v1702, %v1703
        %v1719 = vcombine.low %v1704, %v1705
        %v1721 = vunpack.c.l.s4 1966171168
        %v1722 = vunpack.c.0.s8 %v1721
        %v1723 = vlaneseq
        %v1724 = vshrl.u32 %v1723, 7
        %v1725 = vsub.s32 %v1722, %v1724
        %v1726 = vrot.slane %v1716, %v1725
        %v1728 = vunpack.c.l.s4 1966171168
        %v1729 = vunpack.c.0.s8 %v1728
        %v1730 = vlaneseq
        %v1731 = vshrl.u32 %v1730, 7
        %v1732 = vsub.s32 %v1729, %v1731
        %v1733 = vrot.slane %v1717, %v1732
        %v1735 = vunpack.c.l.s4 1966171168
        %v1736 = vunpack.c.0.s8 %v1735
        %v1737 = vlaneseq
        %v1738 = vshrl.u32 %v1737, 7
        %v1739 = vsub.s32 %v1736, %v1738
        %v1740 = vrot.slane %v1718, %v1739
        %v1742 = vunpack.c.l.s4 1966171168
        %v1743 = vunpack.c.0.s8 %v1742
        %v1744 = vlaneseq
        %v1745 = vshrl.u32 %v1744, 7
        %v1746 = vsub.s32 %v1743, %v1745
        %v1747 = vrot.slane %v1719, %v1746
        %v1748 = vcombine.low %v1726, %v1733
        %v1749 = vcombine.low %v1740, %v1747
        %v1751 = vunpack.c.l.s4 1966171168
        %v1752 = vunpack.c.0.s8 %v1751
        %v1753 = vlaneseq
        %v1754 = vshrl.u32 %v1753, 7
        %v1755 = vsub.s32 %v1752, %v1754
        %v1756 = vrot.slane %v1748, %v1755
        %v1758 = vunpack.c.l.s4 1966171168
        %v1759 = vunpack.c.0.s8 %v1758
        %v1760 = vlaneseq
        %v1761 = vshrl.u32 %v1760, 7
        %v1762 = vsub.s32 %v1759, %v1761
        %v1763 = vrot.slane %v1749, %v1762
        %v1764 = vcombine.low %v1756, %v1763
        %v1766 = vunpack.c.l.s4 1966171168
        %v1767 = vunpack.c.0.s8 %v1766
        %v1768 = vlaneseq
        %v1769 = vshrl.u32 %v1768, 7
        %v1770 = vsub.s32 %v1767, %v1769
        %v1771 = vrot.slane %v1706, %v1770
        %v1773 = vunpack.c.l.s4 1966171168
        %v1774 = vunpack.c.0.s8 %v1773
        %v1775 = vlaneseq
        %v1776 = vshrl.u32 %v1775, 7
        %v1777 = vsub.s32 %v1774, %v1776
        %v1778 = vrot.slane %v1771, %v1777
        %v1781 = vadd.f32 %v1694, %v1764
        %v1782 = vadd.f32 %v1695, %v1778
        %s1783 = sld [smem:[#allocation2 + $0x12]]
        %v1784 = vstv %s1783
        %v1785 = vmul.f32 %v1784, %v484
        %v1786 = vmul.f32 %v1784, %v485
        %v1787 = vadd.f32 %v1781, %v1785
        %v1788 = vadd.f32 %v1782, %v1786
        %s1789 = sld [smem:[#allocation2 + $0x13]]
        %v1790 = vstv %s1789
        %v1791 = vmul.f32 %v1790, %v558
        %v1792 = vmul.f32 %v1790, %v557
        %v1793 = vmul.f32 %v1790, %v556
        %v1794 = vmul.f32 %v1790, %v555
        %v1795 = vmul.f32 %v1790, %v554
        %v1796 = vmul.f32 %v1790, %v553
        %v1797 = vmul.f32 %v1790, %v552
        %v1798 = vmul.f32 %v1790, %v551
        %v1799 = vmul.f32 %v1790, %v559
        %v1809 = vcombine.low %v1791, %v1792
        %v1810 = vcombine.low %v1793, %v1794
        %v1811 = vcombine.low %v1795, %v1796
        %v1812 = vcombine.low %v1797, %v1798
        %v1814 = vunpack.c.l.s4 1966171168
        %v1815 = vunpack.c.0.s8 %v1814
        %v1816 = vlaneseq
        %v1817 = vshrl.u32 %v1816, 7
        %v1818 = vsub.s32 %v1815, %v1817
        %v1819 = vrot.slane %v1809, %v1818
        %v1821 = vunpack.c.l.s4 1966171168
        %v1822 = vunpack.c.0.s8 %v1821
        %v1823 = vlaneseq
        %v1824 = vshrl.u32 %v1823, 7
        %v1825 = vsub.s32 %v1822, %v1824
        %v1826 = vrot.slane %v1810, %v1825
        %v1828 = vunpack.c.l.s4 1966171168
        %v1829 = vunpack.c.0.s8 %v1828
        %v1830 = vlaneseq
        %v1831 = vshrl.u32 %v1830, 7
        %v1832 = vsub.s32 %v1829, %v1831
        %v1833 = vrot.slane %v1811, %v1832
        %v1835 = vunpack.c.l.s4 1966171168
        %v1836 = vunpack.c.0.s8 %v1835
        %v1837 = vlaneseq
        %v1838 = vshrl.u32 %v1837, 7
        %v1839 = vsub.s32 %v1836, %v1838
        %v1840 = vrot.slane %v1812, %v1839
        %v1841 = vcombine.low %v1819, %v1826
        %v1842 = vcombine.low %v1833, %v1840
        %v1844 = vunpack.c.l.s4 1966171168
        %v1845 = vunpack.c.0.s8 %v1844
        %v1846 = vlaneseq
        %v1847 = vshrl.u32 %v1846, 7
        %v1848 = vsub.s32 %v1845, %v1847
        %v1849 = vrot.slane %v1841, %v1848
        %v1851 = vunpack.c.l.s4 1966171168
        %v1852 = vunpack.c.0.s8 %v1851
        %v1853 = vlaneseq
        %v1854 = vshrl.u32 %v1853, 7
        %v1855 = vsub.s32 %v1852, %v1854
        %v1856 = vrot.slane %v1842, %v1855
        %v1857 = vcombine.low %v1849, %v1856
        %v1859 = vunpack.c.l.s4 1966171168
        %v1860 = vunpack.c.0.s8 %v1859
        %v1861 = vlaneseq
        %v1862 = vshrl.u32 %v1861, 7
        %v1863 = vsub.s32 %v1860, %v1862
        %v1864 = vrot.slane %v1799, %v1863
        %v1866 = vunpack.c.l.s4 1966171168
        %v1867 = vunpack.c.0.s8 %v1866
        %v1868 = vlaneseq
        %v1869 = vshrl.u32 %v1868, 7
        %v1870 = vsub.s32 %v1867, %v1869
        %v1871 = vrot.slane %v1864, %v1870
        %v1874 = vadd.f32 %v1787, %v1857
        %v1875 = vadd.f32 %v1788, %v1871
        %s1876 = sld [smem:[#allocation2 + $0x14]]
        %v1877 = vstv %s1876
        %v1878 = vmul.f32 %v1877, %v585
        %v1879 = vmul.f32 %v1877, %v584
        %v1880 = vmul.f32 %v1877, %v583
        %v1881 = vmul.f32 %v1877, %v582
        %v1882 = vmul.f32 %v1877, %v581
        %v1883 = vmul.f32 %v1877, %v580
        %v1884 = vmul.f32 %v1877, %v579
        %v1885 = vmul.f32 %v1877, %v578
        %v1886 = vmul.f32 %v1877, %v586
        %v1896 = vcombine.low %v1878, %v1879
        %v1897 = vcombine.low %v1880, %v1881
        %v1898 = vcombine.low %v1882, %v1883
        %v1899 = vcombine.low %v1884, %v1885
        %v1901 = vunpack.c.l.s4 1966171168
        %v1902 = vunpack.c.0.s8 %v1901
        %v1903 = vlaneseq
        %v1904 = vshrl.u32 %v1903, 7
        %v1905 = vsub.s32 %v1902, %v1904
        %v1906 = vrot.slane %v1896, %v1905
        %v1908 = vunpack.c.l.s4 1966171168
        %v1909 = vunpack.c.0.s8 %v1908
        %v1910 = vlaneseq
        %v1911 = vshrl.u32 %v1910, 7
        %v1912 = vsub.s32 %v1909, %v1911
        %v1913 = vrot.slane %v1897, %v1912
        %v1915 = vunpack.c.l.s4 1966171168
        %v1916 = vunpack.c.0.s8 %v1915
        %v1917 = vlaneseq
        %v1918 = vshrl.u32 %v1917, 7
        %v1919 = vsub.s32 %v1916, %v1918
        %v1920 = vrot.slane %v1898, %v1919
        %v1922 = vunpack.c.l.s4 1966171168
        %v1923 = vunpack.c.0.s8 %v1922
        %v1924 = vlaneseq
        %v1925 = vshrl.u32 %v1924, 7
        %v1926 = vsub.s32 %v1923, %v1925
        %v1927 = vrot.slane %v1899, %v1926
        %v1928 = vcombine.low %v1906, %v1913
        %v1929 = vcombine.low %v1920, %v1927
        %v1931 = vunpack.c.l.s4 1966171168
        %v1932 = vunpack.c.0.s8 %v1931
        %v1933 = vlaneseq
        %v1934 = vshrl.u32 %v1933, 7
        %v1935 = vsub.s32 %v1932, %v1934
        %v1936 = vrot.slane %v1928, %v1935
        %v1938 = vunpack.c.l.s4 1966171168
        %v1939 = vunpack.c.0.s8 %v1938
        %v1940 = vlaneseq
        %v1941 = vshrl.u32 %v1940, 7
        %v1942 = vsub.s32 %v1939, %v1941
        %v1943 = vrot.slane %v1929, %v1942
        %v1944 = vcombine.low %v1936, %v1943
        %v1946 = vunpack.c.l.s4 1966171168
        %v1947 = vunpack.c.0.s8 %v1946
        %v1948 = vlaneseq
        %v1949 = vshrl.u32 %v1948, 7
        %v1950 = vsub.s32 %v1947, %v1949
        %v1951 = vrot.slane %v1886, %v1950
        %v1953 = vunpack.c.l.s4 1966171168
        %v1954 = vunpack.c.0.s8 %v1953
        %v1955 = vlaneseq
        %v1956 = vshrl.u32 %v1955, 7
        %v1957 = vsub.s32 %v1954, %v1956
        %v1958 = vrot.slane %v1951, %v1957
        %v1961 = vadd.f32 %v1874, %v1944
        %v1962 = vadd.f32 %v1875, %v1958
        %s1963 = sld [smem:[#allocation2 + $0x15]]
        %v1964 = vstv %s1963
        %v1965 = vmul.f32 %v1964, %v588
        %v1966 = vmul.f32 %v1964, %v589
        %v1967 = vadd.f32 %v1961, %v1965
        %v1968 = vadd.f32 %v1962, %v1966
        %s1969 = sld [smem:[#allocation2 + $0x16]]
        %v1970 = vstv %s1969
        %v1971 = vmul.f32 %v1970, %v662
        %v1972 = vmul.f32 %v1970, %v661
        %v1973 = vmul.f32 %v1970, %v660
        %v1974 = vmul.f32 %v1970, %v659
        %v1975 = vmul.f32 %v1970, %v658
        %v1976 = vmul.f32 %v1970, %v657
        %v1977 = vmul.f32 %v1970, %v656
        %v1978 = vmul.f32 %v1970, %v655
        %v1979 = vmul.f32 %v1970, %v663
        %v1989 = vcombine.low %v1971, %v1972
        %v1990 = vcombine.low %v1973, %v1974
        %v1991 = vcombine.low %v1975, %v1976
        %v1992 = vcombine.low %v1977, %v1978
        %v1994 = vunpack.c.l.s4 1966171168
        %v1995 = vunpack.c.0.s8 %v1994
        %v1996 = vlaneseq
        %v1997 = vshrl.u32 %v1996, 7
        %v1998 = vsub.s32 %v1995, %v1997
        %v1999 = vrot.slane %v1989, %v1998
        %v2001 = vunpack.c.l.s4 1966171168
        %v2002 = vunpack.c.0.s8 %v2001
        %v2003 = vlaneseq
        %v2004 = vshrl.u32 %v2003, 7
        %v2005 = vsub.s32 %v2002, %v2004
        %v2006 = vrot.slane %v1990, %v2005
        %v2008 = vunpack.c.l.s4 1966171168
        %v2009 = vunpack.c.0.s8 %v2008
        %v2010 = vlaneseq
        %v2011 = vshrl.u32 %v2010, 7
        %v2012 = vsub.s32 %v2009, %v2011
        %v2013 = vrot.slane %v1991, %v2012
        %v2015 = vunpack.c.l.s4 1966171168
        %v2016 = vunpack.c.0.s8 %v2015
        %v2017 = vlaneseq
        %v2018 = vshrl.u32 %v2017, 7
        %v2019 = vsub.s32 %v2016, %v2018
        %v2020 = vrot.slane %v1992, %v2019
        %v2021 = vcombine.low %v1999, %v2006
        %v2022 = vcombine.low %v2013, %v2020
        %v2024 = vunpack.c.l.s4 1966171168
        %v2025 = vunpack.c.0.s8 %v2024
        %v2026 = vlaneseq
        %v2027 = vshrl.u32 %v2026, 7
        %v2028 = vsub.s32 %v2025, %v2027
        %v2029 = vrot.slane %v2021, %v2028
        %v2031 = vunpack.c.l.s4 1966171168
        %v2032 = vunpack.c.0.s8 %v2031
        %v2033 = vlaneseq
        %v2034 = vshrl.u32 %v2033, 7
        %v2035 = vsub.s32 %v2032, %v2034
        %v2036 = vrot.slane %v2022, %v2035
        %v2037 = vcombine.low %v2029, %v2036
        %v2039 = vunpack.c.l.s4 1966171168
        %v2040 = vunpack.c.0.s8 %v2039
        %v2041 = vlaneseq
        %v2042 = vshrl.u32 %v2041, 7
        %v2043 = vsub.s32 %v2040, %v2042
        %v2044 = vrot.slane %v1979, %v2043
        %v2046 = vunpack.c.l.s4 1966171168
        %v2047 = vunpack.c.0.s8 %v2046
        %v2048 = vlaneseq
        %v2049 = vshrl.u32 %v2048, 7
        %v2050 = vsub.s32 %v2047, %v2049
        %v2051 = vrot.slane %v2044, %v2050
        %v2054 = vadd.f32 %v1967, %v2037
        %v2055 = vadd.f32 %v1968, %v2051
        %s2056 = sld [smem:[#allocation2 + $0x17]]
        %v2057 = vstv %s2056
        %v2058 = vmul.f32 %v2057, %v689
        %v2059 = vmul.f32 %v2057, %v688
        %v2060 = vmul.f32 %v2057, %v687
        %v2061 = vmul.f32 %v2057, %v686
        %v2062 = vmul.f32 %v2057, %v685
        %v2063 = vmul.f32 %v2057, %v684
        %v2064 = vmul.f32 %v2057, %v683
        %v2065 = vmul.f32 %v2057, %v682
        %v2066 = vmul.f32 %v2057, %v690
        %v2076 = vcombine.low %v2058, %v2059
        %v2077 = vcombine.low %v2060, %v2061
        %v2078 = vcombine.low %v2062, %v2063
        %v2079 = vcombine.low %v2064, %v2065
        %v2081 = vunpack.c.l.s4 1966171168
        %v2082 = vunpack.c.0.s8 %v2081
        %v2083 = vlaneseq
        %v2084 = vshrl.u32 %v2083, 7
        %v2085 = vsub.s32 %v2082, %v2084
        %v2086 = vrot.slane %v2076, %v2085
        %v2088 = vunpack.c.l.s4 1966171168
        %v2089 = vunpack.c.0.s8 %v2088
        %v2090 = vlaneseq
        %v2091 = vshrl.u32 %v2090, 7
        %v2092 = vsub.s32 %v2089, %v2091
        %v2093 = vrot.slane %v2077, %v2092
        %v2095 = vunpack.c.l.s4 1966171168
        %v2096 = vunpack.c.0.s8 %v2095
        %v2097 = vlaneseq
        %v2098 = vshrl.u32 %v2097, 7
        %v2099 = vsub.s32 %v2096, %v2098
        %v2100 = vrot.slane %v2078, %v2099
        %v2102 = vunpack.c.l.s4 1966171168
        %v2103 = vunpack.c.0.s8 %v2102
        %v2104 = vlaneseq
        %v2105 = vshrl.u32 %v2104, 7
        %v2106 = vsub.s32 %v2103, %v2105
        %v2107 = vrot.slane %v2079, %v2106
        %v2108 = vcombine.low %v2086, %v2093
        %v2109 = vcombine.low %v2100, %v2107
        %v2111 = vunpack.c.l.s4 1966171168
        %v2112 = vunpack.c.0.s8 %v2111
        %v2113 = vlaneseq
        %v2114 = vshrl.u32 %v2113, 7
        %v2115 = vsub.s32 %v2112, %v2114
        %v2116 = vrot.slane %v2108, %v2115
        %v2118 = vunpack.c.l.s4 1966171168
        %v2119 = vunpack.c.0.s8 %v2118
        %v2120 = vlaneseq
        %v2121 = vshrl.u32 %v2120, 7
        %v2122 = vsub.s32 %v2119, %v2121
        %v2123 = vrot.slane %v2109, %v2122
        %v2124 = vcombine.low %v2116, %v2123
        %v2126 = vunpack.c.l.s4 1966171168
        %v2127 = vunpack.c.0.s8 %v2126
        %v2128 = vlaneseq
        %v2129 = vshrl.u32 %v2128, 7
        %v2130 = vsub.s32 %v2127, %v2129
        %v2131 = vrot.slane %v2066, %v2130
        %v2133 = vunpack.c.l.s4 1966171168
        %v2134 = vunpack.c.0.s8 %v2133
        %v2135 = vlaneseq
        %v2136 = vshrl.u32 %v2135, 7
        %v2137 = vsub.s32 %v2134, %v2136
        %v2138 = vrot.slane %v2131, %v2137
        %v2141 = vadd.f32 %v2054, %v2124
        %v2142 = vadd.f32 %v2055, %v2138
        %s2143 = sld [smem:[#allocation7 + $0x1]]
        %v2144 = vstv %s2143
        %v2145 = vmul.f32 %v2141, %v2144
        %v2146 = vmul.f32 %v2142, %v2144
        %s2147 = sld [smem:[#allocation8 + $0x1]]
        %v2148 = vstv %s2147
        %v2149 = vadd.f32 %v2145, %v2148
        %v2150 = vadd.f32 %v2146, %v2148
        %v2151 = vmax.f32 %v2149, 0.0
        %v2152 = vmax.f32 %v2150, 0.0
        %s2153 = scalar_lea.vmem %s271, 9 [#allocation11]
        %2154 = vst [vmem:[%s2153] sm:$0xff] %v2151
        %2155 = vst.msk [vmem:[%s2153 + $0x8] sm:$0x1] %vm1423, %v2152
        %s2156 = sld [smem:[#allocation2 + $0x18]]
        %v2157 = vstv %s2156
        %v2158 = vmul.f32 %v2157, %v272
        %v2159 = vmul.f32 %v2157, %v273
        %s2160 = sld [smem:[#allocation2 + $0x19]]
        %v2161 = vstv %s2160
        %v2162 = vmul.f32 %v2161, %v349
        %v2163 = vmul.f32 %v2161, %v348
        %v2164 = vmul.f32 %v2161, %v347
        %v2165 = vmul.f32 %v2161, %v346
        %v2166 = vmul.f32 %v2161, %v345
        %v2167 = vmul.f32 %v2161, %v344
        %v2168 = vmul.f32 %v2161, %v343
        %v2169 = vmul.f32 %v2161, %v342
        %v2170 = vmul.f32 %v2161, %v350
        %v2180 = vcombine.low %v2162, %v2163
        %v2181 = vcombine.low %v2164, %v2165
        %v2182 = vcombine.low %v2166, %v2167
        %v2183 = vcombine.low %v2168, %v2169
        %v2185 = vunpack.c.l.s4 1966171168
        %v2186 = vunpack.c.0.s8 %v2185
        %v2187 = vlaneseq
        %v2188 = vshrl.u32 %v2187, 7
        %v2189 = vsub.s32 %v2186, %v2188
        %v2190 = vrot.slane %v2180, %v2189
        %v2192 = vunpack.c.l.s4 1966171168
        %v2193 = vunpack.c.0.s8 %v2192
        %v2194 = vlaneseq
        %v2195 = vshrl.u32 %v2194, 7
        %v2196 = vsub.s32 %v2193, %v2195
        %v2197 = vrot.slane %v2181, %v2196
        %v2199 = vunpack.c.l.s4 1966171168
        %v2200 = vunpack.c.0.s8 %v2199
        %v2201 = vlaneseq
        %v2202 = vshrl.u32 %v2201, 7
        %v2203 = vsub.s32 %v2200, %v2202
        %v2204 = vrot.slane %v2182, %v2203
        %v2206 = vunpack.c.l.s4 1966171168
        %v2207 = vunpack.c.0.s8 %v2206
        %v2208 = vlaneseq
        %v2209 = vshrl.u32 %v2208, 7
        %v2210 = vsub.s32 %v2207, %v2209
        %v2211 = vrot.slane %v2183, %v2210
        %v2212 = vcombine.low %v2190, %v2197
        %v2213 = vcombine.low %v2204, %v2211
        %v2215 = vunpack.c.l.s4 1966171168
        %v2216 = vunpack.c.0.s8 %v2215
        %v2217 = vlaneseq
        %v2218 = vshrl.u32 %v2217, 7
        %v2219 = vsub.s32 %v2216, %v2218
        %v2220 = vrot.slane %v2212, %v2219
        %v2222 = vunpack.c.l.s4 1966171168
        %v2223 = vunpack.c.0.s8 %v2222
        %v2224 = vlaneseq
        %v2225 = vshrl.u32 %v2224, 7
        %v2226 = vsub.s32 %v2223, %v2225
        %v2227 = vrot.slane %v2213, %v2226
        %v2228 = vcombine.low %v2220, %v2227
        %v2230 = vunpack.c.l.s4 1966171168
        %v2231 = vunpack.c.0.s8 %v2230
        %v2232 = vlaneseq
        %v2233 = vshrl.u32 %v2232, 7
        %v2234 = vsub.s32 %v2231, %v2233
        %v2235 = vrot.slane %v2170, %v2234
        %v2237 = vunpack.c.l.s4 1966171168
        %v2238 = vunpack.c.0.s8 %v2237
        %v2239 = vlaneseq
        %v2240 = vshrl.u32 %v2239, 7
        %v2241 = vsub.s32 %v2238, %v2240
        %v2242 = vrot.slane %v2235, %v2241
        %v2245 = vadd.f32 %v2158, %v2228
        %v2246 = vadd.f32 %v2159, %v2242
        %s2247 = sld [smem:[#allocation2 + $0x1a]]
        %v2248 = vstv %s2247
        %v2249 = vmul.f32 %v2248, %v377
        %v2250 = vmul.f32 %v2248, %v376
        %v2251 = vmul.f32 %v2248, %v375
        %v2252 = vmul.f32 %v2248, %v374
        %v2253 = vmul.f32 %v2248, %v373
        %v2254 = vmul.f32 %v2248, %v372
        %v2255 = vmul.f32 %v2248, %v371
        %v2256 = vmul.f32 %v2248, %v370
        %v2257 = vmul.f32 %v2248, %v378
        %v2267 = vcombine.low %v2249, %v2250
        %v2268 = vcombine.low %v2251, %v2252
        %v2269 = vcombine.low %v2253, %v2254
        %v2270 = vcombine.low %v2255, %v2256
        %v2272 = vunpack.c.l.s4 1966171168
        %v2273 = vunpack.c.0.s8 %v2272
        %v2274 = vlaneseq
        %v2275 = vshrl.u32 %v2274, 7
        %v2276 = vsub.s32 %v2273, %v2275
        %v2277 = vrot.slane %v2267, %v2276
        %v2279 = vunpack.c.l.s4 1966171168
        %v2280 = vunpack.c.0.s8 %v2279
        %v2281 = vlaneseq
        %v2282 = vshrl.u32 %v2281, 7
        %v2283 = vsub.s32 %v2280, %v2282
        %v2284 = vrot.slane %v2268, %v2283
        %v2286 = vunpack.c.l.s4 1966171168
        %v2287 = vunpack.c.0.s8 %v2286
        %v2288 = vlaneseq
        %v2289 = vshrl.u32 %v2288, 7
        %v2290 = vsub.s32 %v2287, %v2289
        %v2291 = vrot.slane %v2269, %v2290
        %v2293 = vunpack.c.l.s4 1966171168
        %v2294 = vunpack.c.0.s8 %v2293
        %v2295 = vlaneseq
        %v2296 = vshrl.u32 %v2295, 7
        %v2297 = vsub.s32 %v2294, %v2296
        %v2298 = vrot.slane %v2270, %v2297
        %v2299 = vcombine.low %v2277, %v2284
        %v2300 = vcombine.low %v2291, %v2298
        %v2302 = vunpack.c.l.s4 1966171168
        %v2303 = vunpack.c.0.s8 %v2302
        %v2304 = vlaneseq
        %v2305 = vshrl.u32 %v2304, 7
        %v2306 = vsub.s32 %v2303, %v2305
        %v2307 = vrot.slane %v2299, %v2306
        %v2309 = vunpack.c.l.s4 1966171168
        %v2310 = vunpack.c.0.s8 %v2309
        %v2311 = vlaneseq
        %v2312 = vshrl.u32 %v2311, 7
        %v2313 = vsub.s32 %v2310, %v2312
        %v2314 = vrot.slane %v2300, %v2313
        %v2315 = vcombine.low %v2307, %v2314
        %v2317 = vunpack.c.l.s4 1966171168
        %v2318 = vunpack.c.0.s8 %v2317
        %v2319 = vlaneseq
        %v2320 = vshrl.u32 %v2319, 7
        %v2321 = vsub.s32 %v2318, %v2320
        %v2322 = vrot.slane %v2257, %v2321
        %v2324 = vunpack.c.l.s4 1966171168
        %v2325 = vunpack.c.0.s8 %v2324
        %v2326 = vlaneseq
        %v2327 = vshrl.u32 %v2326, 7
        %v2328 = vsub.s32 %v2325, %v2327
        %v2329 = vrot.slane %v2322, %v2328
        %v2332 = vadd.f32 %v2245, %v2315
        %v2333 = vadd.f32 %v2246, %v2329
        %s2334 = sld [smem:[#allocation2 + $0x1b]]
        %v2335 = vstv %s2334
        %v2336 = vmul.f32 %v2335, %v380
        %v2337 = vmul.f32 %v2335, %v381
        %v2338 = vadd.f32 %v2332, %v2336
        %v2339 = vadd.f32 %v2333, %v2337
        %s2340 = sld [smem:[#allocation2 + $0x1c]]
        %v2341 = vstv %s2340
        %v2342 = vmul.f32 %v2341, %v454
        %v2343 = vmul.f32 %v2341, %v453
        %v2344 = vmul.f32 %v2341, %v452
        %v2345 = vmul.f32 %v2341, %v451
        %v2346 = vmul.f32 %v2341, %v450
        %v2347 = vmul.f32 %v2341, %v449
        %v2348 = vmul.f32 %v2341, %v448
        %v2349 = vmul.f32 %v2341, %v447
        %v2350 = vmul.f32 %v2341, %v455
        %v2360 = vcombine.low %v2342, %v2343
        %v2361 = vcombine.low %v2344, %v2345
        %v2362 = vcombine.low %v2346, %v2347
        %v2363 = vcombine.low %v2348, %v2349
        %v2365 = vunpack.c.l.s4 1966171168
        %v2366 = vunpack.c.0.s8 %v2365
        %v2367 = vlaneseq
        %v2368 = vshrl.u32 %v2367, 7
        %v2369 = vsub.s32 %v2366, %v2368
        %v2370 = vrot.slane %v2360, %v2369
        %v2372 = vunpack.c.l.s4 1966171168
        %v2373 = vunpack.c.0.s8 %v2372
        %v2374 = vlaneseq
        %v2375 = vshrl.u32 %v2374, 7
        %v2376 = vsub.s32 %v2373, %v2375
        %v2377 = vrot.slane %v2361, %v2376
        %v2379 = vunpack.c.l.s4 1966171168
        %v2380 = vunpack.c.0.s8 %v2379
        %v2381 = vlaneseq
        %v2382 = vshrl.u32 %v2381, 7
        %v2383 = vsub.s32 %v2380, %v2382
        %v2384 = vrot.slane %v2362, %v2383
        %v2386 = vunpack.c.l.s4 1966171168
        %v2387 = vunpack.c.0.s8 %v2386
        %v2388 = vlaneseq
        %v2389 = vshrl.u32 %v2388, 7
        %v2390 = vsub.s32 %v2387, %v2389
        %v2391 = vrot.slane %v2363, %v2390
        %v2392 = vcombine.low %v2370, %v2377
        %v2393 = vcombine.low %v2384, %v2391
        %v2395 = vunpack.c.l.s4 1966171168
        %v2396 = vunpack.c.0.s8 %v2395
        %v2397 = vlaneseq
        %v2398 = vshrl.u32 %v2397, 7
        %v2399 = vsub.s32 %v2396, %v2398
        %v2400 = vrot.slane %v2392, %v2399
        %v2402 = vunpack.c.l.s4 1966171168
        %v2403 = vunpack.c.0.s8 %v2402
        %v2404 = vlaneseq
        %v2405 = vshrl.u32 %v2404, 7
        %v2406 = vsub.s32 %v2403, %v2405
        %v2407 = vrot.slane %v2393, %v2406
        %v2408 = vcombine.low %v2400, %v2407
        %v2410 = vunpack.c.l.s4 1966171168
        %v2411 = vunpack.c.0.s8 %v2410
        %v2412 = vlaneseq
        %v2413 = vshrl.u32 %v2412, 7
        %v2414 = vsub.s32 %v2411, %v2413
        %v2415 = vrot.slane %v2350, %v2414
        %v2417 = vunpack.c.l.s4 1966171168
        %v2418 = vunpack.c.0.s8 %v2417
        %v2419 = vlaneseq
        %v2420 = vshrl.u32 %v2419, 7
        %v2421 = vsub.s32 %v2418, %v2420
        %v2422 = vrot.slane %v2415, %v2421
        %v2425 = vadd.f32 %v2338, %v2408
        %v2426 = vadd.f32 %v2339, %v2422
        %s2427 = sld [smem:[#allocation2 + $0x1d]]
        %v2428 = vstv %s2427
        %v2429 = vmul.f32 %v2428, %v481
        %v2430 = vmul.f32 %v2428, %v480
        %v2431 = vmul.f32 %v2428, %v479
        %v2432 = vmul.f32 %v2428, %v478
        %v2433 = vmul.f32 %v2428, %v477
        %v2434 = vmul.f32 %v2428, %v476
        %v2435 = vmul.f32 %v2428, %v475
        %v2436 = vmul.f32 %v2428, %v474
        %v2437 = vmul.f32 %v2428, %v482
        %v2447 = vcombine.low %v2429, %v2430
        %v2448 = vcombine.low %v2431, %v2432
        %v2449 = vcombine.low %v2433, %v2434
        %v2450 = vcombine.low %v2435, %v2436
        %v2452 = vunpack.c.l.s4 1966171168
        %v2453 = vunpack.c.0.s8 %v2452
        %v2454 = vlaneseq
        %v2455 = vshrl.u32 %v2454, 7
        %v2456 = vsub.s32 %v2453, %v2455
        %v2457 = vrot.slane %v2447, %v2456
        %v2459 = vunpack.c.l.s4 1966171168
        %v2460 = vunpack.c.0.s8 %v2459
        %v2461 = vlaneseq
        %v2462 = vshrl.u32 %v2461, 7
        %v2463 = vsub.s32 %v2460, %v2462
        %v2464 = vrot.slane %v2448, %v2463
        %v2466 = vunpack.c.l.s4 1966171168
        %v2467 = vunpack.c.0.s8 %v2466
        %v2468 = vlaneseq
        %v2469 = vshrl.u32 %v2468, 7
        %v2470 = vsub.s32 %v2467, %v2469
        %v2471 = vrot.slane %v2449, %v2470
        %v2473 = vunpack.c.l.s4 1966171168
        %v2474 = vunpack.c.0.s8 %v2473
        %v2475 = vlaneseq
        %v2476 = vshrl.u32 %v2475, 7
        %v2477 = vsub.s32 %v2474, %v2476
        %v2478 = vrot.slane %v2450, %v2477
        %v2479 = vcombine.low %v2457, %v2464
        %v2480 = vcombine.low %v2471, %v2478
        %v2482 = vunpack.c.l.s4 1966171168
        %v2483 = vunpack.c.0.s8 %v2482
        %v2484 = vlaneseq
        %v2485 = vshrl.u32 %v2484, 7
        %v2486 = vsub.s32 %v2483, %v2485
        %v2487 = vrot.slane %v2479, %v2486
        %v2489 = vunpack.c.l.s4 1966171168
        %v2490 = vunpack.c.0.s8 %v2489
        %v2491 = vlaneseq
        %v2492 = vshrl.u32 %v2491, 7
        %v2493 = vsub.s32 %v2490, %v2492
        %v2494 = vrot.slane %v2480, %v2493
        %v2495 = vcombine.low %v2487, %v2494
        %v2497 = vunpack.c.l.s4 1966171168
        %v2498 = vunpack.c.0.s8 %v2497
        %v2499 = vlaneseq
        %v2500 = vshrl.u32 %v2499, 7
        %v2501 = vsub.s32 %v2498, %v2500
        %v2502 = vrot.slane %v2437, %v2501
        %v2504 = vunpack.c.l.s4 1966171168
        %v2505 = vunpack.c.0.s8 %v2504
        %v2506 = vlaneseq
        %v2507 = vshrl.u32 %v2506, 7
        %v2508 = vsub.s32 %v2505, %v2507
        %v2509 = vrot.slane %v2502, %v2508
        %v2512 = vadd.f32 %v2425, %v2495
        %v2513 = vadd.f32 %v2426, %v2509
        %s2514 = sld [smem:[#allocation2 + $0x1e]]
        %v2515 = vstv %s2514
        %v2516 = vmul.f32 %v2515, %v484
        %v2517 = vmul.f32 %v2515, %v485
        %v2518 = vadd.f32 %v2512, %v2516
        %v2519 = vadd.f32 %v2513, %v2517
        %s2520 = sld [smem:[#allocation2 + $0x1f]]
        %v2521 = vstv %s2520
        %v2522 = vmul.f32 %v2521, %v558
        %v2523 = vmul.f32 %v2521, %v557
        %v2524 = vmul.f32 %v2521, %v556
        %v2525 = vmul.f32 %v2521, %v555
        %v2526 = vmul.f32 %v2521, %v554
        %v2527 = vmul.f32 %v2521, %v553
        %v2528 = vmul.f32 %v2521, %v552
        %v2529 = vmul.f32 %v2521, %v551
        %v2530 = vmul.f32 %v2521, %v559
        %v2540 = vcombine.low %v2522, %v2523
        %v2541 = vcombine.low %v2524, %v2525
        %v2542 = vcombine.low %v2526, %v2527
        %v2543 = vcombine.low %v2528, %v2529
        %v2545 = vunpack.c.l.s4 1966171168
        %v2546 = vunpack.c.0.s8 %v2545
        %v2547 = vlaneseq
        %v2548 = vshrl.u32 %v2547, 7
        %v2549 = vsub.s32 %v2546, %v2548
        %v2550 = vrot.slane %v2540, %v2549
        %v2552 = vunpack.c.l.s4 1966171168
        %v2553 = vunpack.c.0.s8 %v2552
        %v2554 = vlaneseq
        %v2555 = vshrl.u32 %v2554, 7
        %v2556 = vsub.s32 %v2553, %v2555
        %v2557 = vrot.slane %v2541, %v2556
        %v2559 = vunpack.c.l.s4 1966171168
        %v2560 = vunpack.c.0.s8 %v2559
        %v2561 = vlaneseq
        %v2562 = vshrl.u32 %v2561, 7
        %v2563 = vsub.s32 %v2560, %v2562
        %v2564 = vrot.slane %v2542, %v2563
        %v2566 = vunpack.c.l.s4 1966171168
        %v2567 = vunpack.c.0.s8 %v2566
        %v2568 = vlaneseq
        %v2569 = vshrl.u32 %v2568, 7
        %v2570 = vsub.s32 %v2567, %v2569
        %v2571 = vrot.slane %v2543, %v2570
        %v2572 = vcombine.low %v2550, %v2557
        %v2573 = vcombine.low %v2564, %v2571
        %v2575 = vunpack.c.l.s4 1966171168
        %v2576 = vunpack.c.0.s8 %v2575
        %v2577 = vlaneseq
        %v2578 = vshrl.u32 %v2577, 7
        %v2579 = vsub.s32 %v2576, %v2578
        %v2580 = vrot.slane %v2572, %v2579
        %v2582 = vunpack.c.l.s4 1966171168
        %v2583 = vunpack.c.0.s8 %v2582
        %v2584 = vlaneseq
        %v2585 = vshrl.u32 %v2584, 7
        %v2586 = vsub.s32 %v2583, %v2585
        %v2587 = vrot.slane %v2573, %v2586
        %v2588 = vcombine.low %v2580, %v2587
        %v2590 = vunpack.c.l.s4 1966171168
        %v2591 = vunpack.c.0.s8 %v2590
        %v2592 = vlaneseq
        %v2593 = vshrl.u32 %v2592, 7
        %v2594 = vsub.s32 %v2591, %v2593
        %v2595 = vrot.slane %v2530, %v2594
        %v2597 = vunpack.c.l.s4 1966171168
        %v2598 = vunpack.c.0.s8 %v2597
        %v2599 = vlaneseq
        %v2600 = vshrl.u32 %v2599, 7
        %v2601 = vsub.s32 %v2598, %v2600
        %v2602 = vrot.slane %v2595, %v2601
        %v2605 = vadd.f32 %v2518, %v2588
        %v2606 = vadd.f32 %v2519, %v2602
        %s2607 = sld [smem:[#allocation2 + $0x20]]
        %v2608 = vstv %s2607
        %v2609 = vmul.f32 %v2608, %v585
        %v2610 = vmul.f32 %v2608, %v584
        %v2611 = vmul.f32 %v2608, %v583
        %v2612 = vmul.f32 %v2608, %v582
        %v2613 = vmul.f32 %v2608, %v581
        %v2614 = vmul.f32 %v2608, %v580
        %v2615 = vmul.f32 %v2608, %v579
        %v2616 = vmul.f32 %v2608, %v578
        %v2617 = vmul.f32 %v2608, %v586
        %v2627 = vcombine.low %v2609, %v2610
        %v2628 = vcombine.low %v2611, %v2612
        %v2629 = vcombine.low %v2613, %v2614
        %v2630 = vcombine.low %v2615, %v2616
        %v2632 = vunpack.c.l.s4 1966171168
        %v2633 = vunpack.c.0.s8 %v2632
        %v2634 = vlaneseq
        %v2635 = vshrl.u32 %v2634, 7
        %v2636 = vsub.s32 %v2633, %v2635
        %v2637 = vrot.slane %v2627, %v2636
        %v2639 = vunpack.c.l.s4 1966171168
        %v2640 = vunpack.c.0.s8 %v2639
        %v2641 = vlaneseq
        %v2642 = vshrl.u32 %v2641, 7
        %v2643 = vsub.s32 %v2640, %v2642
        %v2644 = vrot.slane %v2628, %v2643
        %v2646 = vunpack.c.l.s4 1966171168
        %v2647 = vunpack.c.0.s8 %v2646
        %v2648 = vlaneseq
        %v2649 = vshrl.u32 %v2648, 7
        %v2650 = vsub.s32 %v2647, %v2649
        %v2651 = vrot.slane %v2629, %v2650
        %v2653 = vunpack.c.l.s4 1966171168
        %v2654 = vunpack.c.0.s8 %v2653
        %v2655 = vlaneseq
        %v2656 = vshrl.u32 %v2655, 7
        %v2657 = vsub.s32 %v2654, %v2656
        %v2658 = vrot.slane %v2630, %v2657
        %v2659 = vcombine.low %v2637, %v2644
        %v2660 = vcombine.low %v2651, %v2658
        %v2662 = vunpack.c.l.s4 1966171168
        %v2663 = vunpack.c.0.s8 %v2662
        %v2664 = vlaneseq
        %v2665 = vshrl.u32 %v2664, 7
        %v2666 = vsub.s32 %v2663, %v2665
        %v2667 = vrot.slane %v2659, %v2666
        %v2669 = vunpack.c.l.s4 1966171168
        %v2670 = vunpack.c.0.s8 %v2669
        %v2671 = vlaneseq
        %v2672 = vshrl.u32 %v2671, 7
        %v2673 = vsub.s32 %v2670, %v2672
        %v2674 = vrot.slane %v2660, %v2673
        %v2675 = vcombine.low %v2667, %v2674
        %v2677 = vunpack.c.l.s4 1966171168
        %v2678 = vunpack.c.0.s8 %v2677
        %v2679 = vlaneseq
        %v2680 = vshrl.u32 %v2679, 7
        %v2681 = vsub.s32 %v2678, %v2680
        %v2682 = vrot.slane %v2617, %v2681
        %v2684 = vunpack.c.l.s4 1966171168
        %v2685 = vunpack.c.0.s8 %v2684
        %v2686 = vlaneseq
        %v2687 = vshrl.u32 %v2686, 7
        %v2688 = vsub.s32 %v2685, %v2687
        %v2689 = vrot.slane %v2682, %v2688
        %v2692 = vadd.f32 %v2605, %v2675
        %v2693 = vadd.f32 %v2606, %v2689
        %s2694 = sld [smem:[#allocation2 + $0x21]]
        %v2695 = vstv %s2694
        %v2696 = vmul.f32 %v2695, %v588
        %v2697 = vmul.f32 %v2695, %v589
        %v2698 = vadd.f32 %v2692, %v2696
        %v2699 = vadd.f32 %v2693, %v2697
        %s2700 = sld [smem:[#allocation2 + $0x22]]
        %v2701 = vstv %s2700
        %v2702 = vmul.f32 %v2701, %v662
        %v2703 = vmul.f32 %v2701, %v661
        %v2704 = vmul.f32 %v2701, %v660
        %v2705 = vmul.f32 %v2701, %v659
        %v2706 = vmul.f32 %v2701, %v658
        %v2707 = vmul.f32 %v2701, %v657
        %v2708 = vmul.f32 %v2701, %v656
        %v2709 = vmul.f32 %v2701, %v655
        %v2710 = vmul.f32 %v2701, %v663
        %v2720 = vcombine.low %v2702, %v2703
        %v2721 = vcombine.low %v2704, %v2705
        %v2722 = vcombine.low %v2706, %v2707
        %v2723 = vcombine.low %v2708, %v2709
        %v2725 = vunpack.c.l.s4 1966171168
        %v2726 = vunpack.c.0.s8 %v2725
        %v2727 = vlaneseq
        %v2728 = vshrl.u32 %v2727, 7
        %v2729 = vsub.s32 %v2726, %v2728
        %v2730 = vrot.slane %v2720, %v2729
        %v2732 = vunpack.c.l.s4 1966171168
        %v2733 = vunpack.c.0.s8 %v2732
        %v2734 = vlaneseq
        %v2735 = vshrl.u32 %v2734, 7
        %v2736 = vsub.s32 %v2733, %v2735
        %v2737 = vrot.slane %v2721, %v2736
        %v2739 = vunpack.c.l.s4 1966171168
        %v2740 = vunpack.c.0.s8 %v2739
        %v2741 = vlaneseq
        %v2742 = vshrl.u32 %v2741, 7
        %v2743 = vsub.s32 %v2740, %v2742
        %v2744 = vrot.slane %v2722, %v2743
        %v2746 = vunpack.c.l.s4 1966171168
        %v2747 = vunpack.c.0.s8 %v2746
        %v2748 = vlaneseq
        %v2749 = vshrl.u32 %v2748, 7
        %v2750 = vsub.s32 %v2747, %v2749
        %v2751 = vrot.slane %v2723, %v2750
        %v2752 = vcombine.low %v2730, %v2737
        %v2753 = vcombine.low %v2744, %v2751
        %v2755 = vunpack.c.l.s4 1966171168
        %v2756 = vunpack.c.0.s8 %v2755
        %v2757 = vlaneseq
        %v2758 = vshrl.u32 %v2757, 7
        %v2759 = vsub.s32 %v2756, %v2758
        %v2760 = vrot.slane %v2752, %v2759
        %v2762 = vunpack.c.l.s4 1966171168
        %v2763 = vunpack.c.0.s8 %v2762
        %v2764 = vlaneseq
        %v2765 = vshrl.u32 %v2764, 7
        %v2766 = vsub.s32 %v2763, %v2765
        %v2767 = vrot.slane %v2753, %v2766
        %v2768 = vcombine.low %v2760, %v2767
        %v2770 = vunpack.c.l.s4 1966171168
        %v2771 = vunpack.c.0.s8 %v2770
        %v2772 = vlaneseq
        %v2773 = vshrl.u32 %v2772, 7
        %v2774 = vsub.s32 %v2771, %v2773
        %v2775 = vrot.slane %v2710, %v2774
        %v2777 = vunpack.c.l.s4 1966171168
        %v2778 = vunpack.c.0.s8 %v2777
        %v2779 = vlaneseq
        %v2780 = vshrl.u32 %v2779, 7
        %v2781 = vsub.s32 %v2778, %v2780
        %v2782 = vrot.slane %v2775, %v2781
        %v2785 = vadd.f32 %v2698, %v2768
        %v2786 = vadd.f32 %v2699, %v2782
        %s2787 = sld [smem:[#allocation2 + $0x23]]
        %v2788 = vstv %s2787
        %v2789 = vmul.f32 %v2788, %v689
        %v2790 = vmul.f32 %v2788, %v688
        %v2791 = vmul.f32 %v2788, %v687
        %v2792 = vmul.f32 %v2788, %v686
        %v2793 = vmul.f32 %v2788, %v685
        %v2794 = vmul.f32 %v2788, %v684
        %v2795 = vmul.f32 %v2788, %v683
        %v2796 = vmul.f32 %v2788, %v682
        %v2797 = vmul.f32 %v2788, %v690
        %v2807 = vcombine.low %v2789, %v2790
        %v2808 = vcombine.low %v2791, %v2792
        %v2809 = vcombine.low %v2793, %v2794
        %v2810 = vcombine.low %v2795, %v2796
        %v2812 = vunpack.c.l.s4 1966171168
        %v2813 = vunpack.c.0.s8 %v2812
        %v2814 = vlaneseq
        %v2815 = vshrl.u32 %v2814, 7
        %v2816 = vsub.s32 %v2813, %v2815
        %v2817 = vrot.slane %v2807, %v2816
        %v2819 = vunpack.c.l.s4 1966171168
        %v2820 = vunpack.c.0.s8 %v2819
        %v2821 = vlaneseq
        %v2822 = vshrl.u32 %v2821, 7
        %v2823 = vsub.s32 %v2820, %v2822
        %v2824 = vrot.slane %v2808, %v2823
        %v2826 = vunpack.c.l.s4 1966171168
        %v2827 = vunpack.c.0.s8 %v2826
        %v2828 = vlaneseq
        %v2829 = vshrl.u32 %v2828, 7
        %v2830 = vsub.s32 %v2827, %v2829
        %v2831 = vrot.slane %v2809, %v2830
        %v2833 = vunpack.c.l.s4 1966171168
        %v2834 = vunpack.c.0.s8 %v2833
        %v2835 = vlaneseq
        %v2836 = vshrl.u32 %v2835, 7
        %v2837 = vsub.s32 %v2834, %v2836
        %v2838 = vrot.slane %v2810, %v2837
        %v2839 = vcombine.low %v2817, %v2824
        %v2840 = vcombine.low %v2831, %v2838
        %v2842 = vunpack.c.l.s4 1966171168
        %v2843 = vunpack.c.0.s8 %v2842
        %v2844 = vlaneseq
        %v2845 = vshrl.u32 %v2844, 7
        %v2846 = vsub.s32 %v2843, %v2845
        %v2847 = vrot.slane %v2839, %v2846
        %v2849 = vunpack.c.l.s4 1966171168
        %v2850 = vunpack.c.0.s8 %v2849
        %v2851 = vlaneseq
        %v2852 = vshrl.u32 %v2851, 7
        %v2853 = vsub.s32 %v2850, %v2852
        %v2854 = vrot.slane %v2840, %v2853
        %v2855 = vcombine.low %v2847, %v2854
        %v2857 = vunpack.c.l.s4 1966171168
        %v2858 = vunpack.c.0.s8 %v2857
        %v2859 = vlaneseq
        %v2860 = vshrl.u32 %v2859, 7
        %v2861 = vsub.s32 %v2858, %v2860
        %v2862 = vrot.slane %v2797, %v2861
        %v2864 = vunpack.c.l.s4 1966171168
        %v2865 = vunpack.c.0.s8 %v2864
        %v2866 = vlaneseq
        %v2867 = vshrl.u32 %v2866, 7
        %v2868 = vsub.s32 %v2865, %v2867
        %v2869 = vrot.slane %v2862, %v2868
        %v2872 = vadd.f32 %v2785, %v2855
        %v2873 = vadd.f32 %v2786, %v2869
        %s2874 = sld [smem:[#allocation7 + $0x2]]
        %v2875 = vstv %s2874
        %v2876 = vmul.f32 %v2872, %v2875
        %v2877 = vmul.f32 %v2873, %v2875
        %s2878 = sld [smem:[#allocation8 + $0x2]]
        %v2879 = vstv %s2878
        %v2880 = vadd.f32 %v2876, %v2879
        %v2881 = vadd.f32 %v2877, %v2879
        %v2882 = vmax.f32 %v2880, 0.0
        %v2883 = vmax.f32 %v2881, 0.0
        %s2884 = scalar_lea.vmem %s271, 18 [#allocation11]
        %2885 = vst [vmem:[%s2884] sm:$0xff] %v2882
        %2886 = vst.msk [vmem:[%s2884 + $0x8] sm:$0x1] %vm1423, %v2883
        %s2887 = sld [smem:[#allocation2 + $0x24]]
        %v2888 = vstv %s2887
        %v2889 = vmul.f32 %v2888, %v272
        %v2890 = vmul.f32 %v2888, %v273
        %s2891 = sld [smem:[#allocation2 + $0x25]]
        %v2892 = vstv %s2891
        %v2893 = vmul.f32 %v2892, %v349
        %v2894 = vmul.f32 %v2892, %v348
        %v2895 = vmul.f32 %v2892, %v347
        %v2896 = vmul.f32 %v2892, %v346
        %v2897 = vmul.f32 %v2892, %v345
        %v2898 = vmul.f32 %v2892, %v344
        %v2899 = vmul.f32 %v2892, %v343
        %v2900 = vmul.f32 %v2892, %v342
        %v2901 = vmul.f32 %v2892, %v350
        %v2911 = vcombine.low %v2893, %v2894
        %v2912 = vcombine.low %v2895, %v2896
        %v2913 = vcombine.low %v2897, %v2898
        %v2914 = vcombine.low %v2899, %v2900
        %v2916 = vunpack.c.l.s4 1966171168
        %v2917 = vunpack.c.0.s8 %v2916
        %v2918 = vlaneseq
        %v2919 = vshrl.u32 %v2918, 7
        %v2920 = vsub.s32 %v2917, %v2919
        %v2921 = vrot.slane %v2911, %v2920
        %v2923 = vunpack.c.l.s4 1966171168
        %v2924 = vunpack.c.0.s8 %v2923
        %v2925 = vlaneseq
        %v2926 = vshrl.u32 %v2925, 7
        %v2927 = vsub.s32 %v2924, %v2926
        %v2928 = vrot.slane %v2912, %v2927
        %v2930 = vunpack.c.l.s4 1966171168
        %v2931 = vunpack.c.0.s8 %v2930
        %v2932 = vlaneseq
        %v2933 = vshrl.u32 %v2932, 7
        %v2934 = vsub.s32 %v2931, %v2933
        %v2935 = vrot.slane %v2913, %v2934
        %v2937 = vunpack.c.l.s4 1966171168
        %v2938 = vunpack.c.0.s8 %v2937
        %v2939 = vlaneseq
        %v2940 = vshrl.u32 %v2939, 7
        %v2941 = vsub.s32 %v2938, %v2940
        %v2942 = vrot.slane %v2914, %v2941
        %v2943 = vcombine.low %v2921, %v2928
        %v2944 = vcombine.low %v2935, %v2942
        %v2946 = vunpack.c.l.s4 1966171168
        %v2947 = vunpack.c.0.s8 %v2946
        %v2948 = vlaneseq
        %v2949 = vshrl.u32 %v2948, 7
        %v2950 = vsub.s32 %v2947, %v2949
        %v2951 = vrot.slane %v2943, %v2950
        %v2953 = vunpack.c.l.s4 1966171168
        %v2954 = vunpack.c.0.s8 %v2953
        %v2955 = vlaneseq
        %v2956 = vshrl.u32 %v2955, 7
        %v2957 = vsub.s32 %v2954, %v2956
        %v2958 = vrot.slane %v2944, %v2957
        %v2959 = vcombine.low %v2951, %v2958
        %v2961 = vunpack.c.l.s4 1966171168
        %v2962 = vunpack.c.0.s8 %v2961
        %v2963 = vlaneseq
        %v2964 = vshrl.u32 %v2963, 7
        %v2965 = vsub.s32 %v2962, %v2964
        %v2966 = vrot.slane %v2901, %v2965
        %v2968 = vunpack.c.l.s4 1966171168
        %v2969 = vunpack.c.0.s8 %v2968
        %v2970 = vlaneseq
        %v2971 = vshrl.u32 %v2970, 7
        %v2972 = vsub.s32 %v2969, %v2971
        %v2973 = vrot.slane %v2966, %v2972
        %v2976 = vadd.f32 %v2889, %v2959
        %v2977 = vadd.f32 %v2890, %v2973
        %s2978 = sld [smem:[#allocation2 + $0x26]]
        %v2979 = vstv %s2978
        %v2980 = vmul.f32 %v2979, %v377
        %v2981 = vmul.f32 %v2979, %v376
        %v2982 = vmul.f32 %v2979, %v375
        %v2983 = vmul.f32 %v2979, %v374
        %v2984 = vmul.f32 %v2979, %v373
        %v2985 = vmul.f32 %v2979, %v372
        %v2986 = vmul.f32 %v2979, %v371
        %v2987 = vmul.f32 %v2979, %v370
        %v2988 = vmul.f32 %v2979, %v378
        %v2998 = vcombine.low %v2980, %v2981
        %v2999 = vcombine.low %v2982, %v2983
        %v3000 = vcombine.low %v2984, %v2985
        %v3001 = vcombine.low %v2986, %v2987
        %v3003 = vunpack.c.l.s4 1966171168
        %v3004 = vunpack.c.0.s8 %v3003
        %v3005 = vlaneseq
        %v3006 = vshrl.u32 %v3005, 7
        %v3007 = vsub.s32 %v3004, %v3006
        %v3008 = vrot.slane %v2998, %v3007
        %v3010 = vunpack.c.l.s4 1966171168
        %v3011 = vunpack.c.0.s8 %v3010
        %v3012 = vlaneseq
        %v3013 = vshrl.u32 %v3012, 7
        %v3014 = vsub.s32 %v3011, %v3013
        %v3015 = vrot.slane %v2999, %v3014
        %v3017 = vunpack.c.l.s4 1966171168
        %v3018 = vunpack.c.0.s8 %v3017
        %v3019 = vlaneseq
        %v3020 = vshrl.u32 %v3019, 7
        %v3021 = vsub.s32 %v3018, %v3020
        %v3022 = vrot.slane %v3000, %v3021
        %v3024 = vunpack.c.l.s4 1966171168
        %v3025 = vunpack.c.0.s8 %v3024
        %v3026 = vlaneseq
        %v3027 = vshrl.u32 %v3026, 7
        %v3028 = vsub.s32 %v3025, %v3027
        %v3029 = vrot.slane %v3001, %v3028
        %v3030 = vcombine.low %v3008, %v3015
        %v3031 = vcombine.low %v3022, %v3029
        %v3033 = vunpack.c.l.s4 1966171168
        %v3034 = vunpack.c.0.s8 %v3033
        %v3035 = vlaneseq
        %v3036 = vshrl.u32 %v3035, 7
        %v3037 = vsub.s32 %v3034, %v3036
        %v3038 = vrot.slane %v3030, %v3037
        %v3040 = vunpack.c.l.s4 1966171168
        %v3041 = vunpack.c.0.s8 %v3040
        %v3042 = vlaneseq
        %v3043 = vshrl.u32 %v3042, 7
        %v3044 = vsub.s32 %v3041, %v3043
        %v3045 = vrot.slane %v3031, %v3044
        %v3046 = vcombine.low %v3038, %v3045
        %v3048 = vunpack.c.l.s4 1966171168
        %v3049 = vunpack.c.0.s8 %v3048
        %v3050 = vlaneseq
        %v3051 = vshrl.u32 %v3050, 7
        %v3052 = vsub.s32 %v3049, %v3051
        %v3053 = vrot.slane %v2988, %v3052
        %v3055 = vunpack.c.l.s4 1966171168
        %v3056 = vunpack.c.0.s8 %v3055
        %v3057 = vlaneseq
        %v3058 = vshrl.u32 %v3057, 7
        %v3059 = vsub.s32 %v3056, %v3058
        %v3060 = vrot.slane %v3053, %v3059
        %v3063 = vadd.f32 %v2976, %v3046
        %v3064 = vadd.f32 %v2977, %v3060
        %s3065 = sld [smem:[#allocation2 + $0x27]]
        %v3066 = vstv %s3065
        %v3067 = vmul.f32 %v3066, %v380
        %v3068 = vmul.f32 %v3066, %v381
        %v3069 = vadd.f32 %v3063, %v3067
        %v3070 = vadd.f32 %v3064, %v3068
        %s3071 = sld [smem:[#allocation2 + $0x28]]
        %v3072 = vstv %s3071
        %v3073 = vmul.f32 %v3072, %v454
        %v3074 = vmul.f32 %v3072, %v453
        %v3075 = vmul.f32 %v3072, %v452
        %v3076 = vmul.f32 %v3072, %v451
        %v3077 = vmul.f32 %v3072, %v450
        %v3078 = vmul.f32 %v3072, %v449
        %v3079 = vmul.f32 %v3072, %v448
        %v3080 = vmul.f32 %v3072, %v447
        %v3081 = vmul.f32 %v3072, %v455
        %v3091 = vcombine.low %v3073, %v3074
        %v3092 = vcombine.low %v3075, %v3076
        %v3093 = vcombine.low %v3077, %v3078
        %v3094 = vcombine.low %v3079, %v3080
        %v3096 = vunpack.c.l.s4 1966171168
        %v3097 = vunpack.c.0.s8 %v3096
        %v3098 = vlaneseq
        %v3099 = vshrl.u32 %v3098, 7
        %v3100 = vsub.s32 %v3097, %v3099
        %v3101 = vrot.slane %v3091, %v3100
        %v3103 = vunpack.c.l.s4 1966171168
        %v3104 = vunpack.c.0.s8 %v3103
        %v3105 = vlaneseq
        %v3106 = vshrl.u32 %v3105, 7
        %v3107 = vsub.s32 %v3104, %v3106
        %v3108 = vrot.slane %v3092, %v3107
        %v3110 = vunpack.c.l.s4 1966171168
        %v3111 = vunpack.c.0.s8 %v3110
        %v3112 = vlaneseq
        %v3113 = vshrl.u32 %v3112, 7
        %v3114 = vsub.s32 %v3111, %v3113
        %v3115 = vrot.slane %v3093, %v3114
        %v3117 = vunpack.c.l.s4 1966171168
        %v3118 = vunpack.c.0.s8 %v3117
        %v3119 = vlaneseq
        %v3120 = vshrl.u32 %v3119, 7
        %v3121 = vsub.s32 %v3118, %v3120
        %v3122 = vrot.slane %v3094, %v3121
        %v3123 = vcombine.low %v3101, %v3108
        %v3124 = vcombine.low %v3115, %v3122
        %v3126 = vunpack.c.l.s4 1966171168
        %v3127 = vunpack.c.0.s8 %v3126
        %v3128 = vlaneseq
        %v3129 = vshrl.u32 %v3128, 7
        %v3130 = vsub.s32 %v3127, %v3129
        %v3131 = vrot.slane %v3123, %v3130
        %v3133 = vunpack.c.l.s4 1966171168
        %v3134 = vunpack.c.0.s8 %v3133
        %v3135 = vlaneseq
        %v3136 = vshrl.u32 %v3135, 7
        %v3137 = vsub.s32 %v3134, %v3136
        %v3138 = vrot.slane %v3124, %v3137
        %v3139 = vcombine.low %v3131, %v3138
        %v3141 = vunpack.c.l.s4 1966171168
        %v3142 = vunpack.c.0.s8 %v3141
        %v3143 = vlaneseq
        %v3144 = vshrl.u32 %v3143, 7
        %v3145 = vsub.s32 %v3142, %v3144
        %v3146 = vrot.slane %v3081, %v3145
        %v3148 = vunpack.c.l.s4 1966171168
        %v3149 = vunpack.c.0.s8 %v3148
        %v3150 = vlaneseq
        %v3151 = vshrl.u32 %v3150, 7
        %v3152 = vsub.s32 %v3149, %v3151
        %v3153 = vrot.slane %v3146, %v3152
        %v3156 = vadd.f32 %v3069, %v3139
        %v3157 = vadd.f32 %v3070, %v3153
        %s3158 = sld [smem:[#allocation2 + $0x29]]
        %v3159 = vstv %s3158
        %v3160 = vmul.f32 %v3159, %v481
        %v3161 = vmul.f32 %v3159, %v480
        %v3162 = vmul.f32 %v3159, %v479
        %v3163 = vmul.f32 %v3159, %v478
        %v3164 = vmul.f32 %v3159, %v477
        %v3165 = vmul.f32 %v3159, %v476
        %v3166 = vmul.f32 %v3159, %v475
        %v3167 = vmul.f32 %v3159, %v474
        %v3168 = vmul.f32 %v3159, %v482
        %v3178 = vcombine.low %v3160, %v3161
        %v3179 = vcombine.low %v3162, %v3163
        %v3180 = vcombine.low %v3164, %v3165
        %v3181 = vcombine.low %v3166, %v3167
        %v3183 = vunpack.c.l.s4 1966171168
        %v3184 = vunpack.c.0.s8 %v3183
        %v3185 = vlaneseq
        %v3186 = vshrl.u32 %v3185, 7
        %v3187 = vsub.s32 %v3184, %v3186
        %v3188 = vrot.slane %v3178, %v3187
        %v3190 = vunpack.c.l.s4 1966171168
        %v3191 = vunpack.c.0.s8 %v3190
        %v3192 = vlaneseq
        %v3193 = vshrl.u32 %v3192, 7
        %v3194 = vsub.s32 %v3191, %v3193
        %v3195 = vrot.slane %v3179, %v3194
        %v3197 = vunpack.c.l.s4 1966171168
        %v3198 = vunpack.c.0.s8 %v3197
        %v3199 = vlaneseq
        %v3200 = vshrl.u32 %v3199, 7
        %v3201 = vsub.s32 %v3198, %v3200
        %v3202 = vrot.slane %v3180, %v3201
        %v3204 = vunpack.c.l.s4 1966171168
        %v3205 = vunpack.c.0.s8 %v3204
        %v3206 = vlaneseq
        %v3207 = vshrl.u32 %v3206, 7
        %v3208 = vsub.s32 %v3205, %v3207
        %v3209 = vrot.slane %v3181, %v3208
        %v3210 = vcombine.low %v3188, %v3195
        %v3211 = vcombine.low %v3202, %v3209
        %v3213 = vunpack.c.l.s4 1966171168
        %v3214 = vunpack.c.0.s8 %v3213
        %v3215 = vlaneseq
        %v3216 = vshrl.u32 %v3215, 7
        %v3217 = vsub.s32 %v3214, %v3216
        %v3218 = vrot.slane %v3210, %v3217
        %v3220 = vunpack.c.l.s4 1966171168
        %v3221 = vunpack.c.0.s8 %v3220
        %v3222 = vlaneseq
        %v3223 = vshrl.u32 %v3222, 7
        %v3224 = vsub.s32 %v3221, %v3223
        %v3225 = vrot.slane %v3211, %v3224
        %v3226 = vcombine.low %v3218, %v3225
        %v3228 = vunpack.c.l.s4 1966171168
        %v3229 = vunpack.c.0.s8 %v3228
        %v3230 = vlaneseq
        %v3231 = vshrl.u32 %v3230, 7
        %v3232 = vsub.s32 %v3229, %v3231
        %v3233 = vrot.slane %v3168, %v3232
        %v3235 = vunpack.c.l.s4 1966171168
        %v3236 = vunpack.c.0.s8 %v3235
        %v3237 = vlaneseq
        %v3238 = vshrl.u32 %v3237, 7
        %v3239 = vsub.s32 %v3236, %v3238
        %v3240 = vrot.slane %v3233, %v3239
        %v3243 = vadd.f32 %v3156, %v3226
        %v3244 = vadd.f32 %v3157, %v3240
        %s3245 = sld [smem:[#allocation2 + $0x2a]]
        %v3246 = vstv %s3245
        %v3247 = vmul.f32 %v3246, %v484
        %v3248 = vmul.f32 %v3246, %v485
        %v3249 = vadd.f32 %v3243, %v3247
        %v3250 = vadd.f32 %v3244, %v3248
        %s3251 = sld [smem:[#allocation2 + $0x2b]]
        %v3252 = vstv %s3251
        %v3253 = vmul.f32 %v3252, %v558
        %v3254 = vmul.f32 %v3252, %v557
        %v3255 = vmul.f32 %v3252, %v556
        %v3256 = vmul.f32 %v3252, %v555
        %v3257 = vmul.f32 %v3252, %v554
        %v3258 = vmul.f32 %v3252, %v553
        %v3259 = vmul.f32 %v3252, %v552
        %v3260 = vmul.f32 %v3252, %v551
        %v3261 = vmul.f32 %v3252, %v559
        %v3271 = vcombine.low %v3253, %v3254
        %v3272 = vcombine.low %v3255, %v3256
        %v3273 = vcombine.low %v3257, %v3258
        %v3274 = vcombine.low %v3259, %v3260
        %v3276 = vunpack.c.l.s4 1966171168
        %v3277 = vunpack.c.0.s8 %v3276
        %v3278 = vlaneseq
        %v3279 = vshrl.u32 %v3278, 7
        %v3280 = vsub.s32 %v3277, %v3279
        %v3281 = vrot.slane %v3271, %v3280
        %v3283 = vunpack.c.l.s4 1966171168
        %v3284 = vunpack.c.0.s8 %v3283
        %v3285 = vlaneseq
        %v3286 = vshrl.u32 %v3285, 7
        %v3287 = vsub.s32 %v3284, %v3286
        %v3288 = vrot.slane %v3272, %v3287
        %v3290 = vunpack.c.l.s4 1966171168
        %v3291 = vunpack.c.0.s8 %v3290
        %v3292 = vlaneseq
        %v3293 = vshrl.u32 %v3292, 7
        %v3294 = vsub.s32 %v3291, %v3293
        %v3295 = vrot.slane %v3273, %v3294
        %v3297 = vunpack.c.l.s4 1966171168
        %v3298 = vunpack.c.0.s8 %v3297
        %v3299 = vlaneseq
        %v3300 = vshrl.u32 %v3299, 7
        %v3301 = vsub.s32 %v3298, %v3300
        %v3302 = vrot.slane %v3274, %v3301
        %v3303 = vcombine.low %v3281, %v3288
        %v3304 = vcombine.low %v3295, %v3302
        %v3306 = vunpack.c.l.s4 1966171168
        %v3307 = vunpack.c.0.s8 %v3306
        %v3308 = vlaneseq
        %v3309 = vshrl.u32 %v3308, 7
        %v3310 = vsub.s32 %v3307, %v3309
        %v3311 = vrot.slane %v3303, %v3310
        %v3313 = vunpack.c.l.s4 1966171168
        %v3314 = vunpack.c.0.s8 %v3313
        %v3315 = vlaneseq
        %v3316 = vshrl.u32 %v3315, 7
        %v3317 = vsub.s32 %v3314, %v3316
        %v3318 = vrot.slane %v3304, %v3317
        %v3319 = vcombine.low %v3311, %v3318
        %v3321 = vunpack.c.l.s4 1966171168
        %v3322 = vunpack.c.0.s8 %v3321
        %v3323 = vlaneseq
        %v3324 = vshrl.u32 %v3323, 7
        %v3325 = vsub.s32 %v3322, %v3324
        %v3326 = vrot.slane %v3261, %v3325
        %v3328 = vunpack.c.l.s4 1966171168
        %v3329 = vunpack.c.0.s8 %v3328
        %v3330 = vlaneseq
        %v3331 = vshrl.u32 %v3330, 7
        %v3332 = vsub.s32 %v3329, %v3331
        %v3333 = vrot.slane %v3326, %v3332
        %v3336 = vadd.f32 %v3249, %v3319
        %v3337 = vadd.f32 %v3250, %v3333
        %s3338 = sld [smem:[#allocation2 + $0x2c]]
        %v3339 = vstv %s3338
        %v3340 = vmul.f32 %v3339, %v585
        %v3341 = vmul.f32 %v3339, %v584
        %v3342 = vmul.f32 %v3339, %v583
        %v3343 = vmul.f32 %v3339, %v582
        %v3344 = vmul.f32 %v3339, %v581
        %v3345 = vmul.f32 %v3339, %v580
        %v3346 = vmul.f32 %v3339, %v579
        %v3347 = vmul.f32 %v3339, %v578
        %v3348 = vmul.f32 %v3339, %v586
        %v3358 = vcombine.low %v3340, %v3341
        %v3359 = vcombine.low %v3342, %v3343
        %v3360 = vcombine.low %v3344, %v3345
        %v3361 = vcombine.low %v3346, %v3347
        %v3363 = vunpack.c.l.s4 1966171168
        %v3364 = vunpack.c.0.s8 %v3363
        %v3365 = vlaneseq
        %v3366 = vshrl.u32 %v3365, 7
        %v3367 = vsub.s32 %v3364, %v3366
        %v3368 = vrot.slane %v3358, %v3367
        %v3370 = vunpack.c.l.s4 1966171168
        %v3371 = vunpack.c.0.s8 %v3370
        %v3372 = vlaneseq
        %v3373 = vshrl.u32 %v3372, 7
        %v3374 = vsub.s32 %v3371, %v3373
        %v3375 = vrot.slane %v3359, %v3374
        %v3377 = vunpack.c.l.s4 1966171168
        %v3378 = vunpack.c.0.s8 %v3377
        %v3379 = vlaneseq
        %v3380 = vshrl.u32 %v3379, 7
        %v3381 = vsub.s32 %v3378, %v3380
        %v3382 = vrot.slane %v3360, %v3381
        %v3384 = vunpack.c.l.s4 1966171168
        %v3385 = vunpack.c.0.s8 %v3384
        %v3386 = vlaneseq
        %v3387 = vshrl.u32 %v3386, 7
        %v3388 = vsub.s32 %v3385, %v3387
        %v3389 = vrot.slane %v3361, %v3388
        %v3390 = vcombine.low %v3368, %v3375
        %v3391 = vcombine.low %v3382, %v3389
        %v3393 = vunpack.c.l.s4 1966171168
        %v3394 = vunpack.c.0.s8 %v3393
        %v3395 = vlaneseq
        %v3396 = vshrl.u32 %v3395, 7
        %v3397 = vsub.s32 %v3394, %v3396
        %v3398 = vrot.slane %v3390, %v3397
        %v3400 = vunpack.c.l.s4 1966171168
        %v3401 = vunpack.c.0.s8 %v3400
        %v3402 = vlaneseq
        %v3403 = vshrl.u32 %v3402, 7
        %v3404 = vsub.s32 %v3401, %v3403
        %v3405 = vrot.slane %v3391, %v3404
        %v3406 = vcombine.low %v3398, %v3405
        %v3408 = vunpack.c.l.s4 1966171168
        %v3409 = vunpack.c.0.s8 %v3408
        %v3410 = vlaneseq
        %v3411 = vshrl.u32 %v3410, 7
        %v3412 = vsub.s32 %v3409, %v3411
        %v3413 = vrot.slane %v3348, %v3412
        %v3415 = vunpack.c.l.s4 1966171168
        %v3416 = vunpack.c.0.s8 %v3415
        %v3417 = vlaneseq
        %v3418 = vshrl.u32 %v3417, 7
        %v3419 = vsub.s32 %v3416, %v3418
        %v3420 = vrot.slane %v3413, %v3419
        %v3423 = vadd.f32 %v3336, %v3406
        %v3424 = vadd.f32 %v3337, %v3420
        %s3425 = sld [smem:[#allocation2 + $0x2d]]
        %v3426 = vstv %s3425
        %v3427 = vmul.f32 %v3426, %v588
        %v3428 = vmul.f32 %v3426, %v589
        %v3429 = vadd.f32 %v3423, %v3427
        %v3430 = vadd.f32 %v3424, %v3428
        %s3431 = sld [smem:[#allocation2 + $0x2e]]
        %v3432 = vstv %s3431
        %v3433 = vmul.f32 %v3432, %v662
        %v3434 = vmul.f32 %v3432, %v661
        %v3435 = vmul.f32 %v3432, %v660
        %v3436 = vmul.f32 %v3432, %v659
        %v3437 = vmul.f32 %v3432, %v658
        %v3438 = vmul.f32 %v3432, %v657
        %v3439 = vmul.f32 %v3432, %v656
        %v3440 = vmul.f32 %v3432, %v655
        %v3441 = vmul.f32 %v3432, %v663
        %v3451 = vcombine.low %v3433, %v3434
        %v3452 = vcombine.low %v3435, %v3436
        %v3453 = vcombine.low %v3437, %v3438
        %v3454 = vcombine.low %v3439, %v3440
        %v3456 = vunpack.c.l.s4 1966171168
        %v3457 = vunpack.c.0.s8 %v3456
        %v3458 = vlaneseq
        %v3459 = vshrl.u32 %v3458, 7
        %v3460 = vsub.s32 %v3457, %v3459
        %v3461 = vrot.slane %v3451, %v3460
        %v3463 = vunpack.c.l.s4 1966171168
        %v3464 = vunpack.c.0.s8 %v3463
        %v3465 = vlaneseq
        %v3466 = vshrl.u32 %v3465, 7
        %v3467 = vsub.s32 %v3464, %v3466
        %v3468 = vrot.slane %v3452, %v3467
        %v3470 = vunpack.c.l.s4 1966171168
        %v3471 = vunpack.c.0.s8 %v3470
        %v3472 = vlaneseq
        %v3473 = vshrl.u32 %v3472, 7
        %v3474 = vsub.s32 %v3471, %v3473
        %v3475 = vrot.slane %v3453, %v3474
        %v3477 = vunpack.c.l.s4 1966171168
        %v3478 = vunpack.c.0.s8 %v3477
        %v3479 = vlaneseq
        %v3480 = vshrl.u32 %v3479, 7
        %v3481 = vsub.s32 %v3478, %v3480
        %v3482 = vrot.slane %v3454, %v3481
        %v3483 = vcombine.low %v3461, %v3468
        %v3484 = vcombine.low %v3475, %v3482
        %v3486 = vunpack.c.l.s4 1966171168
        %v3487 = vunpack.c.0.s8 %v3486
        %v3488 = vlaneseq
        %v3489 = vshrl.u32 %v3488, 7
        %v3490 = vsub.s32 %v3487, %v3489
        %v3491 = vrot.slane %v3483, %v3490
        %v3493 = vunpack.c.l.s4 1966171168
        %v3494 = vunpack.c.0.s8 %v3493
        %v3495 = vlaneseq
        %v3496 = vshrl.u32 %v3495, 7
        %v3497 = vsub.s32 %v3494, %v3496
        %v3498 = vrot.slane %v3484, %v3497
        %v3499 = vcombine.low %v3491, %v3498
        %v3501 = vunpack.c.l.s4 1966171168
        %v3502 = vunpack.c.0.s8 %v3501
        %v3503 = vlaneseq
        %v3504 = vshrl.u32 %v3503, 7
        %v3505 = vsub.s32 %v3502, %v3504
        %v3506 = vrot.slane %v3441, %v3505
        %v3508 = vunpack.c.l.s4 1966171168
        %v3509 = vunpack.c.0.s8 %v3508
        %v3510 = vlaneseq
        %v3511 = vshrl.u32 %v3510, 7
        %v3512 = vsub.s32 %v3509, %v3511
        %v3513 = vrot.slane %v3506, %v3512
        %v3516 = vadd.f32 %v3429, %v3499
        %v3517 = vadd.f32 %v3430, %v3513
        %s3518 = sld [smem:[#allocation2 + $0x2f]]
        %v3519 = vstv %s3518
        %v3520 = vmul.f32 %v3519, %v689
        %v3521 = vmul.f32 %v3519, %v688
        %v3522 = vmul.f32 %v3519, %v687
        %v3523 = vmul.f32 %v3519, %v686
        %v3524 = vmul.f32 %v3519, %v685
        %v3525 = vmul.f32 %v3519, %v684
        %v3526 = vmul.f32 %v3519, %v683
        %v3527 = vmul.f32 %v3519, %v682
        %v3528 = vmul.f32 %v3519, %v690
        %v3538 = vcombine.low %v3520, %v3521
        %v3539 = vcombine.low %v3522, %v3523
        %v3540 = vcombine.low %v3524, %v3525
        %v3541 = vcombine.low %v3526, %v3527
        %v3543 = vunpack.c.l.s4 1966171168
        %v3544 = vunpack.c.0.s8 %v3543
        %v3545 = vlaneseq
        %v3546 = vshrl.u32 %v3545, 7
        %v3547 = vsub.s32 %v3544, %v3546
        %v3548 = vrot.slane %v3538, %v3547
        %v3550 = vunpack.c.l.s4 1966171168
        %v3551 = vunpack.c.0.s8 %v3550
        %v3552 = vlaneseq
        %v3553 = vshrl.u32 %v3552, 7
        %v3554 = vsub.s32 %v3551, %v3553
        %v3555 = vrot.slane %v3539, %v3554
        %v3557 = vunpack.c.l.s4 1966171168
        %v3558 = vunpack.c.0.s8 %v3557
        %v3559 = vlaneseq
        %v3560 = vshrl.u32 %v3559, 7
        %v3561 = vsub.s32 %v3558, %v3560
        %v3562 = vrot.slane %v3540, %v3561
        %v3564 = vunpack.c.l.s4 1966171168
        %v3565 = vunpack.c.0.s8 %v3564
        %v3566 = vlaneseq
        %v3567 = vshrl.u32 %v3566, 7
        %v3568 = vsub.s32 %v3565, %v3567
        %v3569 = vrot.slane %v3541, %v3568
        %v3570 = vcombine.low %v3548, %v3555
        %v3571 = vcombine.low %v3562, %v3569
        %v3573 = vunpack.c.l.s4 1966171168
        %v3574 = vunpack.c.0.s8 %v3573
        %v3575 = vlaneseq
        %v3576 = vshrl.u32 %v3575, 7
        %v3577 = vsub.s32 %v3574, %v3576
        %v3578 = vrot.slane %v3570, %v3577
        %v3580 = vunpack.c.l.s4 1966171168
        %v3581 = vunpack.c.0.s8 %v3580
        %v3582 = vlaneseq
        %v3583 = vshrl.u32 %v3582, 7
        %v3584 = vsub.s32 %v3581, %v3583
        %v3585 = vrot.slane %v3571, %v3584
        %v3586 = vcombine.low %v3578, %v3585
        %v3588 = vunpack.c.l.s4 1966171168
        %v3589 = vunpack.c.0.s8 %v3588
        %v3590 = vlaneseq
        %v3591 = vshrl.u32 %v3590, 7
        %v3592 = vsub.s32 %v3589, %v3591
        %v3593 = vrot.slane %v3528, %v3592
        %v3595 = vunpack.c.l.s4 1966171168
        %v3596 = vunpack.c.0.s8 %v3595
        %v3597 = vlaneseq
        %v3598 = vshrl.u32 %v3597, 7
        %v3599 = vsub.s32 %v3596, %v3598
        %v3600 = vrot.slane %v3593, %v3599
        %v3603 = vadd.f32 %v3516, %v3586
        %v3604 = vadd.f32 %v3517, %v3600
        %s3605 = sld [smem:[#allocation7 + $0x3]]
        %v3606 = vstv %s3605
        %v3607 = vmul.f32 %v3603, %v3606
        %v3608 = vmul.f32 %v3604, %v3606
        %s3609 = sld [smem:[#allocation8 + $0x3]]
        %v3610 = vstv %s3609
        %v3611 = vadd.f32 %v3607, %v3610
        %v3612 = vadd.f32 %v3608, %v3610
        %v3613 = vmax.f32 %v3611, 0.0
        %v3614 = vmax.f32 %v3612, 0.0
        %s3615 = scalar_lea.vmem %s271, 27 [#allocation11]
        %3616 = vst [vmem:[%s3615] sm:$0xff] %v3613
        %3617 = vst.msk [vmem:[%s3615 + $0x8] sm:$0x1] %vm1423, %v3614
        %s3618 = sld [smem:[#allocation2 + $0x30]]
        %v3619 = vstv %s3618
        %v3620 = vmul.f32 %v3619, %v272
        %v3621 = vmul.f32 %v3619, %v273
        %s3622 = sld [smem:[#allocation2 + $0x31]]
        %v3623 = vstv %s3622
        %v3624 = vmul.f32 %v3623, %v349
        %v3625 = vmul.f32 %v3623, %v348
        %v3626 = vmul.f32 %v3623, %v347
        %v3627 = vmul.f32 %v3623, %v346
        %v3628 = vmul.f32 %v3623, %v345
        %v3629 = vmul.f32 %v3623, %v344
        %v3630 = vmul.f32 %v3623, %v343
        %v3631 = vmul.f32 %v3623, %v342
        %v3632 = vmul.f32 %v3623, %v350
        %v3642 = vcombine.low %v3624, %v3625
        %v3643 = vcombine.low %v3626, %v3627
        %v3644 = vcombine.low %v3628, %v3629
        %v3645 = vcombine.low %v3630, %v3631
        %v3647 = vunpack.c.l.s4 1966171168
        %v3648 = vunpack.c.0.s8 %v3647
        %v3649 = vlaneseq
        %v3650 = vshrl.u32 %v3649, 7
        %v3651 = vsub.s32 %v3648, %v3650
        %v3652 = vrot.slane %v3642, %v3651
        %v3654 = vunpack.c.l.s4 1966171168
        %v3655 = vunpack.c.0.s8 %v3654
        %v3656 = vlaneseq
        %v3657 = vshrl.u32 %v3656, 7
        %v3658 = vsub.s32 %v3655, %v3657
        %v3659 = vrot.slane %v3643, %v3658
        %v3661 = vunpack.c.l.s4 1966171168
        %v3662 = vunpack.c.0.s8 %v3661
        %v3663 = vlaneseq
        %v3664 = vshrl.u32 %v3663, 7
        %v3665 = vsub.s32 %v3662, %v3664
        %v3666 = vrot.slane %v3644, %v3665
        %v3668 = vunpack.c.l.s4 1966171168
        %v3669 = vunpack.c.0.s8 %v3668
        %v3670 = vlaneseq
        %v3671 = vshrl.u32 %v3670, 7
        %v3672 = vsub.s32 %v3669, %v3671
        %v3673 = vrot.slane %v3645, %v3672
        %v3674 = vcombine.low %v3652, %v3659
        %v3675 = vcombine.low %v3666, %v3673
        %v3677 = vunpack.c.l.s4 1966171168
        %v3678 = vunpack.c.0.s8 %v3677
        %v3679 = vlaneseq
        %v3680 = vshrl.u32 %v3679, 7
        %v3681 = vsub.s32 %v3678, %v3680
        %v3682 = vrot.slane %v3674, %v3681
        %v3684 = vunpack.c.l.s4 1966171168
        %v3685 = vunpack.c.0.s8 %v3684
        %v3686 = vlaneseq
        %v3687 = vshrl.u32 %v3686, 7
        %v3688 = vsub.s32 %v3685, %v3687
        %v3689 = vrot.slane %v3675, %v3688
        %v3690 = vcombine.low %v3682, %v3689
        %v3692 = vunpack.c.l.s4 1966171168
        %v3693 = vunpack.c.0.s8 %v3692
        %v3694 = vlaneseq
        %v3695 = vshrl.u32 %v3694, 7
        %v3696 = vsub.s32 %v3693, %v3695
        %v3697 = vrot.slane %v3632, %v3696
        %v3699 = vunpack.c.l.s4 1966171168
        %v3700 = vunpack.c.0.s8 %v3699
        %v3701 = vlaneseq
        %v3702 = vshrl.u32 %v3701, 7
        %v3703 = vsub.s32 %v3700, %v3702
        %v3704 = vrot.slane %v3697, %v3703
        %v3707 = vadd.f32 %v3620, %v3690
        %v3708 = vadd.f32 %v3621, %v3704
        %s3709 = sld [smem:[#allocation2 + $0x32]]
        %v3710 = vstv %s3709
        %v3711 = vmul.f32 %v3710, %v377
        %v3712 = vmul.f32 %v3710, %v376
        %v3713 = vmul.f32 %v3710, %v375
        %v3714 = vmul.f32 %v3710, %v374
        %v3715 = vmul.f32 %v3710, %v373
        %v3716 = vmul.f32 %v3710, %v372
        %v3717 = vmul.f32 %v3710, %v371
        %v3718 = vmul.f32 %v3710, %v370
        %v3719 = vmul.f32 %v3710, %v378
        %v3729 = vcombine.low %v3711, %v3712
        %v3730 = vcombine.low %v3713, %v3714
        %v3731 = vcombine.low %v3715, %v3716
        %v3732 = vcombine.low %v3717, %v3718
        %v3734 = vunpack.c.l.s4 1966171168
        %v3735 = vunpack.c.0.s8 %v3734
        %v3736 = vlaneseq
        %v3737 = vshrl.u32 %v3736, 7
        %v3738 = vsub.s32 %v3735, %v3737
        %v3739 = vrot.slane %v3729, %v3738
        %v3741 = vunpack.c.l.s4 1966171168
        %v3742 = vunpack.c.0.s8 %v3741
        %v3743 = vlaneseq
        %v3744 = vshrl.u32 %v3743, 7
        %v3745 = vsub.s32 %v3742, %v3744
        %v3746 = vrot.slane %v3730, %v3745
        %v3748 = vunpack.c.l.s4 1966171168
        %v3749 = vunpack.c.0.s8 %v3748
        %v3750 = vlaneseq
        %v3751 = vshrl.u32 %v3750, 7
        %v3752 = vsub.s32 %v3749, %v3751
        %v3753 = vrot.slane %v3731, %v3752
        %v3755 = vunpack.c.l.s4 1966171168
        %v3756 = vunpack.c.0.s8 %v3755
        %v3757 = vlaneseq
        %v3758 = vshrl.u32 %v3757, 7
        %v3759 = vsub.s32 %v3756, %v3758
        %v3760 = vrot.slane %v3732, %v3759
        %v3761 = vcombine.low %v3739, %v3746
        %v3762 = vcombine.low %v3753, %v3760
        %v3764 = vunpack.c.l.s4 1966171168
        %v3765 = vunpack.c.0.s8 %v3764
        %v3766 = vlaneseq
        %v3767 = vshrl.u32 %v3766, 7
        %v3768 = vsub.s32 %v3765, %v3767
        %v3769 = vrot.slane %v3761, %v3768
        %v3771 = vunpack.c.l.s4 1966171168
        %v3772 = vunpack.c.0.s8 %v3771
        %v3773 = vlaneseq
        %v3774 = vshrl.u32 %v3773, 7
        %v3775 = vsub.s32 %v3772, %v3774
        %v3776 = vrot.slane %v3762, %v3775
        %v3777 = vcombine.low %v3769, %v3776
        %v3779 = vunpack.c.l.s4 1966171168
        %v3780 = vunpack.c.0.s8 %v3779
        %v3781 = vlaneseq
        %v3782 = vshrl.u32 %v3781, 7
        %v3783 = vsub.s32 %v3780, %v3782
        %v3784 = vrot.slane %v3719, %v3783
        %v3786 = vunpack.c.l.s4 1966171168
        %v3787 = vunpack.c.0.s8 %v3786
        %v3788 = vlaneseq
        %v3789 = vshrl.u32 %v3788, 7
        %v3790 = vsub.s32 %v3787, %v3789
        %v3791 = vrot.slane %v3784, %v3790
        %v3794 = vadd.f32 %v3707, %v3777
        %v3795 = vadd.f32 %v3708, %v3791
        %s3796 = sld [smem:[#allocation2 + $0x33]]
        %v3797 = vstv %s3796
        %v3798 = vmul.f32 %v3797, %v380
        %v3799 = vmul.f32 %v3797, %v381
        %v3800 = vadd.f32 %v3794, %v3798
        %v3801 = vadd.f32 %v3795, %v3799
        %s3802 = sld [smem:[#allocation2 + $0x34]]
        %v3803 = vstv %s3802
        %v3804 = vmul.f32 %v3803, %v454
        %v3805 = vmul.f32 %v3803, %v453
        %v3806 = vmul.f32 %v3803, %v452
        %v3807 = vmul.f32 %v3803, %v451
        %v3808 = vmul.f32 %v3803, %v450
        %v3809 = vmul.f32 %v3803, %v449
        %v3810 = vmul.f32 %v3803, %v448
        %v3811 = vmul.f32 %v3803, %v447
        %v3812 = vmul.f32 %v3803, %v455
        %v3822 = vcombine.low %v3804, %v3805
        %v3823 = vcombine.low %v3806, %v3807
        %v3824 = vcombine.low %v3808, %v3809
        %v3825 = vcombine.low %v3810, %v3811
        %v3827 = vunpack.c.l.s4 1966171168
        %v3828 = vunpack.c.0.s8 %v3827
        %v3829 = vlaneseq
        %v3830 = vshrl.u32 %v3829, 7
        %v3831 = vsub.s32 %v3828, %v3830
        %v3832 = vrot.slane %v3822, %v3831
        %v3834 = vunpack.c.l.s4 1966171168
        %v3835 = vunpack.c.0.s8 %v3834
        %v3836 = vlaneseq
        %v3837 = vshrl.u32 %v3836, 7
        %v3838 = vsub.s32 %v3835, %v3837
        %v3839 = vrot.slane %v3823, %v3838
        %v3841 = vunpack.c.l.s4 1966171168
        %v3842 = vunpack.c.0.s8 %v3841
        %v3843 = vlaneseq
        %v3844 = vshrl.u32 %v3843, 7
        %v3845 = vsub.s32 %v3842, %v3844
        %v3846 = vrot.slane %v3824, %v3845
        %v3848 = vunpack.c.l.s4 1966171168
        %v3849 = vunpack.c.0.s8 %v3848
        %v3850 = vlaneseq
        %v3851 = vshrl.u32 %v3850, 7
        %v3852 = vsub.s32 %v3849, %v3851
        %v3853 = vrot.slane %v3825, %v3852
        %v3854 = vcombine.low %v3832, %v3839
        %v3855 = vcombine.low %v3846, %v3853
        %v3857 = vunpack.c.l.s4 1966171168
        %v3858 = vunpack.c.0.s8 %v3857
        %v3859 = vlaneseq
        %v3860 = vshrl.u32 %v3859, 7
        %v3861 = vsub.s32 %v3858, %v3860
        %v3862 = vrot.slane %v3854, %v3861
        %v3864 = vunpack.c.l.s4 1966171168
        %v3865 = vunpack.c.0.s8 %v3864
        %v3866 = vlaneseq
        %v3867 = vshrl.u32 %v3866, 7
        %v3868 = vsub.s32 %v3865, %v3867
        %v3869 = vrot.slane %v3855, %v3868
        %v3870 = vcombine.low %v3862, %v3869
        %v3872 = vunpack.c.l.s4 1966171168
        %v3873 = vunpack.c.0.s8 %v3872
        %v3874 = vlaneseq
        %v3875 = vshrl.u32 %v3874, 7
        %v3876 = vsub.s32 %v3873, %v3875
        %v3877 = vrot.slane %v3812, %v3876
        %v3879 = vunpack.c.l.s4 1966171168
        %v3880 = vunpack.c.0.s8 %v3879
        %v3881 = vlaneseq
        %v3882 = vshrl.u32 %v3881, 7
        %v3883 = vsub.s32 %v3880, %v3882
        %v3884 = vrot.slane %v3877, %v3883
        %v3887 = vadd.f32 %v3800, %v3870
        %v3888 = vadd.f32 %v3801, %v3884
        %s3889 = sld [smem:[#allocation2 + $0x35]]
        %v3890 = vstv %s3889
        %v3891 = vmul.f32 %v3890, %v481
        %v3892 = vmul.f32 %v3890, %v480
        %v3893 = vmul.f32 %v3890, %v479
        %v3894 = vmul.f32 %v3890, %v478
        %v3895 = vmul.f32 %v3890, %v477
        %v3896 = vmul.f32 %v3890, %v476
        %v3897 = vmul.f32 %v3890, %v475
        %v3898 = vmul.f32 %v3890, %v474
        %v3899 = vmul.f32 %v3890, %v482
        %v3909 = vcombine.low %v3891, %v3892
        %v3910 = vcombine.low %v3893, %v3894
        %v3911 = vcombine.low %v3895, %v3896
        %v3912 = vcombine.low %v3897, %v3898
        %v3914 = vunpack.c.l.s4 1966171168
        %v3915 = vunpack.c.0.s8 %v3914
        %v3916 = vlaneseq
        %v3917 = vshrl.u32 %v3916, 7
        %v3918 = vsub.s32 %v3915, %v3917
        %v3919 = vrot.slane %v3909, %v3918
        %v3921 = vunpack.c.l.s4 1966171168
        %v3922 = vunpack.c.0.s8 %v3921
        %v3923 = vlaneseq
        %v3924 = vshrl.u32 %v3923, 7
        %v3925 = vsub.s32 %v3922, %v3924
        %v3926 = vrot.slane %v3910, %v3925
        %v3928 = vunpack.c.l.s4 1966171168
        %v3929 = vunpack.c.0.s8 %v3928
        %v3930 = vlaneseq
        %v3931 = vshrl.u32 %v3930, 7
        %v3932 = vsub.s32 %v3929, %v3931
        %v3933 = vrot.slane %v3911, %v3932
        %v3935 = vunpack.c.l.s4 1966171168
        %v3936 = vunpack.c.0.s8 %v3935
        %v3937 = vlaneseq
        %v3938 = vshrl.u32 %v3937, 7
        %v3939 = vsub.s32 %v3936, %v3938
        %v3940 = vrot.slane %v3912, %v3939
        %v3941 = vcombine.low %v3919, %v3926
        %v3942 = vcombine.low %v3933, %v3940
        %v3944 = vunpack.c.l.s4 1966171168
        %v3945 = vunpack.c.0.s8 %v3944
        %v3946 = vlaneseq
        %v3947 = vshrl.u32 %v3946, 7
        %v3948 = vsub.s32 %v3945, %v3947
        %v3949 = vrot.slane %v3941, %v3948
        %v3951 = vunpack.c.l.s4 1966171168
        %v3952 = vunpack.c.0.s8 %v3951
        %v3953 = vlaneseq
        %v3954 = vshrl.u32 %v3953, 7
        %v3955 = vsub.s32 %v3952, %v3954
        %v3956 = vrot.slane %v3942, %v3955
        %v3957 = vcombine.low %v3949, %v3956
        %v3959 = vunpack.c.l.s4 1966171168
        %v3960 = vunpack.c.0.s8 %v3959
        %v3961 = vlaneseq
        %v3962 = vshrl.u32 %v3961, 7
        %v3963 = vsub.s32 %v3960, %v3962
        %v3964 = vrot.slane %v3899, %v3963
        %v3966 = vunpack.c.l.s4 1966171168
        %v3967 = vunpack.c.0.s8 %v3966
        %v3968 = vlaneseq
        %v3969 = vshrl.u32 %v3968, 7
        %v3970 = vsub.s32 %v3967, %v3969
        %v3971 = vrot.slane %v3964, %v3970
        %v3974 = vadd.f32 %v3887, %v3957
        %v3975 = vadd.f32 %v3888, %v3971
        %s3976 = sld [smem:[#allocation2 + $0x36]]
        %v3977 = vstv %s3976
        %v3978 = vmul.f32 %v3977, %v484
        %v3979 = vmul.f32 %v3977, %v485
        %v3980 = vadd.f32 %v3974, %v3978
        %v3981 = vadd.f32 %v3975, %v3979
        %s3982 = sld [smem:[#allocation2 + $0x37]]
        %v3983 = vstv %s3982
        %v3984 = vmul.f32 %v3983, %v558
        %v3985 = vmul.f32 %v3983, %v557
        %v3986 = vmul.f32 %v3983, %v556
        %v3987 = vmul.f32 %v3983, %v555
        %v3988 = vmul.f32 %v3983, %v554
        %v3989 = vmul.f32 %v3983, %v553
        %v3990 = vmul.f32 %v3983, %v552
        %v3991 = vmul.f32 %v3983, %v551
        %v3992 = vmul.f32 %v3983, %v559
        %v4002 = vcombine.low %v3984, %v3985
        %v4003 = vcombine.low %v3986, %v3987
        %v4004 = vcombine.low %v3988, %v3989
        %v4005 = vcombine.low %v3990, %v3991
        %v4007 = vunpack.c.l.s4 1966171168
        %v4008 = vunpack.c.0.s8 %v4007
        %v4009 = vlaneseq
        %v4010 = vshrl.u32 %v4009, 7
        %v4011 = vsub.s32 %v4008, %v4010
        %v4012 = vrot.slane %v4002, %v4011
        %v4014 = vunpack.c.l.s4 1966171168
        %v4015 = vunpack.c.0.s8 %v4014
        %v4016 = vlaneseq
        %v4017 = vshrl.u32 %v4016, 7
        %v4018 = vsub.s32 %v4015, %v4017
        %v4019 = vrot.slane %v4003, %v4018
        %v4021 = vunpack.c.l.s4 1966171168
        %v4022 = vunpack.c.0.s8 %v4021
        %v4023 = vlaneseq
        %v4024 = vshrl.u32 %v4023, 7
        %v4025 = vsub.s32 %v4022, %v4024
        %v4026 = vrot.slane %v4004, %v4025
        %v4028 = vunpack.c.l.s4 1966171168
        %v4029 = vunpack.c.0.s8 %v4028
        %v4030 = vlaneseq
        %v4031 = vshrl.u32 %v4030, 7
        %v4032 = vsub.s32 %v4029, %v4031
        %v4033 = vrot.slane %v4005, %v4032
        %v4034 = vcombine.low %v4012, %v4019
        %v4035 = vcombine.low %v4026, %v4033
        %v4037 = vunpack.c.l.s4 1966171168
        %v4038 = vunpack.c.0.s8 %v4037
        %v4039 = vlaneseq
        %v4040 = vshrl.u32 %v4039, 7
        %v4041 = vsub.s32 %v4038, %v4040
        %v4042 = vrot.slane %v4034, %v4041
        %v4044 = vunpack.c.l.s4 1966171168
        %v4045 = vunpack.c.0.s8 %v4044
        %v4046 = vlaneseq
        %v4047 = vshrl.u32 %v4046, 7
        %v4048 = vsub.s32 %v4045, %v4047
        %v4049 = vrot.slane %v4035, %v4048
        %v4050 = vcombine.low %v4042, %v4049
        %v4052 = vunpack.c.l.s4 1966171168
        %v4053 = vunpack.c.0.s8 %v4052
        %v4054 = vlaneseq
        %v4055 = vshrl.u32 %v4054, 7
        %v4056 = vsub.s32 %v4053, %v4055
        %v4057 = vrot.slane %v3992, %v4056
        %v4059 = vunpack.c.l.s4 1966171168
        %v4060 = vunpack.c.0.s8 %v4059
        %v4061 = vlaneseq
        %v4062 = vshrl.u32 %v4061, 7
        %v4063 = vsub.s32 %v4060, %v4062
        %v4064 = vrot.slane %v4057, %v4063
        %v4067 = vadd.f32 %v3980, %v4050
        %v4068 = vadd.f32 %v3981, %v4064
        %s4069 = sld [smem:[#allocation2 + $0x38]]
        %v4070 = vstv %s4069
        %v4071 = vmul.f32 %v4070, %v585
        %v4072 = vmul.f32 %v4070, %v584
        %v4073 = vmul.f32 %v4070, %v583
        %v4074 = vmul.f32 %v4070, %v582
        %v4075 = vmul.f32 %v4070, %v581
        %v4076 = vmul.f32 %v4070, %v580
        %v4077 = vmul.f32 %v4070, %v579
        %v4078 = vmul.f32 %v4070, %v578
        %v4079 = vmul.f32 %v4070, %v586
        %v4089 = vcombine.low %v4071, %v4072
        %v4090 = vcombine.low %v4073, %v4074
        %v4091 = vcombine.low %v4075, %v4076
        %v4092 = vcombine.low %v4077, %v4078
        %v4094 = vunpack.c.l.s4 1966171168
        %v4095 = vunpack.c.0.s8 %v4094
        %v4096 = vlaneseq
        %v4097 = vshrl.u32 %v4096, 7
        %v4098 = vsub.s32 %v4095, %v4097
        %v4099 = vrot.slane %v4089, %v4098
        %v4101 = vunpack.c.l.s4 1966171168
        %v4102 = vunpack.c.0.s8 %v4101
        %v4103 = vlaneseq
        %v4104 = vshrl.u32 %v4103, 7
        %v4105 = vsub.s32 %v4102, %v4104
        %v4106 = vrot.slane %v4090, %v4105
        %v4108 = vunpack.c.l.s4 1966171168
        %v4109 = vunpack.c.0.s8 %v4108
        %v4110 = vlaneseq
        %v4111 = vshrl.u32 %v4110, 7
        %v4112 = vsub.s32 %v4109, %v4111
        %v4113 = vrot.slane %v4091, %v4112
        %v4115 = vunpack.c.l.s4 1966171168
        %v4116 = vunpack.c.0.s8 %v4115
        %v4117 = vlaneseq
        %v4118 = vshrl.u32 %v4117, 7
        %v4119 = vsub.s32 %v4116, %v4118
        %v4120 = vrot.slane %v4092, %v4119
        %v4121 = vcombine.low %v4099, %v4106
        %v4122 = vcombine.low %v4113, %v4120
        %v4124 = vunpack.c.l.s4 1966171168
        %v4125 = vunpack.c.0.s8 %v4124
        %v4126 = vlaneseq
        %v4127 = vshrl.u32 %v4126, 7
        %v4128 = vsub.s32 %v4125, %v4127
        %v4129 = vrot.slane %v4121, %v4128
        %v4131 = vunpack.c.l.s4 1966171168
        %v4132 = vunpack.c.0.s8 %v4131
        %v4133 = vlaneseq
        %v4134 = vshrl.u32 %v4133, 7
        %v4135 = vsub.s32 %v4132, %v4134
        %v4136 = vrot.slane %v4122, %v4135
        %v4137 = vcombine.low %v4129, %v4136
        %v4139 = vunpack.c.l.s4 1966171168
        %v4140 = vunpack.c.0.s8 %v4139
        %v4141 = vlaneseq
        %v4142 = vshrl.u32 %v4141, 7
        %v4143 = vsub.s32 %v4140, %v4142
        %v4144 = vrot.slane %v4079, %v4143
        %v4146 = vunpack.c.l.s4 1966171168
        %v4147 = vunpack.c.0.s8 %v4146
        %v4148 = vlaneseq
        %v4149 = vshrl.u32 %v4148, 7
        %v4150 = vsub.s32 %v4147, %v4149
        %v4151 = vrot.slane %v4144, %v4150
        %v4154 = vadd.f32 %v4067, %v4137
        %v4155 = vadd.f32 %v4068, %v4151
        %s4156 = sld [smem:[#allocation2 + $0x39]]
        %v4157 = vstv %s4156
        %v4158 = vmul.f32 %v4157, %v588
        %v4159 = vmul.f32 %v4157, %v589
        %v4160 = vadd.f32 %v4154, %v4158
        %v4161 = vadd.f32 %v4155, %v4159
        %s4162 = sld [smem:[#allocation2 + $0x3a]]
        %v4163 = vstv %s4162
        %v4164 = vmul.f32 %v4163, %v662
        %v4165 = vmul.f32 %v4163, %v661
        %v4166 = vmul.f32 %v4163, %v660
        %v4167 = vmul.f32 %v4163, %v659
        %v4168 = vmul.f32 %v4163, %v658
        %v4169 = vmul.f32 %v4163, %v657
        %v4170 = vmul.f32 %v4163, %v656
        %v4171 = vmul.f32 %v4163, %v655
        %v4172 = vmul.f32 %v4163, %v663
        %v4182 = vcombine.low %v4164, %v4165
        %v4183 = vcombine.low %v4166, %v4167
        %v4184 = vcombine.low %v4168, %v4169
        %v4185 = vcombine.low %v4170, %v4171
        %v4187 = vunpack.c.l.s4 1966171168
        %v4188 = vunpack.c.0.s8 %v4187
        %v4189 = vlaneseq
        %v4190 = vshrl.u32 %v4189, 7
        %v4191 = vsub.s32 %v4188, %v4190
        %v4192 = vrot.slane %v4182, %v4191
        %v4194 = vunpack.c.l.s4 1966171168
        %v4195 = vunpack.c.0.s8 %v4194
        %v4196 = vlaneseq
        %v4197 = vshrl.u32 %v4196, 7
        %v4198 = vsub.s32 %v4195, %v4197
        %v4199 = vrot.slane %v4183, %v4198
        %v4201 = vunpack.c.l.s4 1966171168
        %v4202 = vunpack.c.0.s8 %v4201
        %v4203 = vlaneseq
        %v4204 = vshrl.u32 %v4203, 7
        %v4205 = vsub.s32 %v4202, %v4204
        %v4206 = vrot.slane %v4184, %v4205
        %v4208 = vunpack.c.l.s4 1966171168
        %v4209 = vunpack.c.0.s8 %v4208
        %v4210 = vlaneseq
        %v4211 = vshrl.u32 %v4210, 7
        %v4212 = vsub.s32 %v4209, %v4211
        %v4213 = vrot.slane %v4185, %v4212
        %v4214 = vcombine.low %v4192, %v4199
        %v4215 = vcombine.low %v4206, %v4213
        %v4217 = vunpack.c.l.s4 1966171168
        %v4218 = vunpack.c.0.s8 %v4217
        %v4219 = vlaneseq
        %v4220 = vshrl.u32 %v4219, 7
        %v4221 = vsub.s32 %v4218, %v4220
        %v4222 = vrot.slane %v4214, %v4221
        %v4224 = vunpack.c.l.s4 1966171168
        %v4225 = vunpack.c.0.s8 %v4224
        %v4226 = vlaneseq
        %v4227 = vshrl.u32 %v4226, 7
        %v4228 = vsub.s32 %v4225, %v4227
        %v4229 = vrot.slane %v4215, %v4228
        %v4230 = vcombine.low %v4222, %v4229
        %v4232 = vunpack.c.l.s4 1966171168
        %v4233 = vunpack.c.0.s8 %v4232
        %v4234 = vlaneseq
        %v4235 = vshrl.u32 %v4234, 7
        %v4236 = vsub.s32 %v4233, %v4235
        %v4237 = vrot.slane %v4172, %v4236
        %v4239 = vunpack.c.l.s4 1966171168
        %v4240 = vunpack.c.0.s8 %v4239
        %v4241 = vlaneseq
        %v4242 = vshrl.u32 %v4241, 7
        %v4243 = vsub.s32 %v4240, %v4242
        %v4244 = vrot.slane %v4237, %v4243
        %v4247 = vadd.f32 %v4160, %v4230
        %v4248 = vadd.f32 %v4161, %v4244
        %s4249 = sld [smem:[#allocation2 + $0x3b]]
        %v4250 = vstv %s4249
        %v4251 = vmul.f32 %v4250, %v689
        %v4252 = vmul.f32 %v4250, %v688
        %v4253 = vmul.f32 %v4250, %v687
        %v4254 = vmul.f32 %v4250, %v686
        %v4255 = vmul.f32 %v4250, %v685
        %v4256 = vmul.f32 %v4250, %v684
        %v4257 = vmul.f32 %v4250, %v683
        %v4258 = vmul.f32 %v4250, %v682
        %v4259 = vmul.f32 %v4250, %v690
        %v4269 = vcombine.low %v4251, %v4252
        %v4270 = vcombine.low %v4253, %v4254
        %v4271 = vcombine.low %v4255, %v4256
        %v4272 = vcombine.low %v4257, %v4258
        %v4274 = vunpack.c.l.s4 1966171168
        %v4275 = vunpack.c.0.s8 %v4274
        %v4276 = vlaneseq
        %v4277 = vshrl.u32 %v4276, 7
        %v4278 = vsub.s32 %v4275, %v4277
        %v4279 = vrot.slane %v4269, %v4278
        %v4281 = vunpack.c.l.s4 1966171168
        %v4282 = vunpack.c.0.s8 %v4281
        %v4283 = vlaneseq
        %v4284 = vshrl.u32 %v4283, 7
        %v4285 = vsub.s32 %v4282, %v4284
        %v4286 = vrot.slane %v4270, %v4285
        %v4288 = vunpack.c.l.s4 1966171168
        %v4289 = vunpack.c.0.s8 %v4288
        %v4290 = vlaneseq
        %v4291 = vshrl.u32 %v4290, 7
        %v4292 = vsub.s32 %v4289, %v4291
        %v4293 = vrot.slane %v4271, %v4292
        %v4295 = vunpack.c.l.s4 1966171168
        %v4296 = vunpack.c.0.s8 %v4295
        %v4297 = vlaneseq
        %v4298 = vshrl.u32 %v4297, 7
        %v4299 = vsub.s32 %v4296, %v4298
        %v4300 = vrot.slane %v4272, %v4299
        %v4301 = vcombine.low %v4279, %v4286
        %v4302 = vcombine.low %v4293, %v4300
        %v4304 = vunpack.c.l.s4 1966171168
        %v4305 = vunpack.c.0.s8 %v4304
        %v4306 = vlaneseq
        %v4307 = vshrl.u32 %v4306, 7
        %v4308 = vsub.s32 %v4305, %v4307
        %v4309 = vrot.slane %v4301, %v4308
        %v4311 = vunpack.c.l.s4 1966171168
        %v4312 = vunpack.c.0.s8 %v4311
        %v4313 = vlaneseq
        %v4314 = vshrl.u32 %v4313, 7
        %v4315 = vsub.s32 %v4312, %v4314
        %v4316 = vrot.slane %v4302, %v4315
        %v4317 = vcombine.low %v4309, %v4316
        %v4319 = vunpack.c.l.s4 1966171168
        %v4320 = vunpack.c.0.s8 %v4319
        %v4321 = vlaneseq
        %v4322 = vshrl.u32 %v4321, 7
        %v4323 = vsub.s32 %v4320, %v4322
        %v4324 = vrot.slane %v4259, %v4323
        %v4326 = vunpack.c.l.s4 1966171168
        %v4327 = vunpack.c.0.s8 %v4326
        %v4328 = vlaneseq
        %v4329 = vshrl.u32 %v4328, 7
        %v4330 = vsub.s32 %v4327, %v4329
        %v4331 = vrot.slane %v4324, %v4330
        %v4334 = vadd.f32 %v4247, %v4317
        %v4335 = vadd.f32 %v4248, %v4331
        %s4336 = sld [smem:[#allocation7 + $0x4]]
        %v4337 = vstv %s4336
        %v4338 = vmul.f32 %v4334, %v4337
        %v4339 = vmul.f32 %v4335, %v4337
        %s4340 = sld [smem:[#allocation8 + $0x4]]
        %v4341 = vstv %s4340
        %v4342 = vadd.f32 %v4338, %v4341
        %v4343 = vadd.f32 %v4339, %v4341
        %v4344 = vmax.f32 %v4342, 0.0
        %v4345 = vmax.f32 %v4343, 0.0
        %s4346 = scalar_lea.vmem %s271, 36 [#allocation11]
        %4347 = vst [vmem:[%s4346] sm:$0xff] %v4344
        %4348 = vst.msk [vmem:[%s4346 + $0x8] sm:$0x1] %vm1423, %v4345
        %s4349 = sld [smem:[#allocation2 + $0x3c]]
        %v4350 = vstv %s4349
        %v4351 = vmul.f32 %v4350, %v272
        %v4352 = vmul.f32 %v4350, %v273
        %s4353 = sld [smem:[#allocation2 + $0x3d]]
        %v4354 = vstv %s4353
        %v4355 = vmul.f32 %v4354, %v349
        %v4356 = vmul.f32 %v4354, %v348
        %v4357 = vmul.f32 %v4354, %v347
        %v4358 = vmul.f32 %v4354, %v346
        %v4359 = vmul.f32 %v4354, %v345
        %v4360 = vmul.f32 %v4354, %v344
        %v4361 = vmul.f32 %v4354, %v343
        %v4362 = vmul.f32 %v4354, %v342
        %v4363 = vmul.f32 %v4354, %v350
        %v4373 = vcombine.low %v4355, %v4356
        %v4374 = vcombine.low %v4357, %v4358
        %v4375 = vcombine.low %v4359, %v4360
        %v4376 = vcombine.low %v4361, %v4362
        %v4378 = vunpack.c.l.s4 1966171168
        %v4379 = vunpack.c.0.s8 %v4378
        %v4380 = vlaneseq
        %v4381 = vshrl.u32 %v4380, 7
        %v4382 = vsub.s32 %v4379, %v4381
        %v4383 = vrot.slane %v4373, %v4382
        %v4385 = vunpack.c.l.s4 1966171168
        %v4386 = vunpack.c.0.s8 %v4385
        %v4387 = vlaneseq
        %v4388 = vshrl.u32 %v4387, 7
        %v4389 = vsub.s32 %v4386, %v4388
        %v4390 = vrot.slane %v4374, %v4389
        %v4392 = vunpack.c.l.s4 1966171168
        %v4393 = vunpack.c.0.s8 %v4392
        %v4394 = vlaneseq
        %v4395 = vshrl.u32 %v4394, 7
        %v4396 = vsub.s32 %v4393, %v4395
        %v4397 = vrot.slane %v4375, %v4396
        %v4399 = vunpack.c.l.s4 1966171168
        %v4400 = vunpack.c.0.s8 %v4399
        %v4401 = vlaneseq
        %v4402 = vshrl.u32 %v4401, 7
        %v4403 = vsub.s32 %v4400, %v4402
        %v4404 = vrot.slane %v4376, %v4403
        %v4405 = vcombine.low %v4383, %v4390
        %v4406 = vcombine.low %v4397, %v4404
        %v4408 = vunpack.c.l.s4 1966171168
        %v4409 = vunpack.c.0.s8 %v4408
        %v4410 = vlaneseq
        %v4411 = vshrl.u32 %v4410, 7
        %v4412 = vsub.s32 %v4409, %v4411
        %v4413 = vrot.slane %v4405, %v4412
        %v4415 = vunpack.c.l.s4 1966171168
        %v4416 = vunpack.c.0.s8 %v4415
        %v4417 = vlaneseq
        %v4418 = vshrl.u32 %v4417, 7
        %v4419 = vsub.s32 %v4416, %v4418
        %v4420 = vrot.slane %v4406, %v4419
        %v4421 = vcombine.low %v4413, %v4420
        %v4423 = vunpack.c.l.s4 1966171168
        %v4424 = vunpack.c.0.s8 %v4423
        %v4425 = vlaneseq
        %v4426 = vshrl.u32 %v4425, 7
        %v4427 = vsub.s32 %v4424, %v4426
        %v4428 = vrot.slane %v4363, %v4427
        %v4430 = vunpack.c.l.s4 1966171168
        %v4431 = vunpack.c.0.s8 %v4430
        %v4432 = vlaneseq
        %v4433 = vshrl.u32 %v4432, 7
        %v4434 = vsub.s32 %v4431, %v4433
        %v4435 = vrot.slane %v4428, %v4434
        %v4438 = vadd.f32 %v4351, %v4421
        %v4439 = vadd.f32 %v4352, %v4435
        %s4440 = sld [smem:[#allocation2 + $0x3e]]
        %v4441 = vstv %s4440
        %v4442 = vmul.f32 %v4441, %v377
        %v4443 = vmul.f32 %v4441, %v376
        %v4444 = vmul.f32 %v4441, %v375
        %v4445 = vmul.f32 %v4441, %v374
        %v4446 = vmul.f32 %v4441, %v373
        %v4447 = vmul.f32 %v4441, %v372
        %v4448 = vmul.f32 %v4441, %v371
        %v4449 = vmul.f32 %v4441, %v370
        %v4450 = vmul.f32 %v4441, %v378
        %v4460 = vcombine.low %v4442, %v4443
        %v4461 = vcombine.low %v4444, %v4445
        %v4462 = vcombine.low %v4446, %v4447
        %v4463 = vcombine.low %v4448, %v4449
        %v4465 = vunpack.c.l.s4 1966171168
        %v4466 = vunpack.c.0.s8 %v4465
        %v4467 = vlaneseq
        %v4468 = vshrl.u32 %v4467, 7
        %v4469 = vsub.s32 %v4466, %v4468
        %v4470 = vrot.slane %v4460, %v4469
        %v4472 = vunpack.c.l.s4 1966171168
        %v4473 = vunpack.c.0.s8 %v4472
        %v4474 = vlaneseq
        %v4475 = vshrl.u32 %v4474, 7
        %v4476 = vsub.s32 %v4473, %v4475
        %v4477 = vrot.slane %v4461, %v4476
        %v4479 = vunpack.c.l.s4 1966171168
        %v4480 = vunpack.c.0.s8 %v4479
        %v4481 = vlaneseq
        %v4482 = vshrl.u32 %v4481, 7
        %v4483 = vsub.s32 %v4480, %v4482
        %v4484 = vrot.slane %v4462, %v4483
        %v4486 = vunpack.c.l.s4 1966171168
        %v4487 = vunpack.c.0.s8 %v4486
        %v4488 = vlaneseq
        %v4489 = vshrl.u32 %v4488, 7
        %v4490 = vsub.s32 %v4487, %v4489
        %v4491 = vrot.slane %v4463, %v4490
        %v4492 = vcombine.low %v4470, %v4477
        %v4493 = vcombine.low %v4484, %v4491
        %v4495 = vunpack.c.l.s4 1966171168
        %v4496 = vunpack.c.0.s8 %v4495
        %v4497 = vlaneseq
        %v4498 = vshrl.u32 %v4497, 7
        %v4499 = vsub.s32 %v4496, %v4498
        %v4500 = vrot.slane %v4492, %v4499
        %v4502 = vunpack.c.l.s4 1966171168
        %v4503 = vunpack.c.0.s8 %v4502
        %v4504 = vlaneseq
        %v4505 = vshrl.u32 %v4504, 7
        %v4506 = vsub.s32 %v4503, %v4505
        %v4507 = vrot.slane %v4493, %v4506
        %v4508 = vcombine.low %v4500, %v4507
        %v4510 = vunpack.c.l.s4 1966171168
        %v4511 = vunpack.c.0.s8 %v4510
        %v4512 = vlaneseq
        %v4513 = vshrl.u32 %v4512, 7
        %v4514 = vsub.s32 %v4511, %v4513
        %v4515 = vrot.slane %v4450, %v4514
        %v4517 = vunpack.c.l.s4 1966171168
        %v4518 = vunpack.c.0.s8 %v4517
        %v4519 = vlaneseq
        %v4520 = vshrl.u32 %v4519, 7
        %v4521 = vsub.s32 %v4518, %v4520
        %v4522 = vrot.slane %v4515, %v4521
        %v4525 = vadd.f32 %v4438, %v4508
        %v4526 = vadd.f32 %v4439, %v4522
        %s4527 = sld [smem:[#allocation2 + $0x3f]]
        %v4528 = vstv %s4527
        %v4529 = vmul.f32 %v4528, %v380
        %v4530 = vmul.f32 %v4528, %v381
        %v4531 = vadd.f32 %v4525, %v4529
        %v4532 = vadd.f32 %v4526, %v4530
        %s4533 = sld [smem:[#allocation2 + $0x40]]
        %v4534 = vstv %s4533
        %v4535 = vmul.f32 %v4534, %v454
        %v4536 = vmul.f32 %v4534, %v453
        %v4537 = vmul.f32 %v4534, %v452
        %v4538 = vmul.f32 %v4534, %v451
        %v4539 = vmul.f32 %v4534, %v450
        %v4540 = vmul.f32 %v4534, %v449
        %v4541 = vmul.f32 %v4534, %v448
        %v4542 = vmul.f32 %v4534, %v447
        %v4543 = vmul.f32 %v4534, %v455
        %v4553 = vcombine.low %v4535, %v4536
        %v4554 = vcombine.low %v4537, %v4538
        %v4555 = vcombine.low %v4539, %v4540
        %v4556 = vcombine.low %v4541, %v4542
        %v4558 = vunpack.c.l.s4 1966171168
        %v4559 = vunpack.c.0.s8 %v4558
        %v4560 = vlaneseq
        %v4561 = vshrl.u32 %v4560, 7
        %v4562 = vsub.s32 %v4559, %v4561
        %v4563 = vrot.slane %v4553, %v4562
        %v4565 = vunpack.c.l.s4 1966171168
        %v4566 = vunpack.c.0.s8 %v4565
        %v4567 = vlaneseq
        %v4568 = vshrl.u32 %v4567, 7
        %v4569 = vsub.s32 %v4566, %v4568
        %v4570 = vrot.slane %v4554, %v4569
        %v4572 = vunpack.c.l.s4 1966171168
        %v4573 = vunpack.c.0.s8 %v4572
        %v4574 = vlaneseq
        %v4575 = vshrl.u32 %v4574, 7
        %v4576 = vsub.s32 %v4573, %v4575
        %v4577 = vrot.slane %v4555, %v4576
        %v4579 = vunpack.c.l.s4 1966171168
        %v4580 = vunpack.c.0.s8 %v4579
        %v4581 = vlaneseq
        %v4582 = vshrl.u32 %v4581, 7
        %v4583 = vsub.s32 %v4580, %v4582
        %v4584 = vrot.slane %v4556, %v4583
        %v4585 = vcombine.low %v4563, %v4570
        %v4586 = vcombine.low %v4577, %v4584
        %v4588 = vunpack.c.l.s4 1966171168
        %v4589 = vunpack.c.0.s8 %v4588
        %v4590 = vlaneseq
        %v4591 = vshrl.u32 %v4590, 7
        %v4592 = vsub.s32 %v4589, %v4591
        %v4593 = vrot.slane %v4585, %v4592
        %v4595 = vunpack.c.l.s4 1966171168
        %v4596 = vunpack.c.0.s8 %v4595
        %v4597 = vlaneseq
        %v4598 = vshrl.u32 %v4597, 7
        %v4599 = vsub.s32 %v4596, %v4598
        %v4600 = vrot.slane %v4586, %v4599
        %v4601 = vcombine.low %v4593, %v4600
        %v4603 = vunpack.c.l.s4 1966171168
        %v4604 = vunpack.c.0.s8 %v4603
        %v4605 = vlaneseq
        %v4606 = vshrl.u32 %v4605, 7
        %v4607 = vsub.s32 %v4604, %v4606
        %v4608 = vrot.slane %v4543, %v4607
        %v4610 = vunpack.c.l.s4 1966171168
        %v4611 = vunpack.c.0.s8 %v4610
        %v4612 = vlaneseq
        %v4613 = vshrl.u32 %v4612, 7
        %v4614 = vsub.s32 %v4611, %v4613
        %v4615 = vrot.slane %v4608, %v4614
        %v4618 = vadd.f32 %v4531, %v4601
        %v4619 = vadd.f32 %v4532, %v4615
        %s4620 = sld [smem:[#allocation2 + $0x41]]
        %v4621 = vstv %s4620
        %v4622 = vmul.f32 %v4621, %v481
        %v4623 = vmul.f32 %v4621, %v480
        %v4624 = vmul.f32 %v4621, %v479
        %v4625 = vmul.f32 %v4621, %v478
        %v4626 = vmul.f32 %v4621, %v477
        %v4627 = vmul.f32 %v4621, %v476
        %v4628 = vmul.f32 %v4621, %v475
        %v4629 = vmul.f32 %v4621, %v474
        %v4630 = vmul.f32 %v4621, %v482
        %v4640 = vcombine.low %v4622, %v4623
        %v4641 = vcombine.low %v4624, %v4625
        %v4642 = vcombine.low %v4626, %v4627
        %v4643 = vcombine.low %v4628, %v4629
        %v4645 = vunpack.c.l.s4 1966171168
        %v4646 = vunpack.c.0.s8 %v4645
        %v4647 = vlaneseq
        %v4648 = vshrl.u32 %v4647, 7
        %v4649 = vsub.s32 %v4646, %v4648
        %v4650 = vrot.slane %v4640, %v4649
        %v4652 = vunpack.c.l.s4 1966171168
        %v4653 = vunpack.c.0.s8 %v4652
        %v4654 = vlaneseq
        %v4655 = vshrl.u32 %v4654, 7
        %v4656 = vsub.s32 %v4653, %v4655
        %v4657 = vrot.slane %v4641, %v4656
        %v4659 = vunpack.c.l.s4 1966171168
        %v4660 = vunpack.c.0.s8 %v4659
        %v4661 = vlaneseq
        %v4662 = vshrl.u32 %v4661, 7
        %v4663 = vsub.s32 %v4660, %v4662
        %v4664 = vrot.slane %v4642, %v4663
        %v4666 = vunpack.c.l.s4 1966171168
        %v4667 = vunpack.c.0.s8 %v4666
        %v4668 = vlaneseq
        %v4669 = vshrl.u32 %v4668, 7
        %v4670 = vsub.s32 %v4667, %v4669
        %v4671 = vrot.slane %v4643, %v4670
        %v4672 = vcombine.low %v4650, %v4657
        %v4673 = vcombine.low %v4664, %v4671
        %v4675 = vunpack.c.l.s4 1966171168
        %v4676 = vunpack.c.0.s8 %v4675
        %v4677 = vlaneseq
        %v4678 = vshrl.u32 %v4677, 7
        %v4679 = vsub.s32 %v4676, %v4678
        %v4680 = vrot.slane %v4672, %v4679
        %v4682 = vunpack.c.l.s4 1966171168
        %v4683 = vunpack.c.0.s8 %v4682
        %v4684 = vlaneseq
        %v4685 = vshrl.u32 %v4684, 7
        %v4686 = vsub.s32 %v4683, %v4685
        %v4687 = vrot.slane %v4673, %v4686
        %v4688 = vcombine.low %v4680, %v4687
        %v4690 = vunpack.c.l.s4 1966171168
        %v4691 = vunpack.c.0.s8 %v4690
        %v4692 = vlaneseq
        %v4693 = vshrl.u32 %v4692, 7
        %v4694 = vsub.s32 %v4691, %v4693
        %v4695 = vrot.slane %v4630, %v4694
        %v4697 = vunpack.c.l.s4 1966171168
        %v4698 = vunpack.c.0.s8 %v4697
        %v4699 = vlaneseq
        %v4700 = vshrl.u32 %v4699, 7
        %v4701 = vsub.s32 %v4698, %v4700
        %v4702 = vrot.slane %v4695, %v4701
        %v4705 = vadd.f32 %v4618, %v4688
        %v4706 = vadd.f32 %v4619, %v4702
        %s4707 = sld [smem:[#allocation2 + $0x42]]
        %v4708 = vstv %s4707
        %v4709 = vmul.f32 %v4708, %v484
        %v4710 = vmul.f32 %v4708, %v485
        %v4711 = vadd.f32 %v4705, %v4709
        %v4712 = vadd.f32 %v4706, %v4710
        %s4713 = sld [smem:[#allocation2 + $0x43]]
        %v4714 = vstv %s4713
        %v4715 = vmul.f32 %v4714, %v558
        %v4716 = vmul.f32 %v4714, %v557
        %v4717 = vmul.f32 %v4714, %v556
        %v4718 = vmul.f32 %v4714, %v555
        %v4719 = vmul.f32 %v4714, %v554
        %v4720 = vmul.f32 %v4714, %v553
        %v4721 = vmul.f32 %v4714, %v552
        %v4722 = vmul.f32 %v4714, %v551
        %v4723 = vmul.f32 %v4714, %v559
        %v4733 = vcombine.low %v4715, %v4716
        %v4734 = vcombine.low %v4717, %v4718
        %v4735 = vcombine.low %v4719, %v4720
        %v4736 = vcombine.low %v4721, %v4722
        %v4738 = vunpack.c.l.s4 1966171168
        %v4739 = vunpack.c.0.s8 %v4738
        %v4740 = vlaneseq
        %v4741 = vshrl.u32 %v4740, 7
        %v4742 = vsub.s32 %v4739, %v4741
        %v4743 = vrot.slane %v4733, %v4742
        %v4745 = vunpack.c.l.s4 1966171168
        %v4746 = vunpack.c.0.s8 %v4745
        %v4747 = vlaneseq
        %v4748 = vshrl.u32 %v4747, 7
        %v4749 = vsub.s32 %v4746, %v4748
        %v4750 = vrot.slane %v4734, %v4749
        %v4752 = vunpack.c.l.s4 1966171168
        %v4753 = vunpack.c.0.s8 %v4752
        %v4754 = vlaneseq
        %v4755 = vshrl.u32 %v4754, 7
        %v4756 = vsub.s32 %v4753, %v4755
        %v4757 = vrot.slane %v4735, %v4756
        %v4759 = vunpack.c.l.s4 1966171168
        %v4760 = vunpack.c.0.s8 %v4759
        %v4761 = vlaneseq
        %v4762 = vshrl.u32 %v4761, 7
        %v4763 = vsub.s32 %v4760, %v4762
        %v4764 = vrot.slane %v4736, %v4763
        %v4765 = vcombine.low %v4743, %v4750
        %v4766 = vcombine.low %v4757, %v4764
        %v4768 = vunpack.c.l.s4 1966171168
        %v4769 = vunpack.c.0.s8 %v4768
        %v4770 = vlaneseq
        %v4771 = vshrl.u32 %v4770, 7
        %v4772 = vsub.s32 %v4769, %v4771
        %v4773 = vrot.slane %v4765, %v4772
        %v4775 = vunpack.c.l.s4 1966171168
        %v4776 = vunpack.c.0.s8 %v4775
        %v4777 = vlaneseq
        %v4778 = vshrl.u32 %v4777, 7
        %v4779 = vsub.s32 %v4776, %v4778
        %v4780 = vrot.slane %v4766, %v4779
        %v4781 = vcombine.low %v4773, %v4780
        %v4783 = vunpack.c.l.s4 1966171168
        %v4784 = vunpack.c.0.s8 %v4783
        %v4785 = vlaneseq
        %v4786 = vshrl.u32 %v4785, 7
        %v4787 = vsub.s32 %v4784, %v4786
        %v4788 = vrot.slane %v4723, %v4787
        %v4790 = vunpack.c.l.s4 1966171168
        %v4791 = vunpack.c.0.s8 %v4790
        %v4792 = vlaneseq
        %v4793 = vshrl.u32 %v4792, 7
        %v4794 = vsub.s32 %v4791, %v4793
        %v4795 = vrot.slane %v4788, %v4794
        %v4798 = vadd.f32 %v4711, %v4781
        %v4799 = vadd.f32 %v4712, %v4795
        %s4800 = sld [smem:[#allocation2 + $0x44]]
        %v4801 = vstv %s4800
        %v4802 = vmul.f32 %v4801, %v585
        %v4803 = vmul.f32 %v4801, %v584
        %v4804 = vmul.f32 %v4801, %v583
        %v4805 = vmul.f32 %v4801, %v582
        %v4806 = vmul.f32 %v4801, %v581
        %v4807 = vmul.f32 %v4801, %v580
        %v4808 = vmul.f32 %v4801, %v579
        %v4809 = vmul.f32 %v4801, %v578
        %v4810 = vmul.f32 %v4801, %v586
        %v4820 = vcombine.low %v4802, %v4803
        %v4821 = vcombine.low %v4804, %v4805
        %v4822 = vcombine.low %v4806, %v4807
        %v4823 = vcombine.low %v4808, %v4809
        %v4825 = vunpack.c.l.s4 1966171168
        %v4826 = vunpack.c.0.s8 %v4825
        %v4827 = vlaneseq
        %v4828 = vshrl.u32 %v4827, 7
        %v4829 = vsub.s32 %v4826, %v4828
        %v4830 = vrot.slane %v4820, %v4829
        %v4832 = vunpack.c.l.s4 1966171168
        %v4833 = vunpack.c.0.s8 %v4832
        %v4834 = vlaneseq
        %v4835 = vshrl.u32 %v4834, 7
        %v4836 = vsub.s32 %v4833, %v4835
        %v4837 = vrot.slane %v4821, %v4836
        %v4839 = vunpack.c.l.s4 1966171168
        %v4840 = vunpack.c.0.s8 %v4839
        %v4841 = vlaneseq
        %v4842 = vshrl.u32 %v4841, 7
        %v4843 = vsub.s32 %v4840, %v4842
        %v4844 = vrot.slane %v4822, %v4843
        %v4846 = vunpack.c.l.s4 1966171168
        %v4847 = vunpack.c.0.s8 %v4846
        %v4848 = vlaneseq
        %v4849 = vshrl.u32 %v4848, 7
        %v4850 = vsub.s32 %v4847, %v4849
        %v4851 = vrot.slane %v4823, %v4850
        %v4852 = vcombine.low %v4830, %v4837
        %v4853 = vcombine.low %v4844, %v4851
        %v4855 = vunpack.c.l.s4 1966171168
        %v4856 = vunpack.c.0.s8 %v4855
        %v4857 = vlaneseq
        %v4858 = vshrl.u32 %v4857, 7
        %v4859 = vsub.s32 %v4856, %v4858
        %v4860 = vrot.slane %v4852, %v4859
        %v4862 = vunpack.c.l.s4 1966171168
        %v4863 = vunpack.c.0.s8 %v4862
        %v4864 = vlaneseq
        %v4865 = vshrl.u32 %v4864, 7
        %v4866 = vsub.s32 %v4863, %v4865
        %v4867 = vrot.slane %v4853, %v4866
        %v4868 = vcombine.low %v4860, %v4867
        %v4870 = vunpack.c.l.s4 1966171168
        %v4871 = vunpack.c.0.s8 %v4870
        %v4872 = vlaneseq
        %v4873 = vshrl.u32 %v4872, 7
        %v4874 = vsub.s32 %v4871, %v4873
        %v4875 = vrot.slane %v4810, %v4874
        %v4877 = vunpack.c.l.s4 1966171168
        %v4878 = vunpack.c.0.s8 %v4877
        %v4879 = vlaneseq
        %v4880 = vshrl.u32 %v4879, 7
        %v4881 = vsub.s32 %v4878, %v4880
        %v4882 = vrot.slane %v4875, %v4881
        %v4885 = vadd.f32 %v4798, %v4868
        %v4886 = vadd.f32 %v4799, %v4882
        %s4887 = sld [smem:[#allocation2 + $0x45]]
        %v4888 = vstv %s4887
        %v4889 = vmul.f32 %v4888, %v588
        %v4890 = vmul.f32 %v4888, %v589
        %v4891 = vadd.f32 %v4885, %v4889
        %v4892 = vadd.f32 %v4886, %v4890
        %s4893 = sld [smem:[#allocation2 + $0x46]]
        %v4894 = vstv %s4893
        %v4895 = vmul.f32 %v4894, %v662
        %v4896 = vmul.f32 %v4894, %v661
        %v4897 = vmul.f32 %v4894, %v660
        %v4898 = vmul.f32 %v4894, %v659
        %v4899 = vmul.f32 %v4894, %v658
        %v4900 = vmul.f32 %v4894, %v657
        %v4901 = vmul.f32 %v4894, %v656
        %v4902 = vmul.f32 %v4894, %v655
        %v4903 = vmul.f32 %v4894, %v663
        %v4913 = vcombine.low %v4895, %v4896
        %v4914 = vcombine.low %v4897, %v4898
        %v4915 = vcombine.low %v4899, %v4900
        %v4916 = vcombine.low %v4901, %v4902
        %v4918 = vunpack.c.l.s4 1966171168
        %v4919 = vunpack.c.0.s8 %v4918
        %v4920 = vlaneseq
        %v4921 = vshrl.u32 %v4920, 7
        %v4922 = vsub.s32 %v4919, %v4921
        %v4923 = vrot.slane %v4913, %v4922
        %v4925 = vunpack.c.l.s4 1966171168
        %v4926 = vunpack.c.0.s8 %v4925
        %v4927 = vlaneseq
        %v4928 = vshrl.u32 %v4927, 7
        %v4929 = vsub.s32 %v4926, %v4928
        %v4930 = vrot.slane %v4914, %v4929
        %v4932 = vunpack.c.l.s4 1966171168
        %v4933 = vunpack.c.0.s8 %v4932
        %v4934 = vlaneseq
        %v4935 = vshrl.u32 %v4934, 7
        %v4936 = vsub.s32 %v4933, %v4935
        %v4937 = vrot.slane %v4915, %v4936
        %v4939 = vunpack.c.l.s4 1966171168
        %v4940 = vunpack.c.0.s8 %v4939
        %v4941 = vlaneseq
        %v4942 = vshrl.u32 %v4941, 7
        %v4943 = vsub.s32 %v4940, %v4942
        %v4944 = vrot.slane %v4916, %v4943
        %v4945 = vcombine.low %v4923, %v4930
        %v4946 = vcombine.low %v4937, %v4944
        %v4948 = vunpack.c.l.s4 1966171168
        %v4949 = vunpack.c.0.s8 %v4948
        %v4950 = vlaneseq
        %v4951 = vshrl.u32 %v4950, 7
        %v4952 = vsub.s32 %v4949, %v4951
        %v4953 = vrot.slane %v4945, %v4952
        %v4955 = vunpack.c.l.s4 1966171168
        %v4956 = vunpack.c.0.s8 %v4955
        %v4957 = vlaneseq
        %v4958 = vshrl.u32 %v4957, 7
        %v4959 = vsub.s32 %v4956, %v4958
        %v4960 = vrot.slane %v4946, %v4959
        %v4961 = vcombine.low %v4953, %v4960
        %v4963 = vunpack.c.l.s4 1966171168
        %v4964 = vunpack.c.0.s8 %v4963
        %v4965 = vlaneseq
        %v4966 = vshrl.u32 %v4965, 7
        %v4967 = vsub.s32 %v4964, %v4966
        %v4968 = vrot.slane %v4903, %v4967
        %v4970 = vunpack.c.l.s4 1966171168
        %v4971 = vunpack.c.0.s8 %v4970
        %v4972 = vlaneseq
        %v4973 = vshrl.u32 %v4972, 7
        %v4974 = vsub.s32 %v4971, %v4973
        %v4975 = vrot.slane %v4968, %v4974
        %v4978 = vadd.f32 %v4891, %v4961
        %v4979 = vadd.f32 %v4892, %v4975
        %s4980 = sld [smem:[#allocation2 + $0x47]]
        %v4981 = vstv %s4980
        %v4982 = vmul.f32 %v4981, %v689
        %v4983 = vmul.f32 %v4981, %v688
        %v4984 = vmul.f32 %v4981, %v687
        %v4985 = vmul.f32 %v4981, %v686
        %v4986 = vmul.f32 %v4981, %v685
        %v4987 = vmul.f32 %v4981, %v684
        %v4988 = vmul.f32 %v4981, %v683
        %v4989 = vmul.f32 %v4981, %v682
        %v4990 = vmul.f32 %v4981, %v690
        %v5000 = vcombine.low %v4982, %v4983
        %v5001 = vcombine.low %v4984, %v4985
        %v5002 = vcombine.low %v4986, %v4987
        %v5003 = vcombine.low %v4988, %v4989
        %v5005 = vunpack.c.l.s4 1966171168
        %v5006 = vunpack.c.0.s8 %v5005
        %v5007 = vlaneseq
        %v5008 = vshrl.u32 %v5007, 7
        %v5009 = vsub.s32 %v5006, %v5008
        %v5010 = vrot.slane %v5000, %v5009
        %v5012 = vunpack.c.l.s4 1966171168
        %v5013 = vunpack.c.0.s8 %v5012
        %v5014 = vlaneseq
        %v5015 = vshrl.u32 %v5014, 7
        %v5016 = vsub.s32 %v5013, %v5015
        %v5017 = vrot.slane %v5001, %v5016
        %v5019 = vunpack.c.l.s4 1966171168
        %v5020 = vunpack.c.0.s8 %v5019
        %v5021 = vlaneseq
        %v5022 = vshrl.u32 %v5021, 7
        %v5023 = vsub.s32 %v5020, %v5022
        %v5024 = vrot.slane %v5002, %v5023
        %v5026 = vunpack.c.l.s4 1966171168
        %v5027 = vunpack.c.0.s8 %v5026
        %v5028 = vlaneseq
        %v5029 = vshrl.u32 %v5028, 7
        %v5030 = vsub.s32 %v5027, %v5029
        %v5031 = vrot.slane %v5003, %v5030
        %v5032 = vcombine.low %v5010, %v5017
        %v5033 = vcombine.low %v5024, %v5031
        %v5035 = vunpack.c.l.s4 1966171168
        %v5036 = vunpack.c.0.s8 %v5035
        %v5037 = vlaneseq
        %v5038 = vshrl.u32 %v5037, 7
        %v5039 = vsub.s32 %v5036, %v5038
        %v5040 = vrot.slane %v5032, %v5039
        %v5042 = vunpack.c.l.s4 1966171168
        %v5043 = vunpack.c.0.s8 %v5042
        %v5044 = vlaneseq
        %v5045 = vshrl.u32 %v5044, 7
        %v5046 = vsub.s32 %v5043, %v5045
        %v5047 = vrot.slane %v5033, %v5046
        %v5048 = vcombine.low %v5040, %v5047
        %v5050 = vunpack.c.l.s4 1966171168
        %v5051 = vunpack.c.0.s8 %v5050
        %v5052 = vlaneseq
        %v5053 = vshrl.u32 %v5052, 7
        %v5054 = vsub.s32 %v5051, %v5053
        %v5055 = vrot.slane %v4990, %v5054
        %v5057 = vunpack.c.l.s4 1966171168
        %v5058 = vunpack.c.0.s8 %v5057
        %v5059 = vlaneseq
        %v5060 = vshrl.u32 %v5059, 7
        %v5061 = vsub.s32 %v5058, %v5060
        %v5062 = vrot.slane %v5055, %v5061
        %v5065 = vadd.f32 %v4978, %v5048
        %v5066 = vadd.f32 %v4979, %v5062
        %s5067 = sld [smem:[#allocation7 + $0x5]]
        %v5068 = vstv %s5067
        %v5069 = vmul.f32 %v5065, %v5068
        %v5070 = vmul.f32 %v5066, %v5068
        %s5071 = sld [smem:[#allocation8 + $0x5]]
        %v5072 = vstv %s5071
        %v5073 = vadd.f32 %v5069, %v5072
        %v5074 = vadd.f32 %v5070, %v5072
        %v5075 = vmax.f32 %v5073, 0.0
        %v5076 = vmax.f32 %v5074, 0.0
        %s5077 = scalar_lea.vmem %s271, 45 [#allocation11]
        %5078 = vst [vmem:[%s5077] sm:$0xff] %v5075
        %5079 = vst.msk [vmem:[%s5077 + $0x8] sm:$0x1] %vm1423, %v5076
        %s5080 = sld [smem:[#allocation2 + $0x48]]
        %v5081 = vstv %s5080
        %v5082 = vmul.f32 %v5081, %v272
        %v5083 = vmul.f32 %v5081, %v273
        %s5084 = sld [smem:[#allocation2 + $0x49]]
        %v5085 = vstv %s5084
        %v5086 = vmul.f32 %v5085, %v349
        %v5087 = vmul.f32 %v5085, %v348
        %v5088 = vmul.f32 %v5085, %v347
        %v5089 = vmul.f32 %v5085, %v346
        %v5090 = vmul.f32 %v5085, %v345
        %v5091 = vmul.f32 %v5085, %v344
        %v5092 = vmul.f32 %v5085, %v343
        %v5093 = vmul.f32 %v5085, %v342
        %v5094 = vmul.f32 %v5085, %v350
        %v5104 = vcombine.low %v5086, %v5087
        %v5105 = vcombine.low %v5088, %v5089
        %v5106 = vcombine.low %v5090, %v5091
        %v5107 = vcombine.low %v5092, %v5093
        %v5109 = vunpack.c.l.s4 1966171168
        %v5110 = vunpack.c.0.s8 %v5109
        %v5111 = vlaneseq
        %v5112 = vshrl.u32 %v5111, 7
        %v5113 = vsub.s32 %v5110, %v5112
        %v5114 = vrot.slane %v5104, %v5113
        %v5116 = vunpack.c.l.s4 1966171168
        %v5117 = vunpack.c.0.s8 %v5116
        %v5118 = vlaneseq
        %v5119 = vshrl.u32 %v5118, 7
        %v5120 = vsub.s32 %v5117, %v5119
        %v5121 = vrot.slane %v5105, %v5120
        %v5123 = vunpack.c.l.s4 1966171168
        %v5124 = vunpack.c.0.s8 %v5123
        %v5125 = vlaneseq
        %v5126 = vshrl.u32 %v5125, 7
        %v5127 = vsub.s32 %v5124, %v5126
        %v5128 = vrot.slane %v5106, %v5127
        %v5130 = vunpack.c.l.s4 1966171168
        %v5131 = vunpack.c.0.s8 %v5130
        %v5132 = vlaneseq
        %v5133 = vshrl.u32 %v5132, 7
        %v5134 = vsub.s32 %v5131, %v5133
        %v5135 = vrot.slane %v5107, %v5134
        %v5136 = vcombine.low %v5114, %v5121
        %v5137 = vcombine.low %v5128, %v5135
        %v5139 = vunpack.c.l.s4 1966171168
        %v5140 = vunpack.c.0.s8 %v5139
        %v5141 = vlaneseq
        %v5142 = vshrl.u32 %v5141, 7
        %v5143 = vsub.s32 %v5140, %v5142
        %v5144 = vrot.slane %v5136, %v5143
        %v5146 = vunpack.c.l.s4 1966171168
        %v5147 = vunpack.c.0.s8 %v5146
        %v5148 = vlaneseq
        %v5149 = vshrl.u32 %v5148, 7
        %v5150 = vsub.s32 %v5147, %v5149
        %v5151 = vrot.slane %v5137, %v5150
        %v5152 = vcombine.low %v5144, %v5151
        %v5154 = vunpack.c.l.s4 1966171168
        %v5155 = vunpack.c.0.s8 %v5154
        %v5156 = vlaneseq
        %v5157 = vshrl.u32 %v5156, 7
        %v5158 = vsub.s32 %v5155, %v5157
        %v5159 = vrot.slane %v5094, %v5158
        %v5161 = vunpack.c.l.s4 1966171168
        %v5162 = vunpack.c.0.s8 %v5161
        %v5163 = vlaneseq
        %v5164 = vshrl.u32 %v5163, 7
        %v5165 = vsub.s32 %v5162, %v5164
        %v5166 = vrot.slane %v5159, %v5165
        %v5169 = vadd.f32 %v5082, %v5152
        %v5170 = vadd.f32 %v5083, %v5166
        %s5171 = sld [smem:[#allocation2 + $0x4a]]
        %v5172 = vstv %s5171
        %v5173 = vmul.f32 %v5172, %v377
        %v5174 = vmul.f32 %v5172, %v376
        %v5175 = vmul.f32 %v5172, %v375
        %v5176 = vmul.f32 %v5172, %v374
        %v5177 = vmul.f32 %v5172, %v373
        %v5178 = vmul.f32 %v5172, %v372
        %v5179 = vmul.f32 %v5172, %v371
        %v5180 = vmul.f32 %v5172, %v370
        %v5181 = vmul.f32 %v5172, %v378
        %v5191 = vcombine.low %v5173, %v5174
        %v5192 = vcombine.low %v5175, %v5176
        %v5193 = vcombine.low %v5177, %v5178
        %v5194 = vcombine.low %v5179, %v5180
        %v5196 = vunpack.c.l.s4 1966171168
        %v5197 = vunpack.c.0.s8 %v5196
        %v5198 = vlaneseq
        %v5199 = vshrl.u32 %v5198, 7
        %v5200 = vsub.s32 %v5197, %v5199
        %v5201 = vrot.slane %v5191, %v5200
        %v5203 = vunpack.c.l.s4 1966171168
        %v5204 = vunpack.c.0.s8 %v5203
        %v5205 = vlaneseq
        %v5206 = vshrl.u32 %v5205, 7
        %v5207 = vsub.s32 %v5204, %v5206
        %v5208 = vrot.slane %v5192, %v5207
        %v5210 = vunpack.c.l.s4 1966171168
        %v5211 = vunpack.c.0.s8 %v5210
        %v5212 = vlaneseq
        %v5213 = vshrl.u32 %v5212, 7
        %v5214 = vsub.s32 %v5211, %v5213
        %v5215 = vrot.slane %v5193, %v5214
        %v5217 = vunpack.c.l.s4 1966171168
        %v5218 = vunpack.c.0.s8 %v5217
        %v5219 = vlaneseq
        %v5220 = vshrl.u32 %v5219, 7
        %v5221 = vsub.s32 %v5218, %v5220
        %v5222 = vrot.slane %v5194, %v5221
        %v5223 = vcombine.low %v5201, %v5208
        %v5224 = vcombine.low %v5215, %v5222
        %v5226 = vunpack.c.l.s4 1966171168
        %v5227 = vunpack.c.0.s8 %v5226
        %v5228 = vlaneseq
        %v5229 = vshrl.u32 %v5228, 7
        %v5230 = vsub.s32 %v5227, %v5229
        %v5231 = vrot.slane %v5223, %v5230
        %v5233 = vunpack.c.l.s4 1966171168
        %v5234 = vunpack.c.0.s8 %v5233
        %v5235 = vlaneseq
        %v5236 = vshrl.u32 %v5235, 7
        %v5237 = vsub.s32 %v5234, %v5236
        %v5238 = vrot.slane %v5224, %v5237
        %v5239 = vcombine.low %v5231, %v5238
        %v5241 = vunpack.c.l.s4 1966171168
        %v5242 = vunpack.c.0.s8 %v5241
        %v5243 = vlaneseq
        %v5244 = vshrl.u32 %v5243, 7
        %v5245 = vsub.s32 %v5242, %v5244
        %v5246 = vrot.slane %v5181, %v5245
        %v5248 = vunpack.c.l.s4 1966171168
        %v5249 = vunpack.c.0.s8 %v5248
        %v5250 = vlaneseq
        %v5251 = vshrl.u32 %v5250, 7
        %v5252 = vsub.s32 %v5249, %v5251
        %v5253 = vrot.slane %v5246, %v5252
        %v5256 = vadd.f32 %v5169, %v5239
        %v5257 = vadd.f32 %v5170, %v5253
        %s5258 = sld [smem:[#allocation2 + $0x4b]]
        %v5259 = vstv %s5258
        %v5260 = vmul.f32 %v5259, %v380
        %v5261 = vmul.f32 %v5259, %v381
        %v5262 = vadd.f32 %v5256, %v5260
        %v5263 = vadd.f32 %v5257, %v5261
        %s5264 = sld [smem:[#allocation2 + $0x4c]]
        %v5265 = vstv %s5264
        %v5266 = vmul.f32 %v5265, %v454
        %v5267 = vmul.f32 %v5265, %v453
        %v5268 = vmul.f32 %v5265, %v452
        %v5269 = vmul.f32 %v5265, %v451
        %v5270 = vmul.f32 %v5265, %v450
        %v5271 = vmul.f32 %v5265, %v449
        %v5272 = vmul.f32 %v5265, %v448
        %v5273 = vmul.f32 %v5265, %v447
        %v5274 = vmul.f32 %v5265, %v455
        %v5284 = vcombine.low %v5266, %v5267
        %v5285 = vcombine.low %v5268, %v5269
        %v5286 = vcombine.low %v5270, %v5271
        %v5287 = vcombine.low %v5272, %v5273
        %v5289 = vunpack.c.l.s4 1966171168
        %v5290 = vunpack.c.0.s8 %v5289
        %v5291 = vlaneseq
        %v5292 = vshrl.u32 %v5291, 7
        %v5293 = vsub.s32 %v5290, %v5292
        %v5294 = vrot.slane %v5284, %v5293
        %v5296 = vunpack.c.l.s4 1966171168
        %v5297 = vunpack.c.0.s8 %v5296
        %v5298 = vlaneseq
        %v5299 = vshrl.u32 %v5298, 7
        %v5300 = vsub.s32 %v5297, %v5299
        %v5301 = vrot.slane %v5285, %v5300
        %v5303 = vunpack.c.l.s4 1966171168
        %v5304 = vunpack.c.0.s8 %v5303
        %v5305 = vlaneseq
        %v5306 = vshrl.u32 %v5305, 7
        %v5307 = vsub.s32 %v5304, %v5306
        %v5308 = vrot.slane %v5286, %v5307
        %v5310 = vunpack.c.l.s4 1966171168
        %v5311 = vunpack.c.0.s8 %v5310
        %v5312 = vlaneseq
        %v5313 = vshrl.u32 %v5312, 7
        %v5314 = vsub.s32 %v5311, %v5313
        %v5315 = vrot.slane %v5287, %v5314
        %v5316 = vcombine.low %v5294, %v5301
        %v5317 = vcombine.low %v5308, %v5315
        %v5319 = vunpack.c.l.s4 1966171168
        %v5320 = vunpack.c.0.s8 %v5319
        %v5321 = vlaneseq
        %v5322 = vshrl.u32 %v5321, 7
        %v5323 = vsub.s32 %v5320, %v5322
        %v5324 = vrot.slane %v5316, %v5323
        %v5326 = vunpack.c.l.s4 1966171168
        %v5327 = vunpack.c.0.s8 %v5326
        %v5328 = vlaneseq
        %v5329 = vshrl.u32 %v5328, 7
        %v5330 = vsub.s32 %v5327, %v5329
        %v5331 = vrot.slane %v5317, %v5330
        %v5332 = vcombine.low %v5324, %v5331
        %v5334 = vunpack.c.l.s4 1966171168
        %v5335 = vunpack.c.0.s8 %v5334
        %v5336 = vlaneseq
        %v5337 = vshrl.u32 %v5336, 7
        %v5338 = vsub.s32 %v5335, %v5337
        %v5339 = vrot.slane %v5274, %v5338
        %v5341 = vunpack.c.l.s4 1966171168
        %v5342 = vunpack.c.0.s8 %v5341
        %v5343 = vlaneseq
        %v5344 = vshrl.u32 %v5343, 7
        %v5345 = vsub.s32 %v5342, %v5344
        %v5346 = vrot.slane %v5339, %v5345
        %v5349 = vadd.f32 %v5262, %v5332
        %v5350 = vadd.f32 %v5263, %v5346
        %s5351 = sld [smem:[#allocation2 + $0x4d]]
        %v5352 = vstv %s5351
        %v5353 = vmul.f32 %v5352, %v481
        %v5354 = vmul.f32 %v5352, %v480
        %v5355 = vmul.f32 %v5352, %v479
        %v5356 = vmul.f32 %v5352, %v478
        %v5357 = vmul.f32 %v5352, %v477
        %v5358 = vmul.f32 %v5352, %v476
        %v5359 = vmul.f32 %v5352, %v475
        %v5360 = vmul.f32 %v5352, %v474
        %v5361 = vmul.f32 %v5352, %v482
        %v5371 = vcombine.low %v5353, %v5354
        %v5372 = vcombine.low %v5355, %v5356
        %v5373 = vcombine.low %v5357, %v5358
        %v5374 = vcombine.low %v5359, %v5360
        %v5376 = vunpack.c.l.s4 1966171168
        %v5377 = vunpack.c.0.s8 %v5376
        %v5378 = vlaneseq
        %v5379 = vshrl.u32 %v5378, 7
        %v5380 = vsub.s32 %v5377, %v5379
        %v5381 = vrot.slane %v5371, %v5380
        %v5383 = vunpack.c.l.s4 1966171168
        %v5384 = vunpack.c.0.s8 %v5383
        %v5385 = vlaneseq
        %v5386 = vshrl.u32 %v5385, 7
        %v5387 = vsub.s32 %v5384, %v5386
        %v5388 = vrot.slane %v5372, %v5387
        %v5390 = vunpack.c.l.s4 1966171168
        %v5391 = vunpack.c.0.s8 %v5390
        %v5392 = vlaneseq
        %v5393 = vshrl.u32 %v5392, 7
        %v5394 = vsub.s32 %v5391, %v5393
        %v5395 = vrot.slane %v5373, %v5394
        %v5397 = vunpack.c.l.s4 1966171168
        %v5398 = vunpack.c.0.s8 %v5397
        %v5399 = vlaneseq
        %v5400 = vshrl.u32 %v5399, 7
        %v5401 = vsub.s32 %v5398, %v5400
        %v5402 = vrot.slane %v5374, %v5401
        %v5403 = vcombine.low %v5381, %v5388
        %v5404 = vcombine.low %v5395, %v5402
        %v5406 = vunpack.c.l.s4 1966171168
        %v5407 = vunpack.c.0.s8 %v5406
        %v5408 = vlaneseq
        %v5409 = vshrl.u32 %v5408, 7
        %v5410 = vsub.s32 %v5407, %v5409
        %v5411 = vrot.slane %v5403, %v5410
        %v5413 = vunpack.c.l.s4 1966171168
        %v5414 = vunpack.c.0.s8 %v5413
        %v5415 = vlaneseq
        %v5416 = vshrl.u32 %v5415, 7
        %v5417 = vsub.s32 %v5414, %v5416
        %v5418 = vrot.slane %v5404, %v5417
        %v5419 = vcombine.low %v5411, %v5418
        %v5421 = vunpack.c.l.s4 1966171168
        %v5422 = vunpack.c.0.s8 %v5421
        %v5423 = vlaneseq
        %v5424 = vshrl.u32 %v5423, 7
        %v5425 = vsub.s32 %v5422, %v5424
        %v5426 = vrot.slane %v5361, %v5425
        %v5428 = vunpack.c.l.s4 1966171168
        %v5429 = vunpack.c.0.s8 %v5428
        %v5430 = vlaneseq
        %v5431 = vshrl.u32 %v5430, 7
        %v5432 = vsub.s32 %v5429, %v5431
        %v5433 = vrot.slane %v5426, %v5432
        %v5436 = vadd.f32 %v5349, %v5419
        %v5437 = vadd.f32 %v5350, %v5433
        %s5438 = sld [smem:[#allocation2 + $0x4e]]
        %v5439 = vstv %s5438
        %v5440 = vmul.f32 %v5439, %v484
        %v5441 = vmul.f32 %v5439, %v485
        %v5442 = vadd.f32 %v5436, %v5440
        %v5443 = vadd.f32 %v5437, %v5441
        %s5444 = sld [smem:[#allocation2 + $0x4f]]
        %v5445 = vstv %s5444
        %v5446 = vmul.f32 %v5445, %v558
        %v5447 = vmul.f32 %v5445, %v557
        %v5448 = vmul.f32 %v5445, %v556
        %v5449 = vmul.f32 %v5445, %v555
        %v5450 = vmul.f32 %v5445, %v554
        %v5451 = vmul.f32 %v5445, %v553
        %v5452 = vmul.f32 %v5445, %v552
        %v5453 = vmul.f32 %v5445, %v551
        %v5454 = vmul.f32 %v5445, %v559
        %v5464 = vcombine.low %v5446, %v5447
        %v5465 = vcombine.low %v5448, %v5449
        %v5466 = vcombine.low %v5450, %v5451
        %v5467 = vcombine.low %v5452, %v5453
        %v5469 = vunpack.c.l.s4 1966171168
        %v5470 = vunpack.c.0.s8 %v5469
        %v5471 = vlaneseq
        %v5472 = vshrl.u32 %v5471, 7
        %v5473 = vsub.s32 %v5470, %v5472
        %v5474 = vrot.slane %v5464, %v5473
        %v5476 = vunpack.c.l.s4 1966171168
        %v5477 = vunpack.c.0.s8 %v5476
        %v5478 = vlaneseq
        %v5479 = vshrl.u32 %v5478, 7
        %v5480 = vsub.s32 %v5477, %v5479
        %v5481 = vrot.slane %v5465, %v5480
        %v5483 = vunpack.c.l.s4 1966171168
        %v5484 = vunpack.c.0.s8 %v5483
        %v5485 = vlaneseq
        %v5486 = vshrl.u32 %v5485, 7
        %v5487 = vsub.s32 %v5484, %v5486
        %v5488 = vrot.slane %v5466, %v5487
        %v5490 = vunpack.c.l.s4 1966171168
        %v5491 = vunpack.c.0.s8 %v5490
        %v5492 = vlaneseq
        %v5493 = vshrl.u32 %v5492, 7
        %v5494 = vsub.s32 %v5491, %v5493
        %v5495 = vrot.slane %v5467, %v5494
        %v5496 = vcombine.low %v5474, %v5481
        %v5497 = vcombine.low %v5488, %v5495
        %v5499 = vunpack.c.l.s4 1966171168
        %v5500 = vunpack.c.0.s8 %v5499
        %v5501 = vlaneseq
        %v5502 = vshrl.u32 %v5501, 7
        %v5503 = vsub.s32 %v5500, %v5502
        %v5504 = vrot.slane %v5496, %v5503
        %v5506 = vunpack.c.l.s4 1966171168
        %v5507 = vunpack.c.0.s8 %v5506
        %v5508 = vlaneseq
        %v5509 = vshrl.u32 %v5508, 7
        %v5510 = vsub.s32 %v5507, %v5509
        %v5511 = vrot.slane %v5497, %v5510
        %v5512 = vcombine.low %v5504, %v5511
        %v5514 = vunpack.c.l.s4 1966171168
        %v5515 = vunpack.c.0.s8 %v5514
        %v5516 = vlaneseq
        %v5517 = vshrl.u32 %v5516, 7
        %v5518 = vsub.s32 %v5515, %v5517
        %v5519 = vrot.slane %v5454, %v5518
        %v5521 = vunpack.c.l.s4 1966171168
        %v5522 = vunpack.c.0.s8 %v5521
        %v5523 = vlaneseq
        %v5524 = vshrl.u32 %v5523, 7
        %v5525 = vsub.s32 %v5522, %v5524
        %v5526 = vrot.slane %v5519, %v5525
        %v5529 = vadd.f32 %v5442, %v5512
        %v5530 = vadd.f32 %v5443, %v5526
        %s5531 = sld [smem:[#allocation2 + $0x50]]
        %v5532 = vstv %s5531
        %v5533 = vmul.f32 %v5532, %v585
        %v5534 = vmul.f32 %v5532, %v584
        %v5535 = vmul.f32 %v5532, %v583
        %v5536 = vmul.f32 %v5532, %v582
        %v5537 = vmul.f32 %v5532, %v581
        %v5538 = vmul.f32 %v5532, %v580
        %v5539 = vmul.f32 %v5532, %v579
        %v5540 = vmul.f32 %v5532, %v578
        %v5541 = vmul.f32 %v5532, %v586
        %v5551 = vcombine.low %v5533, %v5534
        %v5552 = vcombine.low %v5535, %v5536
        %v5553 = vcombine.low %v5537, %v5538
        %v5554 = vcombine.low %v5539, %v5540
        %v5556 = vunpack.c.l.s4 1966171168
        %v5557 = vunpack.c.0.s8 %v5556
        %v5558 = vlaneseq
        %v5559 = vshrl.u32 %v5558, 7
        %v5560 = vsub.s32 %v5557, %v5559
        %v5561 = vrot.slane %v5551, %v5560
        %v5563 = vunpack.c.l.s4 1966171168
        %v5564 = vunpack.c.0.s8 %v5563
        %v5565 = vlaneseq
        %v5566 = vshrl.u32 %v5565, 7
        %v5567 = vsub.s32 %v5564, %v5566
        %v5568 = vrot.slane %v5552, %v5567
        %v5570 = vunpack.c.l.s4 1966171168
        %v5571 = vunpack.c.0.s8 %v5570
        %v5572 = vlaneseq
        %v5573 = vshrl.u32 %v5572, 7
        %v5574 = vsub.s32 %v5571, %v5573
        %v5575 = vrot.slane %v5553, %v5574
        %v5577 = vunpack.c.l.s4 1966171168
        %v5578 = vunpack.c.0.s8 %v5577
        %v5579 = vlaneseq
        %v5580 = vshrl.u32 %v5579, 7
        %v5581 = vsub.s32 %v5578, %v5580
        %v5582 = vrot.slane %v5554, %v5581
        %v5583 = vcombine.low %v5561, %v5568
        %v5584 = vcombine.low %v5575, %v5582
        %v5586 = vunpack.c.l.s4 1966171168
        %v5587 = vunpack.c.0.s8 %v5586
        %v5588 = vlaneseq
        %v5589 = vshrl.u32 %v5588, 7
        %v5590 = vsub.s32 %v5587, %v5589
        %v5591 = vrot.slane %v5583, %v5590
        %v5593 = vunpack.c.l.s4 1966171168
        %v5594 = vunpack.c.0.s8 %v5593
        %v5595 = vlaneseq
        %v5596 = vshrl.u32 %v5595, 7
        %v5597 = vsub.s32 %v5594, %v5596
        %v5598 = vrot.slane %v5584, %v5597
        %v5599 = vcombine.low %v5591, %v5598
        %v5601 = vunpack.c.l.s4 1966171168
        %v5602 = vunpack.c.0.s8 %v5601
        %v5603 = vlaneseq
        %v5604 = vshrl.u32 %v5603, 7
        %v5605 = vsub.s32 %v5602, %v5604
        %v5606 = vrot.slane %v5541, %v5605
        %v5608 = vunpack.c.l.s4 1966171168
        %v5609 = vunpack.c.0.s8 %v5608
        %v5610 = vlaneseq
        %v5611 = vshrl.u32 %v5610, 7
        %v5612 = vsub.s32 %v5609, %v5611
        %v5613 = vrot.slane %v5606, %v5612
        %v5616 = vadd.f32 %v5529, %v5599
        %v5617 = vadd.f32 %v5530, %v5613
        %s5618 = sld [smem:[#allocation2 + $0x51]]
        %v5619 = vstv %s5618
        %v5620 = vmul.f32 %v5619, %v588
        %v5621 = vmul.f32 %v5619, %v589
        %v5622 = vadd.f32 %v5616, %v5620
        %v5623 = vadd.f32 %v5617, %v5621
        %s5624 = sld [smem:[#allocation2 + $0x52]]
        %v5625 = vstv %s5624
        %v5626 = vmul.f32 %v5625, %v662
        %v5627 = vmul.f32 %v5625, %v661
        %v5628 = vmul.f32 %v5625, %v660
        %v5629 = vmul.f32 %v5625, %v659
        %v5630 = vmul.f32 %v5625, %v658
        %v5631 = vmul.f32 %v5625, %v657
        %v5632 = vmul.f32 %v5625, %v656
        %v5633 = vmul.f32 %v5625, %v655
        %v5634 = vmul.f32 %v5625, %v663
        %v5644 = vcombine.low %v5626, %v5627
        %v5645 = vcombine.low %v5628, %v5629
        %v5646 = vcombine.low %v5630, %v5631
        %v5647 = vcombine.low %v5632, %v5633
        %v5649 = vunpack.c.l.s4 1966171168
        %v5650 = vunpack.c.0.s8 %v5649
        %v5651 = vlaneseq
        %v5652 = vshrl.u32 %v5651, 7
        %v5653 = vsub.s32 %v5650, %v5652
        %v5654 = vrot.slane %v5644, %v5653
        %v5656 = vunpack.c.l.s4 1966171168
        %v5657 = vunpack.c.0.s8 %v5656
        %v5658 = vlaneseq
        %v5659 = vshrl.u32 %v5658, 7
        %v5660 = vsub.s32 %v5657, %v5659
        %v5661 = vrot.slane %v5645, %v5660
        %v5663 = vunpack.c.l.s4 1966171168
        %v5664 = vunpack.c.0.s8 %v5663
        %v5665 = vlaneseq
        %v5666 = vshrl.u32 %v5665, 7
        %v5667 = vsub.s32 %v5664, %v5666
        %v5668 = vrot.slane %v5646, %v5667
        %v5670 = vunpack.c.l.s4 1966171168
        %v5671 = vunpack.c.0.s8 %v5670
        %v5672 = vlaneseq
        %v5673 = vshrl.u32 %v5672, 7
        %v5674 = vsub.s32 %v5671, %v5673
        %v5675 = vrot.slane %v5647, %v5674
        %v5676 = vcombine.low %v5654, %v5661
        %v5677 = vcombine.low %v5668, %v5675
        %v5679 = vunpack.c.l.s4 1966171168
        %v5680 = vunpack.c.0.s8 %v5679
        %v5681 = vlaneseq
        %v5682 = vshrl.u32 %v5681, 7
        %v5683 = vsub.s32 %v5680, %v5682
        %v5684 = vrot.slane %v5676, %v5683
        %v5686 = vunpack.c.l.s4 1966171168
        %v5687 = vunpack.c.0.s8 %v5686
        %v5688 = vlaneseq
        %v5689 = vshrl.u32 %v5688, 7
        %v5690 = vsub.s32 %v5687, %v5689
        %v5691 = vrot.slane %v5677, %v5690
        %v5692 = vcombine.low %v5684, %v5691
        %v5694 = vunpack.c.l.s4 1966171168
        %v5695 = vunpack.c.0.s8 %v5694
        %v5696 = vlaneseq
        %v5697 = vshrl.u32 %v5696, 7
        %v5698 = vsub.s32 %v5695, %v5697
        %v5699 = vrot.slane %v5634, %v5698
        %v5701 = vunpack.c.l.s4 1966171168
        %v5702 = vunpack.c.0.s8 %v5701
        %v5703 = vlaneseq
        %v5704 = vshrl.u32 %v5703, 7
        %v5705 = vsub.s32 %v5702, %v5704
        %v5706 = vrot.slane %v5699, %v5705
        %v5709 = vadd.f32 %v5622, %v5692
        %v5710 = vadd.f32 %v5623, %v5706
        %s5711 = sld [smem:[#allocation2 + $0x53]]
        %v5712 = vstv %s5711
        %v5713 = vmul.f32 %v5712, %v689
        %v5714 = vmul.f32 %v5712, %v688
        %v5715 = vmul.f32 %v5712, %v687
        %v5716 = vmul.f32 %v5712, %v686
        %v5717 = vmul.f32 %v5712, %v685
        %v5718 = vmul.f32 %v5712, %v684
        %v5719 = vmul.f32 %v5712, %v683
        %v5720 = vmul.f32 %v5712, %v682
        %v5721 = vmul.f32 %v5712, %v690
        %v5731 = vcombine.low %v5713, %v5714
        %v5732 = vcombine.low %v5715, %v5716
        %v5733 = vcombine.low %v5717, %v5718
        %v5734 = vcombine.low %v5719, %v5720
        %v5736 = vunpack.c.l.s4 1966171168
        %v5737 = vunpack.c.0.s8 %v5736
        %v5738 = vlaneseq
        %v5739 = vshrl.u32 %v5738, 7
        %v5740 = vsub.s32 %v5737, %v5739
        %v5741 = vrot.slane %v5731, %v5740
        %v5743 = vunpack.c.l.s4 1966171168
        %v5744 = vunpack.c.0.s8 %v5743
        %v5745 = vlaneseq
        %v5746 = vshrl.u32 %v5745, 7
        %v5747 = vsub.s32 %v5744, %v5746
        %v5748 = vrot.slane %v5732, %v5747
        %v5750 = vunpack.c.l.s4 1966171168
        %v5751 = vunpack.c.0.s8 %v5750
        %v5752 = vlaneseq
        %v5753 = vshrl.u32 %v5752, 7
        %v5754 = vsub.s32 %v5751, %v5753
        %v5755 = vrot.slane %v5733, %v5754
        %v5757 = vunpack.c.l.s4 1966171168
        %v5758 = vunpack.c.0.s8 %v5757
        %v5759 = vlaneseq
        %v5760 = vshrl.u32 %v5759, 7
        %v5761 = vsub.s32 %v5758, %v5760
        %v5762 = vrot.slane %v5734, %v5761
        %v5763 = vcombine.low %v5741, %v5748
        %v5764 = vcombine.low %v5755, %v5762
        %v5766 = vunpack.c.l.s4 1966171168
        %v5767 = vunpack.c.0.s8 %v5766
        %v5768 = vlaneseq
        %v5769 = vshrl.u32 %v5768, 7
        %v5770 = vsub.s32 %v5767, %v5769
        %v5771 = vrot.slane %v5763, %v5770
        %v5773 = vunpack.c.l.s4 1966171168
        %v5774 = vunpack.c.0.s8 %v5773
        %v5775 = vlaneseq
        %v5776 = vshrl.u32 %v5775, 7
        %v5777 = vsub.s32 %v5774, %v5776
        %v5778 = vrot.slane %v5764, %v5777
        %v5779 = vcombine.low %v5771, %v5778
        %v5781 = vunpack.c.l.s4 1966171168
        %v5782 = vunpack.c.0.s8 %v5781
        %v5783 = vlaneseq
        %v5784 = vshrl.u32 %v5783, 7
        %v5785 = vsub.s32 %v5782, %v5784
        %v5786 = vrot.slane %v5721, %v5785
        %v5788 = vunpack.c.l.s4 1966171168
        %v5789 = vunpack.c.0.s8 %v5788
        %v5790 = vlaneseq
        %v5791 = vshrl.u32 %v5790, 7
        %v5792 = vsub.s32 %v5789, %v5791
        %v5793 = vrot.slane %v5786, %v5792
        %v5796 = vadd.f32 %v5709, %v5779
        %v5797 = vadd.f32 %v5710, %v5793
        %s5798 = sld [smem:[#allocation7 + $0x6]]
        %v5799 = vstv %s5798
        %v5800 = vmul.f32 %v5796, %v5799
        %v5801 = vmul.f32 %v5797, %v5799
        %s5802 = sld [smem:[#allocation8 + $0x6]]
        %v5803 = vstv %s5802
        %v5804 = vadd.f32 %v5800, %v5803
        %v5805 = vadd.f32 %v5801, %v5803
        %v5806 = vmax.f32 %v5804, 0.0
        %v5807 = vmax.f32 %v5805, 0.0
        %s5808 = scalar_lea.vmem %s271, 54 [#allocation11]
        %5809 = vst [vmem:[%s5808] sm:$0xff] %v5806
        %5810 = vst.msk [vmem:[%s5808 + $0x8] sm:$0x1] %vm1423, %v5807
        %s5811 = sld [smem:[#allocation2 + $0x54]]
        %v5812 = vstv %s5811
        %v5813 = vmul.f32 %v5812, %v272
        %v5814 = vmul.f32 %v5812, %v273
        %s5815 = sld [smem:[#allocation2 + $0x55]]
        %v5816 = vstv %s5815
        %v5817 = vmul.f32 %v5816, %v349
        %v5818 = vmul.f32 %v5816, %v348
        %v5819 = vmul.f32 %v5816, %v347
        %v5820 = vmul.f32 %v5816, %v346
        %v5821 = vmul.f32 %v5816, %v345
        %v5822 = vmul.f32 %v5816, %v344
        %v5823 = vmul.f32 %v5816, %v343
        %v5824 = vmul.f32 %v5816, %v342
        %v5825 = vmul.f32 %v5816, %v350
        %v5835 = vcombine.low %v5817, %v5818
        %v5836 = vcombine.low %v5819, %v5820
        %v5837 = vcombine.low %v5821, %v5822
        %v5838 = vcombine.low %v5823, %v5824
        %v5840 = vunpack.c.l.s4 1966171168
        %v5841 = vunpack.c.0.s8 %v5840
        %v5842 = vlaneseq
        %v5843 = vshrl.u32 %v5842, 7
        %v5844 = vsub.s32 %v5841, %v5843
        %v5845 = vrot.slane %v5835, %v5844
        %v5847 = vunpack.c.l.s4 1966171168
        %v5848 = vunpack.c.0.s8 %v5847
        %v5849 = vlaneseq
        %v5850 = vshrl.u32 %v5849, 7
        %v5851 = vsub.s32 %v5848, %v5850
        %v5852 = vrot.slane %v5836, %v5851
        %v5854 = vunpack.c.l.s4 1966171168
        %v5855 = vunpack.c.0.s8 %v5854
        %v5856 = vlaneseq
        %v5857 = vshrl.u32 %v5856, 7
        %v5858 = vsub.s32 %v5855, %v5857
        %v5859 = vrot.slane %v5837, %v5858
        %v5861 = vunpack.c.l.s4 1966171168
        %v5862 = vunpack.c.0.s8 %v5861
        %v5863 = vlaneseq
        %v5864 = vshrl.u32 %v5863, 7
        %v5865 = vsub.s32 %v5862, %v5864
        %v5866 = vrot.slane %v5838, %v5865
        %v5867 = vcombine.low %v5845, %v5852
        %v5868 = vcombine.low %v5859, %v5866
        %v5870 = vunpack.c.l.s4 1966171168
        %v5871 = vunpack.c.0.s8 %v5870
        %v5872 = vlaneseq
        %v5873 = vshrl.u32 %v5872, 7
        %v5874 = vsub.s32 %v5871, %v5873
        %v5875 = vrot.slane %v5867, %v5874
        %v5877 = vunpack.c.l.s4 1966171168
        %v5878 = vunpack.c.0.s8 %v5877
        %v5879 = vlaneseq
        %v5880 = vshrl.u32 %v5879, 7
        %v5881 = vsub.s32 %v5878, %v5880
        %v5882 = vrot.slane %v5868, %v5881
        %v5883 = vcombine.low %v5875, %v5882
        %v5885 = vunpack.c.l.s4 1966171168
        %v5886 = vunpack.c.0.s8 %v5885
        %v5887 = vlaneseq
        %v5888 = vshrl.u32 %v5887, 7
        %v5889 = vsub.s32 %v5886, %v5888
        %v5890 = vrot.slane %v5825, %v5889
        %v5892 = vunpack.c.l.s4 1966171168
        %v5893 = vunpack.c.0.s8 %v5892
        %v5894 = vlaneseq
        %v5895 = vshrl.u32 %v5894, 7
        %v5896 = vsub.s32 %v5893, %v5895
        %v5897 = vrot.slane %v5890, %v5896
        %v5900 = vadd.f32 %v5813, %v5883
        %v5901 = vadd.f32 %v5814, %v5897
        %s5902 = sld [smem:[#allocation2 + $0x56]]
        %v5903 = vstv %s5902
        %v5904 = vmul.f32 %v5903, %v377
        %v5905 = vmul.f32 %v5903, %v376
        %v5906 = vmul.f32 %v5903, %v375
        %v5907 = vmul.f32 %v5903, %v374
        %v5908 = vmul.f32 %v5903, %v373
        %v5909 = vmul.f32 %v5903, %v372
        %v5910 = vmul.f32 %v5903, %v371
        %v5911 = vmul.f32 %v5903, %v370
        %v5912 = vmul.f32 %v5903, %v378
        %v5922 = vcombine.low %v5904, %v5905
        %v5923 = vcombine.low %v5906, %v5907
        %v5924 = vcombine.low %v5908, %v5909
        %v5925 = vcombine.low %v5910, %v5911
        %v5927 = vunpack.c.l.s4 1966171168
        %v5928 = vunpack.c.0.s8 %v5927
        %v5929 = vlaneseq
        %v5930 = vshrl.u32 %v5929, 7
        %v5931 = vsub.s32 %v5928, %v5930
        %v5932 = vrot.slane %v5922, %v5931
        %v5934 = vunpack.c.l.s4 1966171168
        %v5935 = vunpack.c.0.s8 %v5934
        %v5936 = vlaneseq
        %v5937 = vshrl.u32 %v5936, 7
        %v5938 = vsub.s32 %v5935, %v5937
        %v5939 = vrot.slane %v5923, %v5938
        %v5941 = vunpack.c.l.s4 1966171168
        %v5942 = vunpack.c.0.s8 %v5941
        %v5943 = vlaneseq
        %v5944 = vshrl.u32 %v5943, 7
        %v5945 = vsub.s32 %v5942, %v5944
        %v5946 = vrot.slane %v5924, %v5945
        %v5948 = vunpack.c.l.s4 1966171168
        %v5949 = vunpack.c.0.s8 %v5948
        %v5950 = vlaneseq
        %v5951 = vshrl.u32 %v5950, 7
        %v5952 = vsub.s32 %v5949, %v5951
        %v5953 = vrot.slane %v5925, %v5952
        %v5954 = vcombine.low %v5932, %v5939
        %v5955 = vcombine.low %v5946, %v5953
        %v5957 = vunpack.c.l.s4 1966171168
        %v5958 = vunpack.c.0.s8 %v5957
        %v5959 = vlaneseq
        %v5960 = vshrl.u32 %v5959, 7
        %v5961 = vsub.s32 %v5958, %v5960
        %v5962 = vrot.slane %v5954, %v5961
        %v5964 = vunpack.c.l.s4 1966171168
        %v5965 = vunpack.c.0.s8 %v5964
        %v5966 = vlaneseq
        %v5967 = vshrl.u32 %v5966, 7
        %v5968 = vsub.s32 %v5965, %v5967
        %v5969 = vrot.slane %v5955, %v5968
        %v5970 = vcombine.low %v5962, %v5969
        %v5972 = vunpack.c.l.s4 1966171168
        %v5973 = vunpack.c.0.s8 %v5972
        %v5974 = vlaneseq
        %v5975 = vshrl.u32 %v5974, 7
        %v5976 = vsub.s32 %v5973, %v5975
        %v5977 = vrot.slane %v5912, %v5976
        %v5979 = vunpack.c.l.s4 1966171168
        %v5980 = vunpack.c.0.s8 %v5979
        %v5981 = vlaneseq
        %v5982 = vshrl.u32 %v5981, 7
        %v5983 = vsub.s32 %v5980, %v5982
        %v5984 = vrot.slane %v5977, %v5983
        %v5987 = vadd.f32 %v5900, %v5970
        %v5988 = vadd.f32 %v5901, %v5984
        %s5989 = sld [smem:[#allocation2 + $0x57]]
        %v5990 = vstv %s5989
        %v5991 = vmul.f32 %v5990, %v380
        %v5992 = vmul.f32 %v5990, %v381
        %v5993 = vadd.f32 %v5987, %v5991
        %v5994 = vadd.f32 %v5988, %v5992
        %s5995 = sld [smem:[#allocation2 + $0x58]]
        %v5996 = vstv %s5995
        %v5997 = vmul.f32 %v5996, %v454
        %v5998 = vmul.f32 %v5996, %v453
        %v5999 = vmul.f32 %v5996, %v452
        %v6000 = vmul.f32 %v5996, %v451
        %v6001 = vmul.f32 %v5996, %v450
        %v6002 = vmul.f32 %v5996, %v449
        %v6003 = vmul.f32 %v5996, %v448
        %v6004 = vmul.f32 %v5996, %v447
        %v6005 = vmul.f32 %v5996, %v455
        %v6015 = vcombine.low %v5997, %v5998
        %v6016 = vcombine.low %v5999, %v6000
        %v6017 = vcombine.low %v6001, %v6002
        %v6018 = vcombine.low %v6003, %v6004
        %v6020 = vunpack.c.l.s4 1966171168
        %v6021 = vunpack.c.0.s8 %v6020
        %v6022 = vlaneseq
        %v6023 = vshrl.u32 %v6022, 7
        %v6024 = vsub.s32 %v6021, %v6023
        %v6025 = vrot.slane %v6015, %v6024
        %v6027 = vunpack.c.l.s4 1966171168
        %v6028 = vunpack.c.0.s8 %v6027
        %v6029 = vlaneseq
        %v6030 = vshrl.u32 %v6029, 7
        %v6031 = vsub.s32 %v6028, %v6030
        %v6032 = vrot.slane %v6016, %v6031
        %v6034 = vunpack.c.l.s4 1966171168
        %v6035 = vunpack.c.0.s8 %v6034
        %v6036 = vlaneseq
        %v6037 = vshrl.u32 %v6036, 7
        %v6038 = vsub.s32 %v6035, %v6037
        %v6039 = vrot.slane %v6017, %v6038
        %v6041 = vunpack.c.l.s4 1966171168
        %v6042 = vunpack.c.0.s8 %v6041
        %v6043 = vlaneseq
        %v6044 = vshrl.u32 %v6043, 7
        %v6045 = vsub.s32 %v6042, %v6044
        %v6046 = vrot.slane %v6018, %v6045
        %v6047 = vcombine.low %v6025, %v6032
        %v6048 = vcombine.low %v6039, %v6046
        %v6050 = vunpack.c.l.s4 1966171168
        %v6051 = vunpack.c.0.s8 %v6050
        %v6052 = vlaneseq
        %v6053 = vshrl.u32 %v6052, 7
        %v6054 = vsub.s32 %v6051, %v6053
        %v6055 = vrot.slane %v6047, %v6054
        %v6057 = vunpack.c.l.s4 1966171168
        %v6058 = vunpack.c.0.s8 %v6057
        %v6059 = vlaneseq
        %v6060 = vshrl.u32 %v6059, 7
        %v6061 = vsub.s32 %v6058, %v6060
        %v6062 = vrot.slane %v6048, %v6061
        %v6063 = vcombine.low %v6055, %v6062
        %v6065 = vunpack.c.l.s4 1966171168
        %v6066 = vunpack.c.0.s8 %v6065
        %v6067 = vlaneseq
        %v6068 = vshrl.u32 %v6067, 7
        %v6069 = vsub.s32 %v6066, %v6068
        %v6070 = vrot.slane %v6005, %v6069
        %v6072 = vunpack.c.l.s4 1966171168
        %v6073 = vunpack.c.0.s8 %v6072
        %v6074 = vlaneseq
        %v6075 = vshrl.u32 %v6074, 7
        %v6076 = vsub.s32 %v6073, %v6075
        %v6077 = vrot.slane %v6070, %v6076
        %v6080 = vadd.f32 %v5993, %v6063
        %v6081 = vadd.f32 %v5994, %v6077
        %s6082 = sld [smem:[#allocation2 + $0x59]]
        %v6083 = vstv %s6082
        %v6084 = vmul.f32 %v6083, %v481
        %v6085 = vmul.f32 %v6083, %v480
        %v6086 = vmul.f32 %v6083, %v479
        %v6087 = vmul.f32 %v6083, %v478
        %v6088 = vmul.f32 %v6083, %v477
        %v6089 = vmul.f32 %v6083, %v476
        %v6090 = vmul.f32 %v6083, %v475
        %v6091 = vmul.f32 %v6083, %v474
        %v6092 = vmul.f32 %v6083, %v482
        %v6102 = vcombine.low %v6084, %v6085
        %v6103 = vcombine.low %v6086, %v6087
        %v6104 = vcombine.low %v6088, %v6089
        %v6105 = vcombine.low %v6090, %v6091
        %v6107 = vunpack.c.l.s4 1966171168
        %v6108 = vunpack.c.0.s8 %v6107
        %v6109 = vlaneseq
        %v6110 = vshrl.u32 %v6109, 7
        %v6111 = vsub.s32 %v6108, %v6110
        %v6112 = vrot.slane %v6102, %v6111
        %v6114 = vunpack.c.l.s4 1966171168
        %v6115 = vunpack.c.0.s8 %v6114
        %v6116 = vlaneseq
        %v6117 = vshrl.u32 %v6116, 7
        %v6118 = vsub.s32 %v6115, %v6117
        %v6119 = vrot.slane %v6103, %v6118
        %v6121 = vunpack.c.l.s4 1966171168
        %v6122 = vunpack.c.0.s8 %v6121
        %v6123 = vlaneseq
        %v6124 = vshrl.u32 %v6123, 7
        %v6125 = vsub.s32 %v6122, %v6124
        %v6126 = vrot.slane %v6104, %v6125
        %v6128 = vunpack.c.l.s4 1966171168
        %v6129 = vunpack.c.0.s8 %v6128
        %v6130 = vlaneseq
        %v6131 = vshrl.u32 %v6130, 7
        %v6132 = vsub.s32 %v6129, %v6131
        %v6133 = vrot.slane %v6105, %v6132
        %v6134 = vcombine.low %v6112, %v6119
        %v6135 = vcombine.low %v6126, %v6133
        %v6137 = vunpack.c.l.s4 1966171168
        %v6138 = vunpack.c.0.s8 %v6137
        %v6139 = vlaneseq
        %v6140 = vshrl.u32 %v6139, 7
        %v6141 = vsub.s32 %v6138, %v6140
        %v6142 = vrot.slane %v6134, %v6141
        %v6144 = vunpack.c.l.s4 1966171168
        %v6145 = vunpack.c.0.s8 %v6144
        %v6146 = vlaneseq
        %v6147 = vshrl.u32 %v6146, 7
        %v6148 = vsub.s32 %v6145, %v6147
        %v6149 = vrot.slane %v6135, %v6148
        %v6150 = vcombine.low %v6142, %v6149
        %v6152 = vunpack.c.l.s4 1966171168
        %v6153 = vunpack.c.0.s8 %v6152
        %v6154 = vlaneseq
        %v6155 = vshrl.u32 %v6154, 7
        %v6156 = vsub.s32 %v6153, %v6155
        %v6157 = vrot.slane %v6092, %v6156
        %v6159 = vunpack.c.l.s4 1966171168
        %v6160 = vunpack.c.0.s8 %v6159
        %v6161 = vlaneseq
        %v6162 = vshrl.u32 %v6161, 7
        %v6163 = vsub.s32 %v6160, %v6162
        %v6164 = vrot.slane %v6157, %v6163
        %v6167 = vadd.f32 %v6080, %v6150
        %v6168 = vadd.f32 %v6081, %v6164
        %s6169 = sld [smem:[#allocation2 + $0x5a]]
        %v6170 = vstv %s6169
        %v6171 = vmul.f32 %v6170, %v484
        %v6172 = vmul.f32 %v6170, %v485
        %v6173 = vadd.f32 %v6167, %v6171
        %v6174 = vadd.f32 %v6168, %v6172
        %s6175 = sld [smem:[#allocation2 + $0x5b]]
        %v6176 = vstv %s6175
        %v6177 = vmul.f32 %v6176, %v558
        %v6178 = vmul.f32 %v6176, %v557
        %v6179 = vmul.f32 %v6176, %v556
        %v6180 = vmul.f32 %v6176, %v555
        %v6181 = vmul.f32 %v6176, %v554
        %v6182 = vmul.f32 %v6176, %v553
        %v6183 = vmul.f32 %v6176, %v552
        %v6184 = vmul.f32 %v6176, %v551
        %v6185 = vmul.f32 %v6176, %v559
        %v6195 = vcombine.low %v6177, %v6178
        %v6196 = vcombine.low %v6179, %v6180
        %v6197 = vcombine.low %v6181, %v6182
        %v6198 = vcombine.low %v6183, %v6184
        %v6200 = vunpack.c.l.s4 1966171168
        %v6201 = vunpack.c.0.s8 %v6200
        %v6202 = vlaneseq
        %v6203 = vshrl.u32 %v6202, 7
        %v6204 = vsub.s32 %v6201, %v6203
        %v6205 = vrot.slane %v6195, %v6204
        %v6207 = vunpack.c.l.s4 1966171168
        %v6208 = vunpack.c.0.s8 %v6207
        %v6209 = vlaneseq
        %v6210 = vshrl.u32 %v6209, 7
        %v6211 = vsub.s32 %v6208, %v6210
        %v6212 = vrot.slane %v6196, %v6211
        %v6214 = vunpack.c.l.s4 1966171168
        %v6215 = vunpack.c.0.s8 %v6214
        %v6216 = vlaneseq
        %v6217 = vshrl.u32 %v6216, 7
        %v6218 = vsub.s32 %v6215, %v6217
        %v6219 = vrot.slane %v6197, %v6218
        %v6221 = vunpack.c.l.s4 1966171168
        %v6222 = vunpack.c.0.s8 %v6221
        %v6223 = vlaneseq
        %v6224 = vshrl.u32 %v6223, 7
        %v6225 = vsub.s32 %v6222, %v6224
        %v6226 = vrot.slane %v6198, %v6225
        %v6227 = vcombine.low %v6205, %v6212
        %v6228 = vcombine.low %v6219, %v6226
        %v6230 = vunpack.c.l.s4 1966171168
        %v6231 = vunpack.c.0.s8 %v6230
        %v6232 = vlaneseq
        %v6233 = vshrl.u32 %v6232, 7
        %v6234 = vsub.s32 %v6231, %v6233
        %v6235 = vrot.slane %v6227, %v6234
        %v6237 = vunpack.c.l.s4 1966171168
        %v6238 = vunpack.c.0.s8 %v6237
        %v6239 = vlaneseq
        %v6240 = vshrl.u32 %v6239, 7
        %v6241 = vsub.s32 %v6238, %v6240
        %v6242 = vrot.slane %v6228, %v6241
        %v6243 = vcombine.low %v6235, %v6242
        %v6245 = vunpack.c.l.s4 1966171168
        %v6246 = vunpack.c.0.s8 %v6245
        %v6247 = vlaneseq
        %v6248 = vshrl.u32 %v6247, 7
        %v6249 = vsub.s32 %v6246, %v6248
        %v6250 = vrot.slane %v6185, %v6249
        %v6252 = vunpack.c.l.s4 1966171168
        %v6253 = vunpack.c.0.s8 %v6252
        %v6254 = vlaneseq
        %v6255 = vshrl.u32 %v6254, 7
        %v6256 = vsub.s32 %v6253, %v6255
        %v6257 = vrot.slane %v6250, %v6256
        %v6260 = vadd.f32 %v6173, %v6243
        %v6261 = vadd.f32 %v6174, %v6257
        %s6262 = sld [smem:[#allocation2 + $0x5c]]
        %v6263 = vstv %s6262
        %v6264 = vmul.f32 %v6263, %v585
        %v6265 = vmul.f32 %v6263, %v584
        %v6266 = vmul.f32 %v6263, %v583
        %v6267 = vmul.f32 %v6263, %v582
        %v6268 = vmul.f32 %v6263, %v581
        %v6269 = vmul.f32 %v6263, %v580
        %v6270 = vmul.f32 %v6263, %v579
        %v6271 = vmul.f32 %v6263, %v578
        %v6272 = vmul.f32 %v6263, %v586
        %v6282 = vcombine.low %v6264, %v6265
        %v6283 = vcombine.low %v6266, %v6267
        %v6284 = vcombine.low %v6268, %v6269
        %v6285 = vcombine.low %v6270, %v6271
        %v6287 = vunpack.c.l.s4 1966171168
        %v6288 = vunpack.c.0.s8 %v6287
        %v6289 = vlaneseq
        %v6290 = vshrl.u32 %v6289, 7
        %v6291 = vsub.s32 %v6288, %v6290
        %v6292 = vrot.slane %v6282, %v6291
        %v6294 = vunpack.c.l.s4 1966171168
        %v6295 = vunpack.c.0.s8 %v6294
        %v6296 = vlaneseq
        %v6297 = vshrl.u32 %v6296, 7
        %v6298 = vsub.s32 %v6295, %v6297
        %v6299 = vrot.slane %v6283, %v6298
        %v6301 = vunpack.c.l.s4 1966171168
        %v6302 = vunpack.c.0.s8 %v6301
        %v6303 = vlaneseq
        %v6304 = vshrl.u32 %v6303, 7
        %v6305 = vsub.s32 %v6302, %v6304
        %v6306 = vrot.slane %v6284, %v6305
        %v6308 = vunpack.c.l.s4 1966171168
        %v6309 = vunpack.c.0.s8 %v6308
        %v6310 = vlaneseq
        %v6311 = vshrl.u32 %v6310, 7
        %v6312 = vsub.s32 %v6309, %v6311
        %v6313 = vrot.slane %v6285, %v6312
        %v6314 = vcombine.low %v6292, %v6299
        %v6315 = vcombine.low %v6306, %v6313
        %v6317 = vunpack.c.l.s4 1966171168
        %v6318 = vunpack.c.0.s8 %v6317
        %v6319 = vlaneseq
        %v6320 = vshrl.u32 %v6319, 7
        %v6321 = vsub.s32 %v6318, %v6320
        %v6322 = vrot.slane %v6314, %v6321
        %v6324 = vunpack.c.l.s4 1966171168
        %v6325 = vunpack.c.0.s8 %v6324
        %v6326 = vlaneseq
        %v6327 = vshrl.u32 %v6326, 7
        %v6328 = vsub.s32 %v6325, %v6327
        %v6329 = vrot.slane %v6315, %v6328
        %v6330 = vcombine.low %v6322, %v6329
        %v6332 = vunpack.c.l.s4 1966171168
        %v6333 = vunpack.c.0.s8 %v6332
        %v6334 = vlaneseq
        %v6335 = vshrl.u32 %v6334, 7
        %v6336 = vsub.s32 %v6333, %v6335
        %v6337 = vrot.slane %v6272, %v6336
        %v6339 = vunpack.c.l.s4 1966171168
        %v6340 = vunpack.c.0.s8 %v6339
        %v6341 = vlaneseq
        %v6342 = vshrl.u32 %v6341, 7
        %v6343 = vsub.s32 %v6340, %v6342
        %v6344 = vrot.slane %v6337, %v6343
        %v6347 = vadd.f32 %v6260, %v6330
        %v6348 = vadd.f32 %v6261, %v6344
        %s6349 = sld [smem:[#allocation2 + $0x5d]]
        %v6350 = vstv %s6349
        %v6351 = vmul.f32 %v6350, %v588
        %v6352 = vmul.f32 %v6350, %v589
        %v6353 = vadd.f32 %v6347, %v6351
        %v6354 = vadd.f32 %v6348, %v6352
        %s6355 = sld [smem:[#allocation2 + $0x5e]]
        %v6356 = vstv %s6355
        %v6357 = vmul.f32 %v6356, %v662
        %v6358 = vmul.f32 %v6356, %v661
        %v6359 = vmul.f32 %v6356, %v660
        %v6360 = vmul.f32 %v6356, %v659
        %v6361 = vmul.f32 %v6356, %v658
        %v6362 = vmul.f32 %v6356, %v657
        %v6363 = vmul.f32 %v6356, %v656
        %v6364 = vmul.f32 %v6356, %v655
        %v6365 = vmul.f32 %v6356, %v663
        %v6375 = vcombine.low %v6357, %v6358
        %v6376 = vcombine.low %v6359, %v6360
        %v6377 = vcombine.low %v6361, %v6362
        %v6378 = vcombine.low %v6363, %v6364
        %v6380 = vunpack.c.l.s4 1966171168
        %v6381 = vunpack.c.0.s8 %v6380
        %v6382 = vlaneseq
        %v6383 = vshrl.u32 %v6382, 7
        %v6384 = vsub.s32 %v6381, %v6383
        %v6385 = vrot.slane %v6375, %v6384
        %v6387 = vunpack.c.l.s4 1966171168
        %v6388 = vunpack.c.0.s8 %v6387
        %v6389 = vlaneseq
        %v6390 = vshrl.u32 %v6389, 7
        %v6391 = vsub.s32 %v6388, %v6390
        %v6392 = vrot.slane %v6376, %v6391
        %v6394 = vunpack.c.l.s4 1966171168
        %v6395 = vunpack.c.0.s8 %v6394
        %v6396 = vlaneseq
        %v6397 = vshrl.u32 %v6396, 7
        %v6398 = vsub.s32 %v6395, %v6397
        %v6399 = vrot.slane %v6377, %v6398
        %v6401 = vunpack.c.l.s4 1966171168
        %v6402 = vunpack.c.0.s8 %v6401
        %v6403 = vlaneseq
        %v6404 = vshrl.u32 %v6403, 7
        %v6405 = vsub.s32 %v6402, %v6404
        %v6406 = vrot.slane %v6378, %v6405
        %v6407 = vcombine.low %v6385, %v6392
        %v6408 = vcombine.low %v6399, %v6406
        %v6410 = vunpack.c.l.s4 1966171168
        %v6411 = vunpack.c.0.s8 %v6410
        %v6412 = vlaneseq
        %v6413 = vshrl.u32 %v6412, 7
        %v6414 = vsub.s32 %v6411, %v6413
        %v6415 = vrot.slane %v6407, %v6414
        %v6417 = vunpack.c.l.s4 1966171168
        %v6418 = vunpack.c.0.s8 %v6417
        %v6419 = vlaneseq
        %v6420 = vshrl.u32 %v6419, 7
        %v6421 = vsub.s32 %v6418, %v6420
        %v6422 = vrot.slane %v6408, %v6421
        %v6423 = vcombine.low %v6415, %v6422
        %v6425 = vunpack.c.l.s4 1966171168
        %v6426 = vunpack.c.0.s8 %v6425
        %v6427 = vlaneseq
        %v6428 = vshrl.u32 %v6427, 7
        %v6429 = vsub.s32 %v6426, %v6428
        %v6430 = vrot.slane %v6365, %v6429
        %v6432 = vunpack.c.l.s4 1966171168
        %v6433 = vunpack.c.0.s8 %v6432
        %v6434 = vlaneseq
        %v6435 = vshrl.u32 %v6434, 7
        %v6436 = vsub.s32 %v6433, %v6435
        %v6437 = vrot.slane %v6430, %v6436
        %v6440 = vadd.f32 %v6353, %v6423
        %v6441 = vadd.f32 %v6354, %v6437
        %s6442 = sld [smem:[#allocation2 + $0x5f]]
        %v6443 = vstv %s6442
        %v6444 = vmul.f32 %v6443, %v689
        %v6445 = vmul.f32 %v6443, %v688
        %v6446 = vmul.f32 %v6443, %v687
        %v6447 = vmul.f32 %v6443, %v686
        %v6448 = vmul.f32 %v6443, %v685
        %v6449 = vmul.f32 %v6443, %v684
        %v6450 = vmul.f32 %v6443, %v683
        %v6451 = vmul.f32 %v6443, %v682
        %v6452 = vmul.f32 %v6443, %v690
        %v6462 = vcombine.low %v6444, %v6445
        %v6463 = vcombine.low %v6446, %v6447
        %v6464 = vcombine.low %v6448, %v6449
        %v6465 = vcombine.low %v6450, %v6451
        %v6467 = vunpack.c.l.s4 1966171168
        %v6468 = vunpack.c.0.s8 %v6467
        %v6469 = vlaneseq
        %v6470 = vshrl.u32 %v6469, 7
        %v6471 = vsub.s32 %v6468, %v6470
        %v6472 = vrot.slane %v6462, %v6471
        %v6474 = vunpack.c.l.s4 1966171168
        %v6475 = vunpack.c.0.s8 %v6474
        %v6476 = vlaneseq
        %v6477 = vshrl.u32 %v6476, 7
        %v6478 = vsub.s32 %v6475, %v6477
        %v6479 = vrot.slane %v6463, %v6478
        %v6481 = vunpack.c.l.s4 1966171168
        %v6482 = vunpack.c.0.s8 %v6481
        %v6483 = vlaneseq
        %v6484 = vshrl.u32 %v6483, 7
        %v6485 = vsub.s32 %v6482, %v6484
        %v6486 = vrot.slane %v6464, %v6485
        %v6488 = vunpack.c.l.s4 1966171168
        %v6489 = vunpack.c.0.s8 %v6488
        %v6490 = vlaneseq
        %v6491 = vshrl.u32 %v6490, 7
        %v6492 = vsub.s32 %v6489, %v6491
        %v6493 = vrot.slane %v6465, %v6492
        %v6494 = vcombine.low %v6472, %v6479
        %v6495 = vcombine.low %v6486, %v6493
        %v6497 = vunpack.c.l.s4 1966171168
        %v6498 = vunpack.c.0.s8 %v6497
        %v6499 = vlaneseq
        %v6500 = vshrl.u32 %v6499, 7
        %v6501 = vsub.s32 %v6498, %v6500
        %v6502 = vrot.slane %v6494, %v6501
        %v6504 = vunpack.c.l.s4 1966171168
        %v6505 = vunpack.c.0.s8 %v6504
        %v6506 = vlaneseq
        %v6507 = vshrl.u32 %v6506, 7
        %v6508 = vsub.s32 %v6505, %v6507
        %v6509 = vrot.slane %v6495, %v6508
        %v6510 = vcombine.low %v6502, %v6509
        %v6512 = vunpack.c.l.s4 1966171168
        %v6513 = vunpack.c.0.s8 %v6512
        %v6514 = vlaneseq
        %v6515 = vshrl.u32 %v6514, 7
        %v6516 = vsub.s32 %v6513, %v6515
        %v6517 = vrot.slane %v6452, %v6516
        %v6519 = vunpack.c.l.s4 1966171168
        %v6520 = vunpack.c.0.s8 %v6519
        %v6521 = vlaneseq
        %v6522 = vshrl.u32 %v6521, 7
        %v6523 = vsub.s32 %v6520, %v6522
        %v6524 = vrot.slane %v6517, %v6523
        %v6527 = vadd.f32 %v6440, %v6510
        %v6528 = vadd.f32 %v6441, %v6524
        %s6529 = sld [smem:[#allocation7 + $0x7]]
        %v6530 = vstv %s6529
        %v6531 = vmul.f32 %v6527, %v6530
        %v6532 = vmul.f32 %v6528, %v6530
        %s6533 = sld [smem:[#allocation8 + $0x7]]
        %v6534 = vstv %s6533
        %v6535 = vadd.f32 %v6531, %v6534
        %v6536 = vadd.f32 %v6532, %v6534
        %v6537 = vmax.f32 %v6535, 0.0
        %v6538 = vmax.f32 %v6536, 0.0
        %s6539 = scalar_lea.vmem %s271, 63 [#allocation11]
        %6540 = vst [vmem:[%s6539] sm:$0xff] %v6537
        %6541 = vst.msk [vmem:[%s6539 + $0x8] sm:$0x1] %vm1423, %v6538
        %s6542 = sand.u32 %s137, 1
        %s6543 = scalar_lea.sflag [#allocation4], %s6542
        %s6544 = sand.u32 %s137, 1
        %s6545 = smul.addr %s6544, 72
        %s6546 = scalar_lea.vmem [#allocation11], %s6545
        // Predicated region
        $region53: #{tpu_custom_call.1} parent=35 // pred_check
          %p6547 = pneg %p147
        $region54: #{tpu_custom_call.1} parent=35 // pred_check_branch
          %6549 = sbr.rel (%p6547) target = $region56
        $region55: #{tpu_custom_call.1} parent=35 // pred_region
          %s6551 = ssub.s32 1152, 1152
          %6552 = vsyncadd %s6543, %s6551
          %s6553 = smul.addr %s29, 9
          %s6554 = smul.addr %s28, 72
          %s6555 = sadd.s32 %s6553, %s6554
          %s6556 = smul.addr %s6555, 16
          %s6557 = scalar_lea.hbm %s4, %s6556
          %s6558 = sshll.u32 %s6546, 4
          %s6559 = int_to_ptr.vmem [resolvable:$true] %s6558
          %6564 = dma.vmem_to_hbm [thread:$0]  %s6559, 1152, %s6557, %s6543, 144, 144, 9
        $region56: #{tpu_custom_call.1} parent=35 // pred_fallthru
          _
      $region36: #{tpu_custom_call.1} parent=5 // pred_fallthru
        _
      %p6565 = scmp.le.s32.totalorder 2, %s19
      // Predicated region
      $region57: #{tpu_custom_call.1} parent=5 // pred_check
        %p6566 = pneg %p6565
      $region58: #{tpu_custom_call.1} parent=5 // pred_check_branch
        %6568 = sbr.rel (%p6566) target = $region60
      $region59: #{tpu_custom_call.1} parent=5 // pred_region
        %s6569 = ssub.s32 %s19, 2
        // Predicated region
        $region61: #{tpu_custom_call.1} parent=59 // pred_check
          %p6570 = pneg %p153
        $region62: #{tpu_custom_call.1} parent=59 // pred_check_branch
          %6572 = sbr.rel (%p6570) target = $region64
        $region63: #{tpu_custom_call.1} parent=59 // pred_region
          %s6573 = sand.u32 %s138, 1
          %s6574 = scalar_lea.sflag [#allocation4], %s6573
          %s6575 = sand.u32 %s138, 1
          %s6576 = smul.addr %s6575, 72
          %s6577 = scalar_lea.vmem [#allocation11], %s6576
          %6578 = dma.done %s6574, 1152
        $region64: #{tpu_custom_call.1} parent=59 // pred_fallthru
          _
      $region60: #{tpu_custom_call.1} parent=5 // pred_fallthru
        _
    $region6: #{tpu_custom_call.1} parent=1 // loop_footer
      %s23 = sadd.s32 1, %s19
    $region7: #{tpu_custom_call.1} parent=1 // loop_footer_branch
      %18 = sbr.rel target = $region3
    $region8: #{tpu_custom_call.1} parent=1 // loop_exit
      _
    %6579 = vsyncpa [#allocation3], 1
    %s6580 = scalar_lea.sflag [#allocation3], 1
    %6581 = vsyncpa %s6580, 1
    %6582 = vsyncpa [#allocation4], 1
    %s6583 = scalar_lea.sflag [#allocation4], 1
    %6584 = vsyncpa %s6583, 1
    %6585 = vsyncpa [#allocation5], 1
    %s6586 = scalar_lea.sflag [#allocation5], 1
    %6587 = vsyncpa %s6586, 1
    %6588 = vsyncpa [#allocation6], 1
    %s6589 = scalar_lea.sflag [#allocation6], 1
    %6590 = vsyncpa %s6589, 1
    %6591 = vsyncpa [#allocation9], 1

</llo_original>
